<compile_context>
chip_gen: v7x
topology: tpu7x:2x2x1
jax: 0.10.0
libtpu: 0.0.40
codegen_flags: <defaults>
</compile_context>

<pallas_src>
import functools

import jax
import jax.numpy as jnp
import numpy as np
from jax.experimental import pallas as pl
from jax.experimental.pallas import tpu as pltpu


def _round_up(x, m):
    return (x + m - 1) // m * m


def _lstm_kernel(x_ref, h0_ref, c0_ref, wih_ref, whh_ref, b_ref, wl_ref, bl_ref,
                 pred_ref, hn_ref, cn_ref,
                 gx_ref, h_hist_ref,
                 *, seq_len, mask_tail):
    tb = pl.program_id(0)
    t_blk, bp, dp = x_ref.shape
    hg = hn_ref.shape[-1]          # gate block width == state lane width

    # h_n / c_n have constant-index output BlockSpecs, so their VMEM blocks
    # persist across the sequential ("arbitrary") time grid and double as the
    # recurrent carry.  Seed them from prev_state on the first chunk.
    @pl.when(tb == 0)
    def _():
        hn_ref[...] = h0_ref[...]
        cn_ref[...] = c0_ref[...]

    # ---- Phase 1: input projection for the whole chunk, one big-M MXU matmul.
    x_flat = x_ref[...].reshape(t_blk * bp, dp)
    gx_ref[...] = jnp.dot(x_flat.astype(wih_ref.dtype), wih_ref[...],
                          preferred_element_type=jnp.float32) + b_ref[...]

    # ---- Phase 2: serial recurrence; only h @ W_hh^T + gate math per step.
    # TODO(synk): on v5e/v6e, pin the invariant W_hh^T in the MXU weight
    # registers across the unrolled loop via pltpu.matmul_push_rhs /
    # matmul_acc_lhs / matmul_pop instead of a fresh jnp.dot per step.
    h = hn_ref[...]
    c = cn_ref[...]
    for s in range(t_blk):                       # static trip count (unrolled)
        g = gx_ref[s * bp:(s + 1) * bp, :] + jnp.dot(
            h.astype(whh_ref.dtype), whh_ref[...],
            preferred_element_type=jnp.float32)
        # Gate-packed layout: gate k (order i,f,g,o) lives in lanes [k*hg,(k+1)*hg).
        i_g = jax.nn.sigmoid(g[:, 0 * hg:1 * hg])
        f_g = jax.nn.sigmoid(g[:, 1 * hg:2 * hg])
        g_g = jnp.tanh(g[:, 2 * hg:3 * hg])
        o_g = jax.nn.sigmoid(g[:, 3 * hg:4 * hg])
        c_new = f_g * c + i_g * g_g
        h_new = o_g * jnp.tanh(c_new)
        if mask_tail:                            # static: only when S % t_blk != 0
            valid = (tb * t_blk + s) < seq_len
            h_new = jnp.where(valid, h_new, h)
            c_new = jnp.where(valid, c_new, c)
        h, c = h_new, c_new
        # Write h to the history scratch each step so the unrolled loop never
        # keeps t_blk hidden-state vregs live at once.
        h_hist_ref[s * bp:(s + 1) * bp, :] = h_new.astype(h_hist_ref.dtype)

    # Write the carry / final state once per chunk (not once per timestep).
    hn_ref[...] = h
    cn_ref[...] = c

    # ---- Phase 3: output Linear batched over the chunk, lane-dense store.
    pred = jnp.dot(h_hist_ref[...].astype(wl_ref.dtype), wl_ref[...],
                   preferred_element_type=jnp.float32) + bl_ref[...]
    pred_ref[...] = pred.reshape(t_blk, bp, dp).astype(pred_ref.dtype)


def prepare_lstm_params(params, *, weight_dtype=jnp.bfloat16):
    """Pad / transpose / (optionally) bf16-cast the weights ONCE (cacheable).

    Gate-packed layout: gate k occupies columns [k*Hg, k*Hg + H), where
    Hg = H when H < 128 (no per-gate 128 padding) and Hg = round_up(H, 128)
    otherwise.  Zero padding rows/cols guarantee padding cannot leak.
    """
    H = params["w_hh"].shape[1]
    D = params["w_ih"].shape[1]
    Hg = H if H < 128 else _round_up(H, 128)
    Dp = _round_up(D, 128)
    G = 4 * Hg
    f32 = jnp.float32

    def pack_gates_t(w, k, kp):
        # (4H, K) -> (Kp, 4*Hg): gate-packed transpose with zero padding.
        w4 = jnp.zeros((4, Hg, kp), f32).at[:, :H, :k].set(
            w.astype(f32).reshape(4, H, k))
        return jnp.transpose(w4, (2, 0, 1)).reshape(kp, G)

    bias = jnp.zeros((4, Hg), f32).at[:, :H].set(
        (params["b_ih"] + params["b_hh"]).astype(f32).reshape(4, H)).reshape(1, G)
    wl_t = jnp.zeros((Hg, Dp), f32).at[:H, :D].set(params["w_lin"].astype(f32).T)
    bl = jnp.zeros((1, Dp), f32).at[0, :D].set(params["b_lin"].astype(f32))
    return {
        "_prepared": True, "H": H, "D": D, "Hg": Hg, "Dp": Dp, "G": G,
        "weight_dtype": jnp.dtype(weight_dtype),
        "wih_t": pack_gates_t(params["w_ih"], D, Dp).astype(weight_dtype),
        "whh_t": pack_gates_t(params["w_hh"], H, Hg).astype(weight_dtype),
        "bias": bias,
        "wl_t": wl_t.astype(weight_dtype),
        "bl": bl,
    }


def _build_lstm_call(*, n_chunks, t_blk, Bp, Dp, Hg, G, x_dtype, weight_dtype,
                     seq_len, mask_tail, vmem_limit, use_buffered):
    Sp = n_chunks * t_blk
    chunk_map = lambda tb: (tb, 0, 0)
    const2 = lambda tb: (0, 0)

    def const_spec(shape):
        if use_buffered:
            # Grid-invariant blocks: single-buffer (default is 2) to halve
            # their VMEM residency -- matters for large H on v7x (64 MiB/TC).
            return pl.BlockSpec(shape, const2, pipeline_mode=pl.Buffered(1))
        return pl.BlockSpec(shape, const2)

    kernel = functools.partial(_lstm_kernel, seq_len=seq_len, mask_tail=mask_tail)
    return pl.pallas_call(
        kernel,
        out_shape=(
            jax.ShapeDtypeStruct((Sp, Bp, Dp), x_dtype),
            jax.ShapeDtypeStruct((Bp, Hg), jnp.float32),
            jax.ShapeDtypeStruct((Bp, Hg), jnp.float32),
        ),
        grid_spec=pltpu.PrefetchScalarGridSpec(
            num_scalar_prefetch=0,
            grid=(n_chunks,),
            in_specs=[
                pl.BlockSpec((t_blk, Bp, Dp), chunk_map),     # x chunk
                const_spec((Bp, Hg)),                         # h0
                const_spec((Bp, Hg)),                         # c0
                const_spec((Dp, G)),                          # W_ih^T (gate-packed)
                const_spec((Hg, G)),                          # W_hh^T (gate-packed)
                const_spec((1, G)),                           # b_ih + b_hh
                const_spec((Hg, Dp)),                         # W_lin^T
                const_spec((1, Dp)),                          # b_lin
            ],
            out_specs=[
                pl.BlockSpec((t_blk, Bp, Dp), chunk_map),     # pred chunk
                pl.BlockSpec((Bp, Hg), const2),               # h_n (carry)
                pl.BlockSpec((Bp, Hg), const2),               # c_n (carry)
            ],
            scratch_shapes=[
                pltpu.VMEM((t_blk * Bp, G), jnp.float32),     # gx = X@W_ih^T + b
                pltpu.VMEM((t_blk * Bp, Hg), weight_dtype),   # h history for Linear
            ],
        ),
        compiler_params=pltpu.CompilerParams(
            # Time axis must stay sequential: the h/c carry lives in the
            # constant-index output blocks.  Do not mark it "parallel".
            dimension_semantics=("arbitrary",),
            vmem_limit_bytes=vmem_limit,
        ),
    )


def lstm_model_forward(x, prev_state, params, *, t_blk=32,
                       weight_dtype=jnp.bfloat16):
    """Pallas implementation of LstmModel.forward.

    x:          (seq_len, batch, input_dim)
    prev_state: (h0, c0), each (1, batch, hidden_dim)
    params:     raw dict (w_ih, w_hh, b_ih, b_hh, w_lin, b_lin) or the cached
                output of prepare_lstm_params (preferred: prepare once).
    Returns (pred, (h_n, c_n)) matching PyTorch shapes.
    """
    if not (isinstance(params, dict) and params.get("_prepared")):
        params = prepare_lstm_params(params, weight_dtype=weight_dtype)
    H, D = params["H"], params["D"]
    Hg, Dp, G = params["Hg"], params["Dp"], params["G"]
    wdt = params["weight_dtype"]

    S, B, _ = x.shape
    Bp = _round_up(B, 8)                       # f32 sublane count
    t_blk = max(1, min(t_blk, S))              # don't unroll past the sequence
    n_chunks = pl.cdiv(S, t_blk)
    Sp = n_chunks * t_blk
    f32 = jnp.float32

    # Only activations need per-call padding; weights were prepared once.
    xp = jnp.zeros((Sp, Bp, Dp), wdt).at[:S, :B, :D].set(x.astype(wdt))
    h0 = jnp.zeros((Bp, Hg), f32).at[:B, :H].set(prev_state[0][0].astype(f32))
    c0 = jnp.zeros((Bp, Hg), f32).at[:B, :H].set(prev_state[1][0].astype(f32))

    # VMEM budget from the actual resident working set, capped by the chip's
    # physical VMEM with headroom for Mosaic internal scratch.
    wbytes = wdt.itemsize
    resident = (
        2 * t_blk * Bp * Dp * (wbytes + x.dtype.itemsize)   # x + pred, 2-deep
        + ((Dp + Hg) * G + Hg * Dp) * wbytes                # weights, 1-deep
        + (G + Dp) * 4                                      # biases
        + 6 * Bp * Hg * 4                                   # h0/c0 + hn/cn blocks
        + t_blk * Bp * (G * 4 + Hg * wbytes)                # gx + h_hist scratch
        + 16 * Bp * G * 4                                   # per-step temporaries
    )
    try:
        cap = pltpu.get_tpu_info().vmem_capacity_bytes
    except Exception:
        cap = 64 * 2 ** 20
    vmem_limit = int(min(cap * 3 // 4, max(32 * 2 ** 20, 2 * resident)))

    # TODO(synk): for Bp >= 16 on v7x, shard the (batch-independent) recurrence
    # across the 2 TensorCores with a batch-split grid axis / pl.core_map.
    args = (xp, h0, c0, params["wih_t"], params["whh_t"], params["bias"],
            params["wl_t"], params["bl"])
    common = dict(n_chunks=n_chunks, t_blk=t_blk, Bp=Bp, Dp=Dp, Hg=Hg, G=G,
                  x_dtype=x.dtype, weight_dtype=wdt, seq_len=S,
                  mask_tail=(Sp != S), vmem_limit=vmem_limit)
    try:
        pred_p, hn_p, cn_p = _build_lstm_call(use_buffered=True, **common)(*args)
    except Exception:
        # Fallback for JAX versions without BlockSpec(pipeline_mode=...).
        pred_p, hn_p, cn_p = _build_lstm_call(use_buffered=False, **common)(*args)

    pred = pred_p[:S, :B, :D].astype(x.dtype)
    h_n = hn_p[:B, :H].astype(x.dtype)[None]
    c_n = cn_p[:B, :H].astype(x.dtype)[None]
    return pred, (h_n, c_n)


def init_params(key, input_dim, hidden_dim):
    """Deterministic init mimicking PyTorch's U(-1/sqrt(H), 1/sqrt(H))."""
    ks = jax.random.split(key, 6)
    bound = 1.0 / np.sqrt(hidden_dim)
    u = lambda k, shape: jax.random.uniform(
        k, shape, jnp.float32, minval=-bound, maxval=bound)
    return {
        "w_ih": u(ks[0], (4 * hidden_dim, input_dim)),
        "w_hh": u(ks[1], (4 * hidden_dim, hidden_dim)),
        "b_ih": u(ks[2], (4 * hidden_dim,)),
        "b_hh": u(ks[3], (4 * hidden_dim,)),
        "w_lin": u(ks[4], (input_dim, hidden_dim)),
        "b_lin": u(ks[5], (input_dim,)),
    }


def _reference_forward(x, prev_state, params):
    """Pure-JAX reference (lax.scan) mirroring nn.LSTM + nn.Linear."""
    H = params["w_hh"].shape[1]

    def step(carry, x_t):
        h, c = carry
        gates = (x_t @ params["w_ih"].T + params["b_ih"]
                 + h @ params["w_hh"].T + params["b_hh"])
        i = jax.nn.sigmoid(gates[:, 0 * H:1 * H])
        f = jax.nn.sigmoid(gates[:, 1 * H:2 * H])
        g = jnp.tanh(gates[:, 2 * H:3 * H])
        o = jax.nn.sigmoid(gates[:, 3 * H:4 * H])
        c_new = f * c + i * g
        h_new = o * jnp.tanh(c_new)
        return (h_new, c_new), h_new

    (h_n, c_n), outs = jax.lax.scan(step, (prev_state[0][0], prev_state[1][0]), x)
    pred = outs @ params["w_lin"].T + params["b_lin"]
    return pred, (h_n[None], c_n[None])


if __name__ == "__main__":
    SEQ, BATCH, INPUT_DIM, HIDDEN_DIM = 8, 2, 16, 32

    key = jax.random.PRNGKey(0)
    k_x, k_h, k_c, k_p = jax.random.split(key, 4)
    x = jax.random.normal(k_x, (SEQ, BATCH, INPUT_DIM), jnp.float32)
    h0 = jax.random.normal(k_h, (1, BATCH, HIDDEN_DIM), jnp.float32)
    c0 = jax.random.normal(k_c, (1, BATCH, HIDDEN_DIM), jnp.float32)
    params = init_params(k_p, INPUT_DIM, HIDDEN_DIM)

    pred_ref, (h_ref, c_ref) = _reference_forward(x, (h0, c0), params)

    def check(pred, h_n, c_n, tol):
        assert pred.shape == (SEQ, BATCH, INPUT_DIM)
        assert h_n.shape == (1, BATCH, HIDDEN_DIM)
        assert c_n.shape == (1, BATCH, HIDDEN_DIM)
        np.testing.assert_allclose(np.asarray(pred), np.asarray(pred_ref),
                                   rtol=tol, atol=tol)
        np.testing.assert_allclose(np.asarray(h_n), np.asarray(h_ref),
                                   rtol=tol, atol=tol)
        np.testing.assert_allclose(np.asarray(c_n), np.asarray(c_ref),
                                   rtol=tol, atol=tol)

    # Weights prepared (packed/transposed) ONCE and reused across calls.
    prep_f32 = prepare_lstm_params(params, weight_dtype=jnp.float32)

    # (a) f32 weights, t_blk=4 -> 2 chunks: exercises the cross-chunk h/c carry.
    pred, (h_n, c_n) = jax.block_until_ready(
        lstm_model_forward(x, (h0, c0), prep_f32, t_blk=4))
    check(pred, h_n, c_n, 1e-5)

    # (b) f32 weights, t_blk=3 -> ragged tail: exercises the padded-step mask.
    pred, (h_n, c_n) = jax.block_until_ready(
        lstm_model_forward(x, (h0, c0), prep_f32, t_blk=3))
    check(pred, h_n, c_n, 1e-5)

    # (c) default path: bf16 weights/activations for the MXU, large chunk
    #     (clamped to SEQ).  Looser tolerance for bf16 inputs/weights.
    pred, (h_n, c_n) = jax.block_until_ready(
        lstm_model_forward(x, (h0, c0), params))
    check(pred, h_n, c_n, 5e-2)

    print("KERNEL_OK")
</pallas_src>

<mosaic_0001>
module attributes {stable_mosaic.version = 11 : i64} {
  func.func @_lstm_kernel(%arg0: i32, %arg1: memref<4x8x128xf32, #tpu.memory_space<vmem>>, %arg2: memref<8x32xf32, #tpu.memory_space<vmem>>, %arg3: memref<8x32xf32, #tpu.memory_space<vmem>>, %arg4: memref<128x128xf32, #tpu.memory_space<vmem>>, %arg5: memref<32x128xf32, #tpu.memory_space<vmem>>, %arg6: memref<1x128xf32, #tpu.memory_space<vmem>>, %arg7: memref<32x128xf32, #tpu.memory_space<vmem>>, %arg8: memref<1x128xf32, #tpu.memory_space<vmem>>, %arg9: memref<4x8x128xf32, #tpu.memory_space<vmem>>, %arg10: memref<8x32xf32, #tpu.memory_space<vmem>>, %arg11: memref<8x32xf32, #tpu.memory_space<vmem>>, %arg12: memref<32x128xf32, #tpu.memory_space<vmem>>, %arg13: memref<32x32xf32, #tpu.memory_space<vmem>>) attributes {dimension_semantics = [#tpu.dimension_semantics<arbitrary>], iteration_bounds = array<i64: 2>, scalar_prefetch = 0 : i64, scratch_operands = 2 : i64, tpu.core_type = #tpu.core_type<tc>, window_params = [{transform_indices = @transform_0, window_bounds = array<i64: 4, 8, 128>}, {pipeline_mode = #tpu.pipeline_mode<synchronous>, transform_indices = @transform_1, window_bounds = array<i64: 8, 32>}, {pipeline_mode = #tpu.pipeline_mode<synchronous>, transform_indices = @transform_2, window_bounds = array<i64: 8, 32>}, {pipeline_mode = #tpu.pipeline_mode<synchronous>, transform_indices = @transform_3, window_bounds = array<i64: 128, 128>}, {pipeline_mode = #tpu.pipeline_mode<synchronous>, transform_indices = @transform_4, window_bounds = array<i64: 32, 128>}, {pipeline_mode = #tpu.pipeline_mode<synchronous>, transform_indices = @transform_5, window_bounds = array<i64: 1, 128>}, {pipeline_mode = #tpu.pipeline_mode<synchronous>, transform_indices = @transform_6, window_bounds = array<i64: 32, 128>}, {pipeline_mode = #tpu.pipeline_mode<synchronous>, transform_indices = @transform_7, window_bounds = array<i64: 1, 128>}, {transform_indices = @transform_8, window_bounds = array<i64: 4, 8, 128>}, {pipeline_mode = #tpu.pipeline_mode<synchronous>, transform_indices = @transform_9, window_bounds = array<i64: 8, 32>}, {pipeline_mode = #tpu.pipeline_mode<synchronous>, transform_indices = @transform_10, window_bounds = array<i64: 8, 32>}]} {
    %c0_i32 = arith.constant 0 : i32
    %0 = arith.cmpi eq, %arg0, %c0_i32 : i32
    %1 = arith.extui %0 : i1 to i32
    %c0_i32_0 = arith.constant 0 : i32
    %2 = arith.cmpi ne, %1, %c0_i32_0 : i32
    scf.if %2 {
      %c0_64 = arith.constant 0 : index
      %c0_65 = arith.constant 0 : index
      %143 = vector.load %arg2[%c0_64, %c0_65] : memref<8x32xf32, #tpu.memory_space<vmem>>, vector<8x32xf32>
      %c0_66 = arith.constant 0 : index
      %c0_67 = arith.constant 0 : index
      %144 = vector.load %arg10[%c0_66, %c0_67] : memref<8x32xf32, #tpu.memory_space<vmem>>, vector<8x32xf32>
      tpu.vector_store %arg10[%c0_66, %c0_67], %143 {strides = array<i32>} : memref<8x32xf32, #tpu.memory_space<vmem>>, vector<8x32xf32>,
      %c0_68 = arith.constant 0 : index
      %c0_69 = arith.constant 0 : index
      %145 = vector.load %arg3[%c0_68, %c0_69] : memref<8x32xf32, #tpu.memory_space<vmem>>, vector<8x32xf32>
      %c0_70 = arith.constant 0 : index
      %c0_71 = arith.constant 0 : index
      %146 = vector.load %arg11[%c0_70, %c0_71] : memref<8x32xf32, #tpu.memory_space<vmem>>, vector<8x32xf32>
      tpu.vector_store %arg11[%c0_70, %c0_71], %145 {strides = array<i32>} : memref<8x32xf32, #tpu.memory_space<vmem>>, vector<8x32xf32>,
    } else {
    }
    %c0 = arith.constant 0 : index
    %c0_1 = arith.constant 0 : index
    %c0_2 = arith.constant 0 : index
    %3 = vector.load %arg1[%c0, %c0_1, %c0_2] : memref<4x8x128xf32, #tpu.memory_space<vmem>>, vector<4x8x128xf32>
    %4 = vector.shape_cast %3 : vector<4x8x128xf32> to vector<32x128xf32>
    %c0_3 = arith.constant 0 : index
    %c0_4 = arith.constant 0 : index
    %5 = vector.load %arg4[%c0_3, %c0_4] : memref<128x128xf32, #tpu.memory_space<vmem>>, vector<128x128xf32>
    %cst = arith.constant dense<0.000000e+00> : vector<32x128xf32>
    %6 = tpu.matmul %4, %5, %cst {dimension_numbers = #tpu.dot_dimension_numbers<[1], [0], [0], [1], [0, 0, 1, 1], [], []>} : vector<32x128xf32>, vector<128x128xf32>, vector<32x128xf32> -> vector<32x128xf32>
    %c0_5 = arith.constant 0 : index
    %c0_6 = arith.constant 0 : index
    %7 = vector.load %arg6[%c0_5, %c0_6] : memref<1x128xf32, #tpu.memory_space<vmem>>, vector<1x128xf32>
    %8 = vector.broadcast %7 : vector<1x128xf32> to vector<32x128xf32>
    %9 = arith.addf %6, %8 : vector<32x128xf32>
    %c0_7 = arith.constant 0 : index
    %c0_8 = arith.constant 0 : index
    %10 = vector.load %arg12[%c0_7, %c0_8] : memref<32x128xf32, #tpu.memory_space<vmem>>, vector<32x128xf32>
    tpu.vector_store %arg12[%c0_7, %c0_8], %9 {strides = array<i32>} : memref<32x128xf32, #tpu.memory_space<vmem>>, vector<32x128xf32>,
    %c0_9 = arith.constant 0 : index
    %c0_10 = arith.constant 0 : index
    %11 = vector.load %arg10[%c0_9, %c0_10] : memref<8x32xf32, #tpu.memory_space<vmem>>, vector<8x32xf32>
    %c0_11 = arith.constant 0 : index
    %c0_12 = arith.constant 0 : index
    %12 = vector.load %arg11[%c0_11, %c0_12] : memref<8x32xf32, #tpu.memory_space<vmem>>, vector<8x32xf32>
    %c0_13 = arith.constant 0 : index
    %c0_14 = arith.constant 0 : index
    %13 = vector.load %arg12[%c0_13, %c0_14] : memref<32x128xf32, #tpu.memory_space<vmem>>, vector<8x128xf32>
    %c0_15 = arith.constant 0 : index
    %c0_16 = arith.constant 0 : index
    %14 = vector.load %arg5[%c0_15, %c0_16] : memref<32x128xf32, #tpu.memory_space<vmem>>, vector<32x128xf32>
    %cst_17 = arith.constant dense<0.000000e+00> : vector<8x128xf32>
    %15 = tpu.matmul %11, %14, %cst_17 {dimension_numbers = #tpu.dot_dimension_numbers<[1], [0], [0], [1], [0, 0, 1, 1], [], []>} : vector<8x32xf32>, vector<32x128xf32>, vector<8x128xf32> -> vector<8x128xf32>
    %16 = arith.addf %13, %15 : vector<8x128xf32>
    %17 = vector.extract_strided_slice %16 {offsets = [0, 0], sizes = [8, 32], strides = [1, 1]} : vector<8x128xf32> to vector<8x32xf32>
    %18 = arith.negf %17 : vector<8x32xf32>
    %19 = math.exp %18 : vector<8x32xf32>
    %cst_18 = arith.constant 1.000000e+00 : f32
    %20 = vector.broadcast %cst_18 : f32 to vector<8x32xf32>
    %21 = arith.addf %20, %19 : vector<8x32xf32>
    %22 = arith.divf %20, %21 : vector<8x32xf32>
    %23 = vector.extract_strided_slice %16 {offsets = [0, 32], sizes = [8, 32], strides = [1, 1]} : vector<8x128xf32> to vector<8x32xf32>
    %24 = arith.negf %23 : vector<8x32xf32>
    %25 = math.exp %24 : vector<8x32xf32>
    %cst_19 = arith.constant 1.000000e+00 : f32
    %26 = vector.broadcast %cst_19 : f32 to vector<8x32xf32>
    %27 = arith.addf %26, %25 : vector<8x32xf32>
    %28 = arith.divf %26, %27 : vector<8x32xf32>
    %29 = vector.extract_strided_slice %16 {offsets = [0, 64], sizes = [8, 32], strides = [1, 1]} : vector<8x128xf32> to vector<8x32xf32>
    %30 = math.tanh %29 : vector<8x32xf32>
    %31 = vector.extract_strided_slice %16 {offsets = [0, 96], sizes = [8, 32], strides = [1, 1]} : vector<8x128xf32> to vector<8x32xf32>
    %32 = arith.negf %31 : vector<8x32xf32>
    %33 = math.exp %32 : vector<8x32xf32>
    %cst_20 = arith.constant 1.000000e+00 : f32
    %34 = vector.broadcast %cst_20 : f32 to vector<8x32xf32>
    %35 = arith.addf %34, %33 : vector<8x32xf32>
    %36 = arith.divf %34, %35 : vector<8x32xf32>
    %37 = arith.mulf %28, %12 : vector<8x32xf32>
    %38 = arith.mulf %22, %30 : vector<8x32xf32>
    %39 = arith.addf %37, %38 : vector<8x32xf32>
    %40 = math.tanh %39 : vector<8x32xf32>
    %41 = arith.mulf %36, %40 : vector<8x32xf32>
    %c0_21 = arith.constant 0 : index
    %c0_22 = arith.constant 0 : index
    %42 = vector.load %arg13[%c0_21, %c0_22] : memref<32x32xf32, #tpu.memory_space<vmem>>, vector<8x32xf32>
    tpu.vector_store %arg13[%c0_21, %c0_22], %41 {strides = array<i32>} : memref<32x32xf32, #tpu.memory_space<vmem>>, vector<8x32xf32>,
    %c8 = arith.constant 8 : index
    %c0_23 = arith.constant 0 : index
    %43 = vector.load %arg12[%c8, %c0_23] : memref<32x128xf32, #tpu.memory_space<vmem>>, vector<8x128xf32>
    %c0_24 = arith.constant 0 : index
    %c0_25 = arith.constant 0 : index
    %44 = vector.load %arg5[%c0_24, %c0_25] : memref<32x128xf32, #tpu.memory_space<vmem>>, vector<32x128xf32>
    %cst_26 = arith.constant dense<0.000000e+00> : vector<8x128xf32>
    %45 = tpu.matmul %41, %44, %cst_26 {dimension_numbers = #tpu.dot_dimension_numbers<[1], [0], [0], [1], [0, 0, 1, 1], [], []>} : vector<8x32xf32>, vector<32x128xf32>, vector<8x128xf32> -> vector<8x128xf32>
    %46 = arith.addf %43, %45 : vector<8x128xf32>
    %47 = vector.extract_strided_slice %46 {offsets = [0, 0], sizes = [8, 32], strides = [1, 1]} : vector<8x128xf32> to vector<8x32xf32>
    %48 = arith.negf %47 : vector<8x32xf32>
    %49 = math.exp %48 : vector<8x32xf32>
    %cst_27 = arith.constant 1.000000e+00 : f32
    %50 = vector.broadcast %cst_27 : f32 to vector<8x32xf32>
    %51 = arith.addf %50, %49 : vector<8x32xf32>
    %52 = arith.divf %50, %51 : vector<8x32xf32>
    %53 = vector.extract_strided_slice %46 {offsets = [0, 32], sizes = [8, 32], strides = [1, 1]} : vector<8x128xf32> to vector<8x32xf32>
    %54 = arith.negf %53 : vector<8x32xf32>
    %55 = math.exp %54 : vector<8x32xf32>
    %cst_28 = arith.constant 1.000000e+00 : f32
    %56 = vector.broadcast %cst_28 : f32 to vector<8x32xf32>
    %57 = arith.addf %56, %55 : vector<8x32xf32>
    %58 = arith.divf %56, %57 : vector<8x32xf32>
    %59 = vector.extract_strided_slice %46 {offsets = [0, 64], sizes = [8, 32], strides = [1, 1]} : vector<8x128xf32> to vector<8x32xf32>
    %60 = math.tanh %59 : vector<8x32xf32>
    %61 = vector.extract_strided_slice %46 {offsets = [0, 96], sizes = [8, 32], strides = [1, 1]} : vector<8x128xf32> to vector<8x32xf32>
    %62 = arith.negf %61 : vector<8x32xf32>
    %63 = math.exp %62 : vector<8x32xf32>
    %cst_29 = arith.constant 1.000000e+00 : f32
    %64 = vector.broadcast %cst_29 : f32 to vector<8x32xf32>
    %65 = arith.addf %64, %63 : vector<8x32xf32>
    %66 = arith.divf %64, %65 : vector<8x32xf32>
    %67 = arith.mulf %58, %39 : vector<8x32xf32>
    %68 = arith.mulf %52, %60 : vector<8x32xf32>
    %69 = arith.addf %67, %68 : vector<8x32xf32>
    %70 = math.tanh %69 : vector<8x32xf32>
    %71 = arith.mulf %66, %70 : vector<8x32xf32>
    %c8_30 = arith.constant 8 : index
    %c0_31 = arith.constant 0 : index
    %72 = vector.load %arg13[%c8_30, %c0_31] : memref<32x32xf32, #tpu.memory_space<vmem>>, vector<8x32xf32>
    tpu.vector_store %arg13[%c8_30, %c0_31], %71 {strides = array<i32>} : memref<32x32xf32, #tpu.memory_space<vmem>>, vector<8x32xf32>,
    %c16 = arith.constant 16 : index
    %c0_32 = arith.constant 0 : index
    %73 = vector.load %arg12[%c16, %c0_32] : memref<32x128xf32, #tpu.memory_space<vmem>>, vector<8x128xf32>
    %c0_33 = arith.constant 0 : index
    %c0_34 = arith.constant 0 : index
    %74 = vector.load %arg5[%c0_33, %c0_34] : memref<32x128xf32, #tpu.memory_space<vmem>>, vector<32x128xf32>
    %cst_35 = arith.constant dense<0.000000e+00> : vector<8x128xf32>
    %75 = tpu.matmul %71, %74, %cst_35 {dimension_numbers = #tpu.dot_dimension_numbers<[1], [0], [0], [1], [0, 0, 1, 1], [], []>} : vector<8x32xf32>, vector<32x128xf32>, vector<8x128xf32> -> vector<8x128xf32>
    %76 = arith.addf %73, %75 : vector<8x128xf32>
    %77 = vector.extract_strided_slice %76 {offsets = [0, 0], sizes = [8, 32], strides = [1, 1]} : vector<8x128xf32> to vector<8x32xf32>
    %78 = arith.negf %77 : vector<8x32xf32>
    %79 = math.exp %78 : vector<8x32xf32>
    %cst_36 = arith.constant 1.000000e+00 : f32
    %80 = vector.broadcast %cst_36 : f32 to vector<8x32xf32>
    %81 = arith.addf %80, %79 : vector<8x32xf32>
    %82 = arith.divf %80, %81 : vector<8x32xf32>
    %83 = vector.extract_strided_slice %76 {offsets = [0, 32], sizes = [8, 32], strides = [1, 1]} : vector<8x128xf32> to vector<8x32xf32>
    %84 = arith.negf %83 : vector<8x32xf32>
    %85 = math.exp %84 : vector<8x32xf32>
    %cst_37 = arith.constant 1.000000e+00 : f32
    %86 = vector.broadcast %cst_37 : f32 to vector<8x32xf32>
    %87 = arith.addf %86, %85 : vector<8x32xf32>
    %88 = arith.divf %86, %87 : vector<8x32xf32>
    %89 = vector.extract_strided_slice %76 {offsets = [0, 64], sizes = [8, 32], strides = [1, 1]} : vector<8x128xf32> to vector<8x32xf32>
    %90 = math.tanh %89 : vector<8x32xf32>
    %91 = vector.extract_strided_slice %76 {offsets = [0, 96], sizes = [8, 32], strides = [1, 1]} : vector<8x128xf32> to vector<8x32xf32>
    %92 = arith.negf %91 : vector<8x32xf32>
    %93 = math.exp %92 : vector<8x32xf32>
    %cst_38 = arith.constant 1.000000e+00 : f32
    %94 = vector.broadcast %cst_38 : f32 to vector<8x32xf32>
    %95 = arith.addf %94, %93 : vector<8x32xf32>
    %96 = arith.divf %94, %95 : vector<8x32xf32>
    %97 = arith.mulf %88, %69 : vector<8x32xf32>
    %98 = arith.mulf %82, %90 : vector<8x32xf32>
    %99 = arith.addf %97, %98 : vector<8x32xf32>
    %100 = math.tanh %99 : vector<8x32xf32>
    %101 = arith.mulf %96, %100 : vector<8x32xf32>
    %c16_39 = arith.constant 16 : index
    %c0_40 = arith.constant 0 : index
    %102 = vector.load %arg13[%c16_39, %c0_40] : memref<32x32xf32, #tpu.memory_space<vmem>>, vector<8x32xf32>
    tpu.vector_store %arg13[%c16_39, %c0_40], %101 {strides = array<i32>} : memref<32x32xf32, #tpu.memory_space<vmem>>, vector<8x32xf32>,
    %c24 = arith.constant 24 : index
    %c0_41 = arith.constant 0 : index
    %103 = vector.load %arg12[%c24, %c0_41] : memref<32x128xf32, #tpu.memory_space<vmem>>, vector<8x128xf32>
    %c0_42 = arith.constant 0 : index
    %c0_43 = arith.constant 0 : index
    %104 = vector.load %arg5[%c0_42, %c0_43] : memref<32x128xf32, #tpu.memory_space<vmem>>, vector<32x128xf32>
    %cst_44 = arith.constant dense<0.000000e+00> : vector<8x128xf32>
    %105 = tpu.matmul %101, %104, %cst_44 {dimension_numbers = #tpu.dot_dimension_numbers<[1], [0], [0], [1], [0, 0, 1, 1], [], []>} : vector<8x32xf32>, vector<32x128xf32>, vector<8x128xf32> -> vector<8x128xf32>
    %106 = arith.addf %103, %105 : vector<8x128xf32>
    %107 = vector.extract_strided_slice %106 {offsets = [0, 0], sizes = [8, 32], strides = [1, 1]} : vector<8x128xf32> to vector<8x32xf32>
    %108 = arith.negf %107 : vector<8x32xf32>
    %109 = math.exp %108 : vector<8x32xf32>
    %cst_45 = arith.constant 1.000000e+00 : f32
    %110 = vector.broadcast %cst_45 : f32 to vector<8x32xf32>
    %111 = arith.addf %110, %109 : vector<8x32xf32>
    %112 = arith.divf %110, %111 : vector<8x32xf32>
    %113 = vector.extract_strided_slice %106 {offsets = [0, 32], sizes = [8, 32], strides = [1, 1]} : vector<8x128xf32> to vector<8x32xf32>
    %114 = arith.negf %113 : vector<8x32xf32>
    %115 = math.exp %114 : vector<8x32xf32>
    %cst_46 = arith.constant 1.000000e+00 : f32
    %116 = vector.broadcast %cst_46 : f32 to vector<8x32xf32>
    %117 = arith.addf %116, %115 : vector<8x32xf32>
    %118 = arith.divf %116, %117 : vector<8x32xf32>
    %119 = vector.extract_strided_slice %106 {offsets = [0, 64], sizes = [8, 32], strides = [1, 1]} : vector<8x128xf32> to vector<8x32xf32>
    %120 = math.tanh %119 : vector<8x32xf32>
    %121 = vector.extract_strided_slice %106 {offsets = [0, 96], sizes = [8, 32], strides = [1, 1]} : vector<8x128xf32> to vector<8x32xf32>
    %122 = arith.negf %121 : vector<8x32xf32>
    %123 = math.exp %122 : vector<8x32xf32>
    %cst_47 = arith.constant 1.000000e+00 : f32
    %124 = vector.broadcast %cst_47 : f32 to vector<8x32xf32>
    %125 = arith.addf %124, %123 : vector<8x32xf32>
    %126 = arith.divf %124, %125 : vector<8x32xf32>
    %127 = arith.mulf %118, %99 : vector<8x32xf32>
    %128 = arith.mulf %112, %120 : vector<8x32xf32>
    %129 = arith.addf %127, %128 : vector<8x32xf32>
    %130 = math.tanh %129 : vector<8x32xf32>
    %131 = arith.mulf %126, %130 : vector<8x32xf32>
    %c24_48 = arith.constant 24 : index
    %c0_49 = arith.constant 0 : index
    %132 = vector.load %arg13[%c24_48, %c0_49] : memref<32x32xf32, #tpu.memory_space<vmem>>, vector<8x32xf32>
    tpu.vector_store %arg13[%c24_48, %c0_49], %131 {strides = array<i32>} : memref<32x32xf32, #tpu.memory_space<vmem>>, vector<8x32xf32>,
    %c0_50 = arith.constant 0 : index
    %c0_51 = arith.constant 0 : index
    %133 = vector.load %arg10[%c0_50, %c0_51] : memref<8x32xf32, #tpu.memory_space<vmem>>, vector<8x32xf32>
    tpu.vector_store %arg10[%c0_50, %c0_51], %131 {strides = array<i32>} : memref<8x32xf32, #tpu.memory_space<vmem>>, vector<8x32xf32>,
    %c0_52 = arith.constant 0 : index
    %c0_53 = arith.constant 0 : index
    %134 = vector.load %arg11[%c0_52, %c0_53] : memref<8x32xf32, #tpu.memory_space<vmem>>, vector<8x32xf32>
    tpu.vector_store %arg11[%c0_52, %c0_53], %129 {strides = array<i32>} : memref<8x32xf32, #tpu.memory_space<vmem>>, vector<8x32xf32>,
    %c0_54 = arith.constant 0 : index
    %c0_55 = arith.constant 0 : index
    %135 = vector.load %arg13[%c0_54, %c0_55] : memref<32x32xf32, #tpu.memory_space<vmem>>, vector<32x32xf32>
    %c0_56 = arith.constant 0 : index
    %c0_57 = arith.constant 0 : index
    %136 = vector.load %arg7[%c0_56, %c0_57] : memref<32x128xf32, #tpu.memory_space<vmem>>, vector<32x128xf32>
    %cst_58 = arith.constant dense<0.000000e+00> : vector<32x128xf32>
    %137 = tpu.matmul %135, %136, %cst_58 {dimension_numbers = #tpu.dot_dimension_numbers<[1], [0], [0], [1], [0, 0, 1, 1], [], []>} : vector<32x32xf32>, vector<32x128xf32>, vector<32x128xf32> -> vector<32x128xf32>
    %c0_59 = arith.constant 0 : index
    %c0_60 = arith.constant 0 : index
    %138 = vector.load %arg8[%c0_59, %c0_60] : memref<1x128xf32, #tpu.memory_space<vmem>>, vector<1x128xf32>
    %139 = vector.broadcast %138 : vector<1x128xf32> to vector<32x128xf32>
    %140 = arith.addf %137, %139 : vector<32x128xf32>
    %141 = vector.shape_cast %140 : vector<32x128xf32> to vector<4x8x128xf32>
    %c0_61 = arith.constant 0 : index
    %c0_62 = arith.constant 0 : index
    %c0_63 = arith.constant 0 : index
    %142 = vector.load %arg9[%c0_61, %c0_62, %c0_63] : memref<4x8x128xf32, #tpu.memory_space<vmem>>, vector<4x8x128xf32>
    tpu.vector_store %arg9[%c0_61, %c0_62, %c0_63], %141 {strides = array<i32>} : memref<4x8x128xf32, #tpu.memory_space<vmem>>, vector<4x8x128xf32>,
    return
  }
  func.func @transform_0(%arg0: i32) -> (i32, i32, i32) {
    %c0_i32 = arith.constant 0 : i32
    %c0_i32_0 = arith.constant 0 : i32
    %c0_i32_1 = arith.constant 0 : i32
    return %arg0, %c0_i32, %c0_i32_0 : i32, i32, i32
  }
  func.func @transform_1(%arg0: i32) -> (i32, i32) {
    %c0_i32 = arith.constant 0 : i32
    %c0_i32_0 = arith.constant 0 : i32
    %c0_i32_1 = arith.constant 0 : i32
    return %c0_i32, %c0_i32_0 : i32, i32
  }
  func.func @transform_2(%arg0: i32) -> (i32, i32) {
    %c0_i32 = arith.constant 0 : i32
    %c0_i32_0 = arith.constant 0 : i32
    %c0_i32_1 = arith.constant 0 : i32
    return %c0_i32, %c0_i32_0 : i32, i32
  }
  func.func @transform_3(%arg0: i32) -> (i32, i32) {
    %c0_i32 = arith.constant 0 : i32
    %c0_i32_0 = arith.constant 0 : i32
    %c0_i32_1 = arith.constant 0 : i32
    return %c0_i32, %c0_i32_0 : i32, i32
  }
  func.func @transform_4(%arg0: i32) -> (i32, i32) {
    %c0_i32 = arith.constant 0 : i32
    %c0_i32_0 = arith.constant 0 : i32
    %c0_i32_1 = arith.constant 0 : i32
    return %c0_i32, %c0_i32_0 : i32, i32
  }
  func.func @transform_5(%arg0: i32) -> (i32, i32) {
    %c0_i32 = arith.constant 0 : i32
    %c0_i32_0 = arith.constant 0 : i32
    %c0_i32_1 = arith.constant 0 : i32
    return %c0_i32, %c0_i32_0 : i32, i32
  }
  func.func @transform_6(%arg0: i32) -> (i32, i32) {
    %c0_i32 = arith.constant 0 : i32
    %c0_i32_0 = arith.constant 0 : i32
    %c0_i32_1 = arith.constant 0 : i32
    return %c0_i32, %c0_i32_0 : i32, i32
  }
  func.func @transform_7(%arg0: i32) -> (i32, i32) {
    %c0_i32 = arith.constant 0 : i32
    %c0_i32_0 = arith.constant 0 : i32
    %c0_i32_1 = arith.constant 0 : i32
    return %c0_i32, %c0_i32_0 : i32, i32
  }
  func.func @transform_8(%arg0: i32) -> (i32, i32, i32) {
    %c0_i32 = arith.constant 0 : i32
    %c0_i32_0 = arith.constant 0 : i32
    %c0_i32_1 = arith.constant 0 : i32
    return %arg0, %c0_i32, %c0_i32_0 : i32, i32, i32
  }
  func.func @transform_9(%arg0: i32) -> (i32, i32) {
    %c0_i32 = arith.constant 0 : i32
    %c0_i32_0 = arith.constant 0 : i32
    %c0_i32_1 = arith.constant 0 : i32
    return %c0_i32, %c0_i32_0 : i32, i32
  }
  func.func @transform_10(%arg0: i32) -> (i32, i32) {
    %c0_i32 = arith.constant 0 : i32
    %c0_i32_0 = arith.constant 0 : i32
    %c0_i32_1 = arith.constant 0 : i32
    return %c0_i32, %c0_i32_0 : i32, i32
  }
}

module attributes {stable_mosaic.version = 11 : i64} {
  func.func @_lstm_kernel(%arg0: i32, %arg1: memref<4x8x128xf32, #tpu.memory_space<vmem>>, %arg2: memref<8x32xf32, #tpu.memory_space<vmem>>, %arg3: memref<8x32xf32, #tpu.memory_space<vmem>>, %arg4: memref<128x128xf32, #tpu.memory_space<vmem>>, %arg5: memref<32x128xf32, #tpu.memory_space<vmem>>, %arg6: memref<1x128xf32, #tpu.memory_space<vmem>>, %arg7: memref<32x128xf32, #tpu.memory_space<vmem>>, %arg8: memref<1x128xf32, #tpu.memory_space<vmem>>, %arg9: memref<4x8x128xf32, #tpu.memory_space<vmem>>, %arg10: memref<8x32xf32, #tpu.memory_space<vmem>>, %arg11: memref<8x32xf32, #tpu.memory_space<vmem>>, %arg12: memref<32x128xf32, #tpu.memory_space<vmem>>, %arg13: memref<32x32xf32, #tpu.memory_space<vmem>>) attributes {dimension_semantics = [#tpu.dimension_semantics<arbitrary>], iteration_bounds = array<i64: 2>, scalar_prefetch = 0 : i64, scratch_operands = 2 : i64, tpu.core_type = #tpu.core_type<tc>, window_params = [{transform_indices = @transform_0, window_bounds = array<i64: 4, 8, 128>}, {pipeline_mode = #tpu.pipeline_mode<synchronous>, transform_indices = @transform_1, window_bounds = array<i64: 8, 32>}, {pipeline_mode = #tpu.pipeline_mode<synchronous>, transform_indices = @transform_2, window_bounds = array<i64: 8, 32>}, {pipeline_mode = #tpu.pipeline_mode<synchronous>, transform_indices = @transform_3, window_bounds = array<i64: 128, 128>}, {pipeline_mode = #tpu.pipeline_mode<synchronous>, transform_indices = @transform_4, window_bounds = array<i64: 32, 128>}, {pipeline_mode = #tpu.pipeline_mode<synchronous>, transform_indices = @transform_5, window_bounds = array<i64: 1, 128>}, {pipeline_mode = #tpu.pipeline_mode<synchronous>, transform_indices = @transform_6, window_bounds = array<i64: 32, 128>}, {pipeline_mode = #tpu.pipeline_mode<synchronous>, transform_indices = @transform_7, window_bounds = array<i64: 1, 128>}, {transform_indices = @transform_8, window_bounds = array<i64: 4, 8, 128>}, {pipeline_mode = #tpu.pipeline_mode<synchronous>, transform_indices = @transform_9, window_bounds = array<i64: 8, 32>}, {pipeline_mode = #tpu.pipeline_mode<synchronous>, transform_indices = @transform_10, window_bounds = array<i64: 8, 32>}]} {
    %c0_i32 = arith.constant 0 : i32
    %0 = arith.cmpi eq, %arg0, %c0_i32 : i32
    %1 = arith.extui %0 : i1 to i32
    %c0_i32_0 = arith.constant 0 : i32
    %2 = arith.cmpi ne, %1, %c0_i32_0 : i32
    scf.if %2 {
      %c0_64 = arith.constant 0 : index
      %c0_65 = arith.constant 0 : index
      %143 = vector.load %arg2[%c0_64, %c0_65] : memref<8x32xf32, #tpu.memory_space<vmem>>, vector<8x32xf32>
      %c0_66 = arith.constant 0 : index
      %c0_67 = arith.constant 0 : index
      %144 = vector.load %arg10[%c0_66, %c0_67] : memref<8x32xf32, #tpu.memory_space<vmem>>, vector<8x32xf32>
      tpu.vector_store %arg10[%c0_66, %c0_67], %143 {strides = array<i32>} : memref<8x32xf32, #tpu.memory_space<vmem>>, vector<8x32xf32>,
      %c0_68 = arith.constant 0 : index
      %c0_69 = arith.constant 0 : index
      %145 = vector.load %arg3[%c0_68, %c0_69] : memref<8x32xf32, #tpu.memory_space<vmem>>, vector<8x32xf32>
      %c0_70 = arith.constant 0 : index
      %c0_71 = arith.constant 0 : index
      %146 = vector.load %arg11[%c0_70, %c0_71] : memref<8x32xf32, #tpu.memory_space<vmem>>, vector<8x32xf32>
      tpu.vector_store %arg11[%c0_70, %c0_71], %145 {strides = array<i32>} : memref<8x32xf32, #tpu.memory_space<vmem>>, vector<8x32xf32>,
    } else {
    }
    %c0 = arith.constant 0 : index
    %c0_1 = arith.constant 0 : index
    %c0_2 = arith.constant 0 : index
    %3 = vector.load %arg1[%c0, %c0_1, %c0_2] : memref<4x8x128xf32, #tpu.memory_space<vmem>>, vector<4x8x128xf32>
    %4 = vector.shape_cast %3 : vector<4x8x128xf32> to vector<32x128xf32>
    %c0_3 = arith.constant 0 : index
    %c0_4 = arith.constant 0 : index
    %5 = vector.load %arg4[%c0_3, %c0_4] : memref<128x128xf32, #tpu.memory_space<vmem>>, vector<128x128xf32>
    %cst = arith.constant dense<0.000000e+00> : vector<32x128xf32>
    %6 = tpu.matmul %4, %5, %cst {dimension_numbers = #tpu.dot_dimension_numbers<[1], [0], [0], [1], [0, 0, 1, 1], [], []>} : vector<32x128xf32>, vector<128x128xf32>, vector<32x128xf32> -> vector<32x128xf32>
    %c0_5 = arith.constant 0 : index
    %c0_6 = arith.constant 0 : index
    %7 = vector.load %arg6[%c0_5, %c0_6] : memref<1x128xf32, #tpu.memory_space<vmem>>, vector<1x128xf32>
    %8 = vector.broadcast %7 : vector<1x128xf32> to vector<32x128xf32>
    %9 = arith.addf %6, %8 : vector<32x128xf32>
    %c0_7 = arith.constant 0 : index
    %c0_8 = arith.constant 0 : index
    %10 = vector.load %arg12[%c0_7, %c0_8] : memref<32x128xf32, #tpu.memory_space<vmem>>, vector<32x128xf32>
    tpu.vector_store %arg12[%c0_7, %c0_8], %9 {strides = array<i32>} : memref<32x128xf32, #tpu.memory_space<vmem>>, vector<32x128xf32>,
    %c0_9 = arith.constant 0 : index
    %c0_10 = arith.constant 0 : index
    %11 = vector.load %arg10[%c0_9, %c0_10] : memref<8x32xf32, #tpu.memory_space<vmem>>, vector<8x32xf32>
    %c0_11 = arith.constant 0 : index
    %c0_12 = arith.constant 0 : index
    %12 = vector.load %arg11[%c0_11, %c0_12] : memref<8x32xf32, #tpu.memory_space<vmem>>, vector<8x32xf32>
    %c0_13 = arith.constant 0 : index
    %c0_14 = arith.constant 0 : index
    %13 = vector.load %arg12[%c0_13, %c0_14] : memref<32x128xf32, #tpu.memory_space<vmem>>, vector<8x128xf32>
    %c0_15 = arith.constant 0 : index
    %c0_16 = arith.constant 0 : index
    %14 = vector.load %arg5[%c0_15, %c0_16] : memref<32x128xf32, #tpu.memory_space<vmem>>, vector<32x128xf32>
    %cst_17 = arith.constant dense<0.000000e+00> : vector<8x128xf32>
    %15 = tpu.matmul %11, %14, %cst_17 {dimension_numbers = #tpu.dot_dimension_numbers<[1], [0], [0], [1], [0, 0, 1, 1], [], []>} : vector<8x32xf32>, vector<32x128xf32>, vector<8x128xf32> -> vector<8x128xf32>
    %16 = arith.addf %13, %15 : vector<8x128xf32>
    %17 = vector.extract_strided_slice %16 {offsets = [0, 0], sizes = [8, 32], strides = [1, 1]} : vector<8x128xf32> to vector<8x32xf32>
    %18 = arith.negf %17 : vector<8x32xf32>
    %19 = math.exp %18 : vector<8x32xf32>
    %cst_18 = arith.constant 1.000000e+00 : f32
    %20 = vector.broadcast %cst_18 : f32 to vector<8x32xf32>
    %21 = arith.addf %20, %19 : vector<8x32xf32>
    %22 = arith.divf %20, %21 : vector<8x32xf32>
    %23 = vector.extract_strided_slice %16 {offsets = [0, 32], sizes = [8, 32], strides = [1, 1]} : vector<8x128xf32> to vector<8x32xf32>
    %24 = arith.negf %23 : vector<8x32xf32>
    %25 = math.exp %24 : vector<8x32xf32>
    %cst_19 = arith.constant 1.000000e+00 : f32
    %26 = vector.broadcast %cst_19 : f32 to vector<8x32xf32>
    %27 = arith.addf %26, %25 : vector<8x32xf32>
    %28 = arith.divf %26, %27 : vector<8x32xf32>
    %29 = vector.extract_strided_slice %16 {offsets = [0, 64], sizes = [8, 32], strides = [1, 1]} : vector<8x128xf32> to vector<8x32xf32>
    %30 = math.tanh %29 : vector<8x32xf32>
    %31 = vector.extract_strided_slice %16 {offsets = [0, 96], sizes = [8, 32], strides = [1, 1]} : vector<8x128xf32> to vector<8x32xf32>
    %32 = arith.negf %31 : vector<8x32xf32>
    %33 = math.exp %32 : vector<8x32xf32>
    %cst_20 = arith.constant 1.000000e+00 : f32
    %34 = vector.broadcast %cst_20 : f32 to vector<8x32xf32>
    %35 = arith.addf %34, %33 : vector<8x32xf32>
    %36 = arith.divf %34, %35 : vector<8x32xf32>
    %37 = arith.mulf %28, %12 : vector<8x32xf32>
    %38 = arith.mulf %22, %30 : vector<8x32xf32>
    %39 = arith.addf %37, %38 : vector<8x32xf32>
    %40 = math.tanh %39 : vector<8x32xf32>
    %41 = arith.mulf %36, %40 : vector<8x32xf32>
    %c0_21 = arith.constant 0 : index
    %c0_22 = arith.constant 0 : index
    %42 = vector.load %arg13[%c0_21, %c0_22] : memref<32x32xf32, #tpu.memory_space<vmem>>, vector<8x32xf32>
    tpu.vector_store %arg13[%c0_21, %c0_22], %41 {strides = array<i32>} : memref<32x32xf32, #tpu.memory_space<vmem>>, vector<8x32xf32>,
    %c8 = arith.constant 8 : index
    %c0_23 = arith.constant 0 : index
    %43 = vector.load %arg12[%c8, %c0_23] : memref<32x128xf32, #tpu.memory_space<vmem>>, vector<8x128xf32>
    %c0_24 = arith.constant 0 : index
    %c0_25 = arith.constant 0 : index
    %44 = vector.load %arg5[%c0_24, %c0_25] : memref<32x128xf32, #tpu.memory_space<vmem>>, vector<32x128xf32>
    %cst_26 = arith.constant dense<0.000000e+00> : vector<8x128xf32>
    %45 = tpu.matmul %41, %44, %cst_26 {dimension_numbers = #tpu.dot_dimension_numbers<[1], [0], [0], [1], [0, 0, 1, 1], [], []>} : vector<8x32xf32>, vector<32x128xf32>, vector<8x128xf32> -> vector<8x128xf32>
    %46 = arith.addf %43, %45 : vector<8x128xf32>
    %47 = vector.extract_strided_slice %46 {offsets = [0, 0], sizes = [8, 32], strides = [1, 1]} : vector<8x128xf32> to vector<8x32xf32>
    %48 = arith.negf %47 : vector<8x32xf32>
    %49 = math.exp %48 : vector<8x32xf32>
    %cst_27 = arith.constant 1.000000e+00 : f32
    %50 = vector.broadcast %cst_27 : f32 to vector<8x32xf32>
    %51 = arith.addf %50, %49 : vector<8x32xf32>
    %52 = arith.divf %50, %51 : vector<8x32xf32>
    %53 = vector.extract_strided_slice %46 {offsets = [0, 32], sizes = [8, 32], strides = [1, 1]} : vector<8x128xf32> to vector<8x32xf32>
    %54 = arith.negf %53 : vector<8x32xf32>
    %55 = math.exp %54 : vector<8x32xf32>
    %cst_28 = arith.constant 1.000000e+00 : f32
    %56 = vector.broadcast %cst_28 : f32 to vector<8x32xf32>
    %57 = arith.addf %56, %55 : vector<8x32xf32>
    %58 = arith.divf %56, %57 : vector<8x32xf32>
    %59 = vector.extract_strided_slice %46 {offsets = [0, 64], sizes = [8, 32], strides = [1, 1]} : vector<8x128xf32> to vector<8x32xf32>
    %60 = math.tanh %59 : vector<8x32xf32>
    %61 = vector.extract_strided_slice %46 {offsets = [0, 96], sizes = [8, 32], strides = [1, 1]} : vector<8x128xf32> to vector<8x32xf32>
    %62 = arith.negf %61 : vector<8x32xf32>
    %63 = math.exp %62 : vector<8x32xf32>
    %cst_29 = arith.constant 1.000000e+00 : f32
    %64 = vector.broadcast %cst_29 : f32 to vector<8x32xf32>
    %65 = arith.addf %64, %63 : vector<8x32xf32>
    %66 = arith.divf %64, %65 : vector<8x32xf32>
    %67 = arith.mulf %58, %39 : vector<8x32xf32>
    %68 = arith.mulf %52, %60 : vector<8x32xf32>
    %69 = arith.addf %67, %68 : vector<8x32xf32>
    %70 = math.tanh %69 : vector<8x32xf32>
    %71 = arith.mulf %66, %70 : vector<8x32xf32>
    %c8_30 = arith.constant 8 : index
    %c0_31 = arith.constant 0 : index
    %72 = vector.load %arg13[%c8_30, %c0_31] : memref<32x32xf32, #tpu.memory_space<vmem>>, vector<8x32xf32>
    tpu.vector_store %arg13[%c8_30, %c0_31], %71 {strides = array<i32>} : memref<32x32xf32, #tpu.memory_space<vmem>>, vector<8x32xf32>,
    %c16 = arith.constant 16 : index
    %c0_32 = arith.constant 0 : index
    %73 = vector.load %arg12[%c16, %c0_32] : memref<32x128xf32, #tpu.memory_space<vmem>>, vector<8x128xf32>
    %c0_33 = arith.constant 0 : index
    %c0_34 = arith.constant 0 : index
    %74 = vector.load %arg5[%c0_33, %c0_34] : memref<32x128xf32, #tpu.memory_space<vmem>>, vector<32x128xf32>
    %cst_35 = arith.constant dense<0.000000e+00> : vector<8x128xf32>
    %75 = tpu.matmul %71, %74, %cst_35 {dimension_numbers = #tpu.dot_dimension_numbers<[1], [0], [0], [1], [0, 0, 1, 1], [], []>} : vector<8x32xf32>, vector<32x128xf32>, vector<8x128xf32> -> vector<8x128xf32>
    %76 = arith.addf %73, %75 : vector<8x128xf32>
    %77 = vector.extract_strided_slice %76 {offsets = [0, 0], sizes = [8, 32], strides = [1, 1]} : vector<8x128xf32> to vector<8x32xf32>
    %78 = arith.negf %77 : vector<8x32xf32>
    %79 = math.exp %78 : vector<8x32xf32>
    %cst_36 = arith.constant 1.000000e+00 : f32
    %80 = vector.broadcast %cst_36 : f32 to vector<8x32xf32>
    %81 = arith.addf %80, %79 : vector<8x32xf32>
    %82 = arith.divf %80, %81 : vector<8x32xf32>
    %83 = vector.extract_strided_slice %76 {offsets = [0, 32], sizes = [8, 32], strides = [1, 1]} : vector<8x128xf32> to vector<8x32xf32>
    %84 = arith.negf %83 : vector<8x32xf32>
    %85 = math.exp %84 : vector<8x32xf32>
    %cst_37 = arith.constant 1.000000e+00 : f32
    %86 = vector.broadcast %cst_37 : f32 to vector<8x32xf32>
    %87 = arith.addf %86, %85 : vector<8x32xf32>
    %88 = arith.divf %86, %87 : vector<8x32xf32>
    %89 = vector.extract_strided_slice %76 {offsets = [0, 64], sizes = [8, 32], strides = [1, 1]} : vector<8x128xf32> to vector<8x32xf32>
    %90 = math.tanh %89 : vector<8x32xf32>
    %91 = vector.extract_strided_slice %76 {offsets = [0, 96], sizes = [8, 32], strides = [1, 1]} : vector<8x128xf32> to vector<8x32xf32>
    %92 = arith.negf %91 : vector<8x32xf32>
    %93 = math.exp %92 : vector<8x32xf32>
    %cst_38 = arith.constant 1.000000e+00 : f32
    %94 = vector.broadcast %cst_38 : f32 to vector<8x32xf32>
    %95 = arith.addf %94, %93 : vector<8x32xf32>
    %96 = arith.divf %94, %95 : vector<8x32xf32>
    %97 = arith.mulf %88, %69 : vector<8x32xf32>
    %98 = arith.mulf %82, %90 : vector<8x32xf32>
    %99 = arith.addf %97, %98 : vector<8x32xf32>
    %100 = math.tanh %99 : vector<8x32xf32>
    %101 = arith.mulf %96, %100 : vector<8x32xf32>
    %c16_39 = arith.constant 16 : index
    %c0_40 = arith.constant 0 : index
    %102 = vector.load %arg13[%c16_39, %c0_40] : memref<32x32xf32, #tpu.memory_space<vmem>>, vector<8x32xf32>
    tpu.vector_store %arg13[%c16_39, %c0_40], %101 {strides = array<i32>} : memref<32x32xf32, #tpu.memory_space<vmem>>, vector<8x32xf32>,
    %c24 = arith.constant 24 : index
    %c0_41 = arith.constant 0 : index
    %103 = vector.load %arg12[%c24, %c0_41] : memref<32x128xf32, #tpu.memory_space<vmem>>, vector<8x128xf32>
    %c0_42 = arith.constant 0 : index
    %c0_43 = arith.constant 0 : index
    %104 = vector.load %arg5[%c0_42, %c0_43] : memref<32x128xf32, #tpu.memory_space<vmem>>, vector<32x128xf32>
    %cst_44 = arith.constant dense<0.000000e+00> : vector<8x128xf32>
    %105 = tpu.matmul %101, %104, %cst_44 {dimension_numbers = #tpu.dot_dimension_numbers<[1], [0], [0], [1], [0, 0, 1, 1], [], []>} : vector<8x32xf32>, vector<32x128xf32>, vector<8x128xf32> -> vector<8x128xf32>
    %106 = arith.addf %103, %105 : vector<8x128xf32>
    %107 = vector.extract_strided_slice %106 {offsets = [0, 0], sizes = [8, 32], strides = [1, 1]} : vector<8x128xf32> to vector<8x32xf32>
    %108 = arith.negf %107 : vector<8x32xf32>
    %109 = math.exp %108 : vector<8x32xf32>
    %cst_45 = arith.constant 1.000000e+00 : f32
    %110 = vector.broadcast %cst_45 : f32 to vector<8x32xf32>
    %111 = arith.addf %110, %109 : vector<8x32xf32>
    %112 = arith.divf %110, %111 : vector<8x32xf32>
    %113 = vector.extract_strided_slice %106 {offsets = [0, 32], sizes = [8, 32], strides = [1, 1]} : vector<8x128xf32> to vector<8x32xf32>
    %114 = arith.negf %113 : vector<8x32xf32>
    %115 = math.exp %114 : vector<8x32xf32>
    %cst_46 = arith.constant 1.000000e+00 : f32
    %116 = vector.broadcast %cst_46 : f32 to vector<8x32xf32>
    %117 = arith.addf %116, %115 : vector<8x32xf32>
    %118 = arith.divf %116, %117 : vector<8x32xf32>
    %119 = vector.extract_strided_slice %106 {offsets = [0, 64], sizes = [8, 32], strides = [1, 1]} : vector<8x128xf32> to vector<8x32xf32>
    %120 = math.tanh %119 : vector<8x32xf32>
    %121 = vector.extract_strided_slice %106 {offsets = [0, 96], sizes = [8, 32], strides = [1, 1]} : vector<8x128xf32> to vector<8x32xf32>
    %122 = arith.negf %121 : vector<8x32xf32>
    %123 = math.exp %122 : vector<8x32xf32>
    %cst_47 = arith.constant 1.000000e+00 : f32
    %124 = vector.broadcast %cst_47 : f32 to vector<8x32xf32>
    %125 = arith.addf %124, %123 : vector<8x32xf32>
    %126 = arith.divf %124, %125 : vector<8x32xf32>
    %127 = arith.mulf %118, %99 : vector<8x32xf32>
    %128 = arith.mulf %112, %120 : vector<8x32xf32>
    %129 = arith.addf %127, %128 : vector<8x32xf32>
    %130 = math.tanh %129 : vector<8x32xf32>
    %131 = arith.mulf %126, %130 : vector<8x32xf32>
    %c24_48 = arith.constant 24 : index
    %c0_49 = arith.constant 0 : index
    %132 = vector.load %arg13[%c24_48, %c0_49] : memref<32x32xf32, #tpu.memory_space<vmem>>, vector<8x32xf32>
    tpu.vector_store %arg13[%c24_48, %c0_49], %131 {strides = array<i32>} : memref<32x32xf32, #tpu.memory_space<vmem>>, vector<8x32xf32>,
    %c0_50 = arith.constant 0 : index
    %c0_51 = arith.constant 0 : index
    %133 = vector.load %arg10[%c0_50, %c0_51] : memref<8x32xf32, #tpu.memory_space<vmem>>, vector<8x32xf32>
    tpu.vector_store %arg10[%c0_50, %c0_51], %131 {strides = array<i32>} : memref<8x32xf32, #tpu.memory_space<vmem>>, vector<8x32xf32>,
    %c0_52 = arith.constant 0 : index
    %c0_53 = arith.constant 0 : index
    %134 = vector.load %arg11[%c0_52, %c0_53] : memref<8x32xf32, #tpu.memory_space<vmem>>, vector<8x32xf32>
    tpu.vector_store %arg11[%c0_52, %c0_53], %129 {strides = array<i32>} : memref<8x32xf32, #tpu.memory_space<vmem>>, vector<8x32xf32>,
    %c0_54 = arith.constant 0 : index
    %c0_55 = arith.constant 0 : index
    %135 = vector.load %arg13[%c0_54, %c0_55] : memref<32x32xf32, #tpu.memory_space<vmem>>, vector<32x32xf32>
    %c0_56 = arith.constant 0 : index
    %c0_57 = arith.constant 0 : index
    %136 = vector.load %arg7[%c0_56, %c0_57] : memref<32x128xf32, #tpu.memory_space<vmem>>, vector<32x128xf32>
    %cst_58 = arith.constant dense<0.000000e+00> : vector<32x128xf32>
    %137 = tpu.matmul %135, %136, %cst_58 {dimension_numbers = #tpu.dot_dimension_numbers<[1], [0], [0], [1], [0, 0, 1, 1], [], []>} : vector<32x32xf32>, vector<32x128xf32>, vector<32x128xf32> -> vector<32x128xf32>
    %c0_59 = arith.constant 0 : index
    %c0_60 = arith.constant 0 : index
    %138 = vector.load %arg8[%c0_59, %c0_60] : memref<1x128xf32, #tpu.memory_space<vmem>>, vector<1x128xf32>
    %139 = vector.broadcast %138 : vector<1x128xf32> to vector<32x128xf32>
    %140 = arith.addf %137, %139 : vector<32x128xf32>
    %141 = vector.shape_cast %140 : vector<32x128xf32> to vector<4x8x128xf32>
    %c0_61 = arith.constant 0 : index
    %c0_62 = arith.constant 0 : index
    %c0_63 = arith.constant 0 : index
    %142 = vector.load %arg9[%c0_61, %c0_62, %c0_63] : memref<4x8x128xf32, #tpu.memory_space<vmem>>, vector<4x8x128xf32>
    tpu.vector_store %arg9[%c0_61, %c0_62, %c0_63], %141 {strides = array<i32>} : memref<4x8x128xf32, #tpu.memory_space<vmem>>, vector<4x8x128xf32>,
    return
  }
  func.func @transform_0(%arg0: i32) -> (i32, i32, i32) {
    %c0_i32 = arith.constant 0 : i32
    %c0_i32_0 = arith.constant 0 : i32
    %c0_i32_1 = arith.constant 0 : i32
    return %arg0, %c0_i32, %c0_i32_0 : i32, i32, i32
  }
  func.func @transform_1(%arg0: i32) -> (i32, i32) {
    %c0_i32 = arith.constant 0 : i32
    %c0_i32_0 = arith.constant 0 : i32
    %c0_i32_1 = arith.constant 0 : i32
    return %c0_i32, %c0_i32_0 : i32, i32
  }
  func.func @transform_2(%arg0: i32) -> (i32, i32) {
    %c0_i32 = arith.constant 0 : i32
    %c0_i32_0 = arith.constant 0 : i32
    %c0_i32_1 = arith.constant 0 : i32
    return %c0_i32, %c0_i32_0 : i32, i32
  }
  func.func @transform_3(%arg0: i32) -> (i32, i32) {
    %c0_i32 = arith.constant 0 : i32
    %c0_i32_0 = arith.constant 0 : i32
    %c0_i32_1 = arith.constant 0 : i32
    return %c0_i32, %c0_i32_0 : i32, i32
  }
  func.func @transform_4(%arg0: i32) -> (i32, i32) {
    %c0_i32 = arith.constant 0 : i32
    %c0_i32_0 = arith.constant 0 : i32
    %c0_i32_1 = arith.constant 0 : i32
    return %c0_i32, %c0_i32_0 : i32, i32
  }
  func.func @transform_5(%arg0: i32) -> (i32, i32) {
    %c0_i32 = arith.constant 0 : i32
    %c0_i32_0 = arith.constant 0 : i32
    %c0_i32_1 = arith.constant 0 : i32
    return %c0_i32, %c0_i32_0 : i32, i32
  }
  func.func @transform_6(%arg0: i32) -> (i32, i32) {
    %c0_i32 = arith.constant 0 : i32
    %c0_i32_0 = arith.constant 0 : i32
    %c0_i32_1 = arith.constant 0 : i32
    return %c0_i32, %c0_i32_0 : i32, i32
  }
  func.func @transform_7(%arg0: i32) -> (i32, i32) {
    %c0_i32 = arith.constant 0 : i32
    %c0_i32_0 = arith.constant 0 : i32
    %c0_i32_1 = arith.constant 0 : i32
    return %c0_i32, %c0_i32_0 : i32, i32
  }
  func.func @transform_8(%arg0: i32) -> (i32, i32, i32) {
    %c0_i32 = arith.constant 0 : i32
    %c0_i32_0 = arith.constant 0 : i32
    %c0_i32_1 = arith.constant 0 : i32
    return %arg0, %c0_i32, %c0_i32_0 : i32, i32, i32
  }
  func.func @transform_9(%arg0: i32) -> (i32, i32) {
    %c0_i32 = arith.constant 0 : i32
    %c0_i32_0 = arith.constant 0 : i32
    %c0_i32_1 = arith.constant 0 : i32
    return %c0_i32, %c0_i32_0 : i32, i32
  }
  func.func @transform_10(%arg0: i32) -> (i32, i32) {
    %c0_i32 = arith.constant 0 : i32
    %c0_i32_0 = arith.constant 0 : i32
    %c0_i32_1 = arith.constant 0 : i32
    return %c0_i32, %c0_i32_0 : i32, i32
  }
}

</mosaic_0001>

<llo_original>
// kernel: tpu_custom_call.1
$region0: #{tpu_custom_call.1}
  #allocation0 [shape = 'u32[]', space=smem, size = 0x4, offset = 0x4, fixed_abs, tag = 'smem constant byte address 0x4 - core index']
  #allocation1 [shape = 'u32[144,128]{1,0:T(1,128)}', space=vmem, size = 0x12000, scoped, tag = 'internal scratch']
  #allocation2 [shape = 'f32[32,128]{1,0:T(8,128)}', space=vmem, size = 0x4000, scoped, tag = 'scratch operand']
  #allocation3 [shape = 'f32[32,32]{1,0:T(8,128)}', space=vmem, size = 0x4000, scoped, tag = 'scratch operand']
  %s0 = inlined_call_operand.hbm [shape: f32[8,8,128], index: 0, kind: input, shape index: {}]
  %s1 = inlined_call_operand.hbm [shape: f32[8,32], index: 1, kind: input, shape index: {}]
  %s2 = inlined_call_operand.hbm [shape: f32[8,32], index: 2, kind: input, shape index: {}]
  %s3 = inlined_call_operand.hbm [shape: f32[128,128], index: 3, kind: input, shape index: {}]
  %s4 = inlined_call_operand.hbm [shape: f32[32,128], index: 4, kind: input, shape index: {}]
  %s5 = inlined_call_operand.vmem [shape: f32[1,128], index: 5, kind: input, shape index: {}]
  %s6 = inlined_call_operand.hbm [shape: f32[32,128], index: 6, kind: input, shape index: {}]
  %s7 = inlined_call_operand.vmem [shape: f32[1,128], index: 7, kind: input, shape index: {}]
  %s8 = inlined_call_operand.hbm [shape: f32[8,8,128], index: 8, kind: output, shape index: {0}]
  %s9 = inlined_call_operand.hbm [shape: f32[8,32], index: 9, kind: output, shape index: {1}]
  %s10 = inlined_call_operand.hbm [shape: f32[8,32], index: 10, kind: output, shape index: {2}]
  %11 = xla_tuple %s8, %s9, %s10
  %s12 = sld [smem:[#allocation0]]
  $region109: #{tpu_custom_call.1} parent=0
    _
  %s14 = ssub.s32 1, %s12
  %s15 = scalar_select 0, %s14, %s12
  $region1: #{tpu_custom_call.1} parent=0
    #allocation4 [shape = 'u8[32768]{0}', space=vmem, size = 0x8000, scoped, tag = 'input window, operand 0']
    #allocation5 [shape = 's32[2]{0}', space=sflag, size = 0x8, scoped, tag = 'scoped memory for tpu_custom_call.1']
    #allocation6 [shape = 's32[2]{0}', space=sflag, size = 0x8, scoped, tag = 'scoped memory for tpu_custom_call.1']
    #allocation7 [shape = 'u8[4096]{0}', space=vmem, size = 0x1000, scoped, tag = 'input window, operand 1, single buffered']
    #allocation8 [shape = 's32[1]{0}', space=sflag, size = 0x4, scoped, tag = 'scoped memory for tpu_custom_call.1']
    #allocation9 [shape = 'u8[4096]{0}', space=vmem, size = 0x1000, scoped, tag = 'input window, operand 2, single buffered']
    #allocation10 [shape = 'u8[65536]{0}', space=vmem, size = 0x10000, scoped, tag = 'input window, operand 3, single buffered']
    #allocation11 [shape = 's32[1]{0}', space=sflag, size = 0x4, scoped, tag = 'scoped memory for tpu_custom_call.1']
    #allocation12 [shape = 'u8[16384]{0}', space=vmem, size = 0x4000, scoped, tag = 'input window, operand 4, single buffered']
    #allocation13 [shape = 'u8[16384]{0}', space=vmem, size = 0x4000, scoped, tag = 'input window, operand 6, single buffered']
    #allocation14 [shape = 's32[1]{0}', space=sflag, size = 0x4, scoped, tag = 'scoped memory for tpu_custom_call.1']
    #allocation15 [shape = 'u8[32768]{0}', space=vmem, size = 0x8000, scoped, tag = 'output window, operand 0']
    #allocation16 [shape = 'u8[4096]{0}', space=vmem, size = 0x1000, scoped, tag = 'output window, operand 1, single buffered']
    #allocation17 [shape = 's32[1]{0}', space=sflag, size = 0x4, scoped, tag = 'scoped memory for tpu_custom_call.1']
    #allocation18 [shape = 'u8[4096]{0}', space=vmem, size = 0x1000, scoped, tag = 'output window, operand 2, single buffered']
    %16 = vsyncpa [#allocation5], 0
    %s17 = scalar_lea.sflag [#allocation5], 1
    %18 = vsyncpa %s17, 0
    %19 = vsyncpa [#allocation8], 0
    %20 = vsyncpa [#allocation11], 0
    %21 = vsyncpa [#allocation14], 0
    %22 = vsyncpa [#allocation6], 0
    %s23 = scalar_lea.sflag [#allocation6], 1
    %24 = vsyncpa %s23, 0
    %25 = vsyncpa [#allocation17], 0
    loop: start=0, step=1, limit=4
    $region2: #{tpu_custom_call.1} parent=1 // loop_pre_header
      _
    $region3: #{tpu_custom_call.1} parent=1 // loop_header
      %s27 = sphi 0, %s31
      %p28 = scmp.ge.s32.totalorder %s27, 4
      %s37 = sphi 0, %s39
      %s40 = sphi 0, %s37
      %s41 = sphi 0, %s40
      %s57 = sphi 0, %s41
      %s61 = sphi 0, %s61
      %s63 = sphi 0, %s61
      %s64 = sphi 0, %s63
      %s78 = sphi 0, %s64
      %s82 = sphi 0, %s82
      %s84 = sphi 0, %s82
      %s85 = sphi 0, %s84
      %s99 = sphi 0, %s85
      %s103 = sphi 0, %s103
      %s105 = sphi 0, %s103
      %s106 = sphi 0, %s105
      %s120 = sphi 0, %s106
      %s124 = sphi 0, %s124
      %s126 = sphi 0, %s124
      %s127 = sphi 0, %s126
      %s141 = sphi 0, %s127
      %s145 = sphi 0, %s145
      %s147 = sphi 0, %s145
      %s148 = sphi 0, %s147
      %s162 = sphi 0, %s148
      %s166 = sphi 0, %s166
      %s168 = sphi 0, %s166
      %s169 = sphi 0, %s168
      %s183 = sphi 0, %s169
      %s187 = sphi 0, %s187
      %s189 = sphi 0, %s187
      %s190 = sphi 0, %s189
      %s204 = sphi 0, %s190
      %s210 = sphi 0, %s212
      %s213 = sphi 0, %s210
      %s214 = sphi 0, %s213
      %s230 = sphi 0, %s214
      %s234 = sphi 0, %s234
      %s236 = sphi 0, %s234
      %s237 = sphi 0, %s236
      %s251 = sphi 0, %s237
      %s255 = sphi 0, %s255
      %s257 = sphi 0, %s255
      %s258 = sphi 0, %s257
      %s272 = sphi 0, %s258
    $region4: #{tpu_custom_call.1} parent=1 // loop_header_branch
      %30 = sbr.rel (%p28) target = $region8
    $region5: #{tpu_custom_call.1} parent=1 // loop_body
      %s32 = ssub.s32 %s27, 1
      %s33 = ssub.s32 %s27, 2
      %s34 = sadd.s32 %s27, 1
      %s35 = ssub.s32 %s27, %s34
      %p36 = scmp.eq.s32.totalorder %s35, 0
      %s38 = sadd.s32 %s37, 1
      %s39 = scalar_select %p36, %s37, %s38
      %p42 = pneg %p36
      %p43 = scmp.eq.s32.totalorder %s27, 1
      %p44 = por %p42, %p43
      %p45 = scmp.ne.s32.totalorder %s37, %s40
      %p46 = scmp.eq.s32.totalorder %s27, 0
      %p47 = por %p45, %p46
      %p48 = scmp.ne.s32.totalorder %s37, %s40
      %p49 = scmp.eq.s32.totalorder %s32, 1
      %p50 = por %p48, %p49
      %p51 = scmp.ne.s32.totalorder %s40, %s41
      %p52 = scmp.eq.s32.totalorder %s32, 0
      %p53 = por %p51, %p52
      %p54 = scmp.ne.s32.totalorder %s40, %s41
      %p55 = scmp.eq.s32.totalorder %s33, 1
      %p56 = por %p54, %p55
      %p58 = scmp.ne.s32.totalorder %s41, %s57
      %p59 = scmp.eq.s32.totalorder %s33, 0
      %p60 = por %p58, %p59
      %s62 = sadd.s32 %s61, 1
      %p65 = scmp.eq.s32.totalorder %s27, 1
      %p66 = scmp.ne.s32.totalorder %s61, %s63
      %p67 = scmp.eq.s32.totalorder %s27, 0
      %p68 = por %p66, %p67
      %p69 = scmp.ne.s32.totalorder %s61, %s63
      %p70 = scmp.eq.s32.totalorder %s32, 1
      %p71 = por %p69, %p70
      %p72 = scmp.ne.s32.totalorder %s63, %s64
      %p73 = scmp.eq.s32.totalorder %s32, 0
      %p74 = por %p72, %p73
      %p75 = scmp.ne.s32.totalorder %s63, %s64
      %p76 = scmp.eq.s32.totalorder %s33, 1
      %p77 = por %p75, %p76
      %p79 = scmp.ne.s32.totalorder %s64, %s78
      %p80 = scmp.eq.s32.totalorder %s33, 0
      %p81 = por %p79, %p80
      %s83 = sadd.s32 %s82, 1
      %p86 = scmp.eq.s32.totalorder %s27, 1
      %p87 = scmp.ne.s32.totalorder %s82, %s84
      %p88 = scmp.eq.s32.totalorder %s27, 0
      %p89 = por %p87, %p88
      %p90 = scmp.ne.s32.totalorder %s82, %s84
      %p91 = scmp.eq.s32.totalorder %s32, 1
      %p92 = por %p90, %p91
      %p93 = scmp.ne.s32.totalorder %s84, %s85
      %p94 = scmp.eq.s32.totalorder %s32, 0
      %p95 = por %p93, %p94
      %p96 = scmp.ne.s32.totalorder %s84, %s85
      %p97 = scmp.eq.s32.totalorder %s33, 1
      %p98 = por %p96, %p97
      %p100 = scmp.ne.s32.totalorder %s85, %s99
      %p101 = scmp.eq.s32.totalorder %s33, 0
      %p102 = por %p100, %p101
      %s104 = sadd.s32 %s103, 1
      %p107 = scmp.eq.s32.totalorder %s27, 1
      %p108 = scmp.ne.s32.totalorder %s103, %s105
      %p109 = scmp.eq.s32.totalorder %s27, 0
      %p110 = por %p108, %p109
      %p111 = scmp.ne.s32.totalorder %s103, %s105
      %p112 = scmp.eq.s32.totalorder %s32, 1
      %p113 = por %p111, %p112
      %p114 = scmp.ne.s32.totalorder %s105, %s106
      %p115 = scmp.eq.s32.totalorder %s32, 0
      %p116 = por %p114, %p115
      %p117 = scmp.ne.s32.totalorder %s105, %s106
      %p118 = scmp.eq.s32.totalorder %s33, 1
      %p119 = por %p117, %p118
      %p121 = scmp.ne.s32.totalorder %s106, %s120
      %p122 = scmp.eq.s32.totalorder %s33, 0
      %p123 = por %p121, %p122
      %s125 = sadd.s32 %s124, 1
      %p128 = scmp.eq.s32.totalorder %s27, 1
      %p129 = scmp.ne.s32.totalorder %s124, %s126
      %p130 = scmp.eq.s32.totalorder %s27, 0
      %p131 = por %p129, %p130
      %p132 = scmp.ne.s32.totalorder %s124, %s126
      %p133 = scmp.eq.s32.totalorder %s32, 1
      %p134 = por %p132, %p133
      %p135 = scmp.ne.s32.totalorder %s126, %s127
      %p136 = scmp.eq.s32.totalorder %s32, 0
      %p137 = por %p135, %p136
      %p138 = scmp.ne.s32.totalorder %s126, %s127
      %p139 = scmp.eq.s32.totalorder %s33, 1
      %p140 = por %p138, %p139
      %p142 = scmp.ne.s32.totalorder %s127, %s141
      %p143 = scmp.eq.s32.totalorder %s33, 0
      %p144 = por %p142, %p143
      %s146 = sadd.s32 %s145, 1
      %p149 = scmp.eq.s32.totalorder %s27, 1
      %p150 = scmp.ne.s32.totalorder %s145, %s147
      %p151 = scmp.eq.s32.totalorder %s27, 0
      %p152 = por %p150, %p151
      %p153 = scmp.ne.s32.totalorder %s145, %s147
      %p154 = scmp.eq.s32.totalorder %s32, 1
      %p155 = por %p153, %p154
      %p156 = scmp.ne.s32.totalorder %s147, %s148
      %p157 = scmp.eq.s32.totalorder %s32, 0
      %p158 = por %p156, %p157
      %p159 = scmp.ne.s32.totalorder %s147, %s148
      %p160 = scmp.eq.s32.totalorder %s33, 1
      %p161 = por %p159, %p160
      %p163 = scmp.ne.s32.totalorder %s148, %s162
      %p164 = scmp.eq.s32.totalorder %s33, 0
      %p165 = por %p163, %p164
      %s167 = sadd.s32 %s166, 1
      %p170 = scmp.eq.s32.totalorder %s27, 1
      %p171 = scmp.ne.s32.totalorder %s166, %s168
      %p172 = scmp.eq.s32.totalorder %s27, 0
      %p173 = por %p171, %p172
      %p174 = scmp.ne.s32.totalorder %s166, %s168
      %p175 = scmp.eq.s32.totalorder %s32, 1
      %p176 = por %p174, %p175
      %p177 = scmp.ne.s32.totalorder %s168, %s169
      %p178 = scmp.eq.s32.totalorder %s32, 0
      %p179 = por %p177, %p178
      %p180 = scmp.ne.s32.totalorder %s168, %s169
      %p181 = scmp.eq.s32.totalorder %s33, 1
      %p182 = por %p180, %p181
      %p184 = scmp.ne.s32.totalorder %s169, %s183
      %p185 = scmp.eq.s32.totalorder %s33, 0
      %p186 = por %p184, %p185
      %s188 = sadd.s32 %s187, 1
      %p191 = scmp.eq.s32.totalorder %s27, 1
      %p192 = scmp.ne.s32.totalorder %s187, %s189
      %p193 = scmp.eq.s32.totalorder %s27, 0
      %p194 = por %p192, %p193
      %p195 = scmp.ne.s32.totalorder %s187, %s189
      %p196 = scmp.eq.s32.totalorder %s32, 1
      %p197 = por %p195, %p196
      %p198 = scmp.ne.s32.totalorder %s189, %s190
      %p199 = scmp.eq.s32.totalorder %s32, 0
      %p200 = por %p198, %p199
      %p201 = scmp.ne.s32.totalorder %s189, %s190
      %p202 = scmp.eq.s32.totalorder %s33, 1
      %p203 = por %p201, %p202
      %p205 = scmp.ne.s32.totalorder %s190, %s204
      %p206 = scmp.eq.s32.totalorder %s33, 0
      %p207 = por %p205, %p206
      %s208 = ssub.s32 %s27, %s34
      %p209 = scmp.eq.s32.totalorder %s208, 0
      %s211 = sadd.s32 %s210, 1
      %s212 = scalar_select %p209, %s210, %s211
      %p215 = pneg %p209
      %p216 = scmp.eq.s32.totalorder %s27, 1
      %p217 = por %p215, %p216
      %p218 = scmp.ne.s32.totalorder %s210, %s213
      %p219 = scmp.eq.s32.totalorder %s27, 0
      %p220 = por %p218, %p219
      %p221 = scmp.ne.s32.totalorder %s210, %s213
      %p222 = scmp.eq.s32.totalorder %s32, 1
      %p223 = por %p221, %p222
      %p224 = scmp.ne.s32.totalorder %s213, %s214
      %p225 = scmp.eq.s32.totalorder %s32, 0
      %p226 = por %p224, %p225
      %p227 = scmp.ne.s32.totalorder %s213, %s214
      %p228 = scmp.eq.s32.totalorder %s33, 1
      %p229 = por %p227, %p228
      %p231 = scmp.ne.s32.totalorder %s214, %s230
      %p232 = scmp.eq.s32.totalorder %s33, 0
      %p233 = por %p231, %p232
      %s235 = sadd.s32 %s234, 1
      %p238 = scmp.eq.s32.totalorder %s27, 1
      %p239 = scmp.ne.s32.totalorder %s234, %s236
      %p240 = scmp.eq.s32.totalorder %s27, 0
      %p241 = por %p239, %p240
      %p242 = scmp.ne.s32.totalorder %s234, %s236
      %p243 = scmp.eq.s32.totalorder %s32, 1
      %p244 = por %p242, %p243
      %p245 = scmp.ne.s32.totalorder %s236, %s237
      %p246 = scmp.eq.s32.totalorder %s32, 0
      %p247 = por %p245, %p246
      %p248 = scmp.ne.s32.totalorder %s236, %s237
      %p249 = scmp.eq.s32.totalorder %s33, 1
      %p250 = por %p248, %p249
      %p252 = scmp.ne.s32.totalorder %s237, %s251
      %p253 = scmp.eq.s32.totalorder %s33, 0
      %p254 = por %p252, %p253
      %s256 = sadd.s32 %s255, 1
      %p259 = scmp.eq.s32.totalorder %s27, 1
      %p260 = scmp.ne.s32.totalorder %s255, %s257
      %p261 = scmp.eq.s32.totalorder %s27, 0
      %p262 = por %p260, %p261
      %p263 = scmp.ne.s32.totalorder %s255, %s257
      %p264 = scmp.eq.s32.totalorder %s32, 1
      %p265 = por %p263, %p264
      %p266 = scmp.ne.s32.totalorder %s257, %s258
      %p267 = scmp.eq.s32.totalorder %s32, 0
      %p268 = por %p266, %p267
      %p269 = scmp.ne.s32.totalorder %s257, %s258
      %p270 = scmp.eq.s32.totalorder %s33, 1
      %p271 = por %p269, %p270
      %p273 = scmp.ne.s32.totalorder %s258, %s272
      %p274 = scmp.eq.s32.totalorder %s33, 0
      %p275 = por %p273, %p274
      %p276 = scmp.le.s32.totalorder 1, %s27
      %p277 = scmp.lt.s32.totalorder %s27, 3
      %p278 = pnand %p276, %p277
      %p279 = pneg %p278
      // Predicated region
      $region9: #{tpu_custom_call.1} parent=5 // pred_check
        _
      $region10: #{tpu_custom_call.1} parent=5 // pred_check_branch
        %281 = sbr.rel (%p278) target = $region12
      $region11: #{tpu_custom_call.1} parent=5 // pred_region
        %s282 = ssub.s32 %s27, 1
        // Predicated region
        $region13: #{tpu_custom_call.1} parent=11 // pred_check
          %p283 = pneg %p74
        $region14: #{tpu_custom_call.1} parent=11 // pred_check_branch
          %285 = sbr.rel (%p283) target = $region16
        $region15: #{tpu_custom_call.1} parent=11 // pred_region
          %s287 = ssub.s32 128, 128
          %288 = vsyncadd [#allocation8], %s287
          %s290 = sshll.u32 [#allocation7], 4
          %s291 = int_to_ptr.vmem [resolvable:$true] %s290
          %293 = dma.hbm_to_vmem [thread:$0]  %s1, 128, %s291, [#allocation8]
        $region16: #{tpu_custom_call.1} parent=11 // pred_fallthru
          _
        // Predicated region
        $region17: #{tpu_custom_call.1} parent=11 // pred_check
          %p294 = pneg %p95
        $region18: #{tpu_custom_call.1} parent=11 // pred_check_branch
          %296 = sbr.rel (%p294) target = $region20
        $region19: #{tpu_custom_call.1} parent=11 // pred_region
          %s298 = ssub.s32 128, 128
          %299 = vsyncadd [#allocation8], %s298
          %s301 = sshll.u32 [#allocation9], 4
          %s302 = int_to_ptr.vmem [resolvable:$true] %s301
          %304 = dma.hbm_to_vmem [thread:$0]  %s2, 128, %s302, [#allocation8]
        $region20: #{tpu_custom_call.1} parent=11 // pred_fallthru
          _
        // Predicated region
        $region21: #{tpu_custom_call.1} parent=11 // pred_check
          %p305 = pneg %p116
        $region22: #{tpu_custom_call.1} parent=11 // pred_check_branch
          %307 = sbr.rel (%p305) target = $region24
        $region23: #{tpu_custom_call.1} parent=11 // pred_region
          %s309 = ssub.s32 2048, 2048
          %310 = vsyncadd [#allocation11], %s309
          %s311 = sshll.u32 [#allocation10], 4
          %s312 = int_to_ptr.vmem [resolvable:$true] %s311
          %317 = dma.hbm_to_vmem [thread:$0]  %s3, 2048, %s312, [#allocation11], 128, 128, 8
        $region24: #{tpu_custom_call.1} parent=11 // pred_fallthru
          _
        // Predicated region
        $region25: #{tpu_custom_call.1} parent=11 // pred_check
          %p318 = pneg %p137
        $region26: #{tpu_custom_call.1} parent=11 // pred_check_branch
          %320 = sbr.rel (%p318) target = $region28
        $region27: #{tpu_custom_call.1} parent=11 // pred_region
          %s322 = ssub.s32 512, 512
          %323 = vsyncadd [#allocation11], %s322
          %s324 = sshll.u32 [#allocation12], 4
          %s325 = int_to_ptr.vmem [resolvable:$true] %s324
          %330 = dma.hbm_to_vmem [thread:$0]  %s4, 512, %s325, [#allocation11], 128, 128, 8
        $region28: #{tpu_custom_call.1} parent=11 // pred_fallthru
          _
        // Predicated region
        $region29: #{tpu_custom_call.1} parent=11 // pred_check
          %p331 = pneg %p158
        $region30: #{tpu_custom_call.1} parent=11 // pred_check_branch
          %333 = sbr.rel (%p331) target = $region32
        $region31: #{tpu_custom_call.1} parent=11 // pred_region
          _
        $region32: #{tpu_custom_call.1} parent=11 // pred_fallthru
          _
        // Predicated region
        $region33: #{tpu_custom_call.1} parent=11 // pred_check
          %p334 = pneg %p179
        $region34: #{tpu_custom_call.1} parent=11 // pred_check_branch
          %336 = sbr.rel (%p334) target = $region36
        $region35: #{tpu_custom_call.1} parent=11 // pred_region
          %s338 = ssub.s32 512, 512
          %339 = vsyncadd [#allocation14], %s338
          %s340 = sshll.u32 [#allocation13], 4
          %s341 = int_to_ptr.vmem [resolvable:$true] %s340
          %346 = dma.hbm_to_vmem [thread:$0]  %s6, 512, %s341, [#allocation14], 128, 128, 8
        $region36: #{tpu_custom_call.1} parent=11 // pred_fallthru
          _
        // Predicated region
        $region37: #{tpu_custom_call.1} parent=11 // pred_check
          %p347 = pneg %p200
        $region38: #{tpu_custom_call.1} parent=11 // pred_check_branch
          %349 = sbr.rel (%p347) target = $region40
        $region39: #{tpu_custom_call.1} parent=11 // pred_region
          _
        $region40: #{tpu_custom_call.1} parent=11 // pred_fallthru
          _
      $region12: #{tpu_custom_call.1} parent=5 // pred_fallthru
        _
      %p350 = scmp.lt.s32.totalorder %s27, 2
      // Predicated region
      $region41: #{tpu_custom_call.1} parent=5 // pred_check
        %p351 = pneg %p350
      $region42: #{tpu_custom_call.1} parent=5 // pred_check_branch
        %353 = sbr.rel (%p351) target = $region44
      $region43: #{tpu_custom_call.1} parent=5 // pred_region
        // Predicated region
        $region45: #{tpu_custom_call.1} parent=43 // pred_check
          %p354 = pneg %p47
        $region46: #{tpu_custom_call.1} parent=43 // pred_check_branch
          %356 = sbr.rel (%p354) target = $region48
        $region47: #{tpu_custom_call.1} parent=43 // pred_region
          %s357 = sand.u32 %s37, 1
          %s358 = scalar_lea.sflag [#allocation5], %s357
          %s359 = sand.u32 %s37, 1
          %s360 = smul.addr %s359, 32
          %s361 = scalar_lea.vmem [#allocation4], %s360
          %s362 = smul.u32 4, %s27
          %s364 = ssub.s32 512, 512
          %365 = vsyncadd %s358, %s364
          %s366 = smul.addr %s362, 128
          %s367 = scalar_lea.hbm %s0, %s366
          %s368 = sshll.u32 %s361, 4
          %s369 = int_to_ptr.vmem [resolvable:$true] %s368
          %374 = dma.hbm_to_vmem [thread:$0]  %s367, 512, %s369, %s358, 128, 128, 8
        $region48: #{tpu_custom_call.1} parent=43 // pred_fallthru
          _
      $region44: #{tpu_custom_call.1} parent=5 // pred_fallthru
        _
      %p375 = scmp.le.s32.totalorder 1, %s27
      %p376 = scmp.lt.s32.totalorder %s27, 3
      %p377 = pnand %p375, %p376
      %p378 = pneg %p377
      // Predicated region
      $region49: #{tpu_custom_call.1} parent=5 // pred_check
        _
      $region50: #{tpu_custom_call.1} parent=5 // pred_check_branch
        %380 = sbr.rel (%p377) target = $region52
      $region51: #{tpu_custom_call.1} parent=5 // pred_region
        %s381 = ssub.s32 %s27, 1
        %s382 = sand.u32 %s40, 1
        %s383 = scalar_lea.sflag [#allocation5], %s382
        %s384 = sand.u32 %s40, 1
        %s385 = smul.addr %s384, 32
        %s386 = scalar_lea.vmem [#allocation4], %s385
        // Predicated region
        $region53: #{tpu_custom_call.1} parent=51 // pred_check
          %p387 = pneg %p53
        $region54: #{tpu_custom_call.1} parent=51 // pred_check_branch
          %389 = sbr.rel (%p387) target = $region56
        $region55: #{tpu_custom_call.1} parent=51 // pred_region
          %390 = dma.done %s383, 512
        $region56: #{tpu_custom_call.1} parent=51 // pred_fallthru
          _
        // Predicated region
        $region57: #{tpu_custom_call.1} parent=51 // pred_check
          %p391 = pneg %p74
        $region58: #{tpu_custom_call.1} parent=51 // pred_check_branch
          %393 = sbr.rel (%p391) target = $region60
        $region59: #{tpu_custom_call.1} parent=51 // pred_region
          %394 = dma.done [#allocation8], 128
        $region60: #{tpu_custom_call.1} parent=51 // pred_fallthru
          _
        // Predicated region
        $region61: #{tpu_custom_call.1} parent=51 // pred_check
          %p395 = pneg %p95
        $region62: #{tpu_custom_call.1} parent=51 // pred_check_branch
          %397 = sbr.rel (%p395) target = $region64
        $region63: #{tpu_custom_call.1} parent=51 // pred_region
          %398 = dma.done [#allocation8], 128
        $region64: #{tpu_custom_call.1} parent=51 // pred_fallthru
          _
        // Predicated region
        $region65: #{tpu_custom_call.1} parent=51 // pred_check
          %p399 = pneg %p116
        $region66: #{tpu_custom_call.1} parent=51 // pred_check_branch
          %401 = sbr.rel (%p399) target = $region68
        $region67: #{tpu_custom_call.1} parent=51 // pred_region
          %402 = dma.done [#allocation11], 2048
        $region68: #{tpu_custom_call.1} parent=51 // pred_fallthru
          _
        // Predicated region
        $region69: #{tpu_custom_call.1} parent=51 // pred_check
          %p403 = pneg %p137
        $region70: #{tpu_custom_call.1} parent=51 // pred_check_branch
          %405 = sbr.rel (%p403) target = $region72
        $region71: #{tpu_custom_call.1} parent=51 // pred_region
          %406 = dma.done [#allocation11], 512
        $region72: #{tpu_custom_call.1} parent=51 // pred_fallthru
          _
        // Predicated region
        $region73: #{tpu_custom_call.1} parent=51 // pred_check
          %p407 = pneg %p179
        $region74: #{tpu_custom_call.1} parent=51 // pred_check_branch
          %409 = sbr.rel (%p407) target = $region76
        $region75: #{tpu_custom_call.1} parent=51 // pred_region
          %410 = dma.done [#allocation14], 512
        $region76: #{tpu_custom_call.1} parent=51 // pred_fallthru
          _
        %s411 = sand.u32 %s40, 1
        %s412 = scalar_lea.sflag [#allocation5], %s411
        %s413 = sand.u32 %s40, 1
        %s414 = smul.addr %s413, 32
        %s415 = scalar_lea.vmem [#allocation4], %s414
        %p416 = pneg %p53
        %p417 = pneg %p50
        %p418 = pneg %p74
        %p419 = pneg %p71
        %p420 = pneg %p95
        %p421 = pneg %p92
        %p422 = pneg %p116
        %p423 = pneg %p113
        %p424 = pneg %p137
        %p425 = pneg %p134
        %p426 = pneg %p158
        %p427 = pneg %p155
        %p428 = pneg %p179
        %p429 = pneg %p176
        %p430 = pneg %p200
        %p431 = pneg %p197
        %p432 = pneg %p226
        %p433 = pneg %p223
        %s434 = sand.u32 %s213, 1
        %s435 = scalar_lea.sflag [#allocation6], %s434
        %s436 = sand.u32 %s213, 1
        %s437 = smul.addr %s436, 32
        %s438 = scalar_lea.vmem [#allocation15], %s437
        %p439 = pneg %p247
        %p440 = pneg %p244
        %p441 = pneg %p268
        %p442 = pneg %p265
        %s443 = smul.u32 4, %s32
        %s444 = smul.u32 4, %s32
        %p445 = scmp.eq.s32.totalorder %s32, 0
        // Predicated region
        $region77: #{tpu_custom_call.1} parent=51 // pred_check
          %p446 = pneg %p445
        $region78: #{tpu_custom_call.1} parent=51 // pred_check_branch
          %448 = sbr.rel (%p446) target = $region80
        $region79: #{tpu_custom_call.1} parent=51 // pred_region
          %v449 = vld [vmem:[#allocation7] sm:$0xff]
          %vm450 = vcmask 261120
          %451 = vst.msk [vmem:[#allocation16] sm:$0xff] %vm450, %v449
          %v452 = vld [vmem:[#allocation9] sm:$0xff]
          %453 = vst.msk [vmem:[#allocation18] sm:$0xff] %vm450, %v452
        $region80: #{tpu_custom_call.1} parent=51 // pred_fallthru
          _
        %v454 = vld [vmem:[%s386] sm:$0xff]
        %v455 = vld [vmem:[%s386 + $0x8] sm:$0xff]
        %v456 = vld [vmem:[%s386 + $0x10] sm:$0xff]
        %v457 = vld [vmem:[%s386 + $0x18] sm:$0xff]
        %v458 = vld [vmem:[#allocation10] sm:$0xff]
        %v459 = vld [vmem:[#allocation10 + $0x8] sm:$0xff]
        %v460 = vld [vmem:[#allocation10 + $0x10] sm:$0xff]
        %v461 = vld [vmem:[#allocation10 + $0x18] sm:$0xff]
        %v462 = vld [vmem:[#allocation10 + $0x20] sm:$0xff]
        %v463 = vld [vmem:[#allocation10 + $0x28] sm:$0xff]
        %v464 = vld [vmem:[#allocation10 + $0x30] sm:$0xff]
        %v465 = vld [vmem:[#allocation10 + $0x38] sm:$0xff]
        %v466 = vld [vmem:[#allocation10 + $0x40] sm:$0xff]
        %v467 = vld [vmem:[#allocation10 + $0x48] sm:$0xff]
        %v468 = vld [vmem:[#allocation10 + $0x50] sm:$0xff]
        %v469 = vld [vmem:[#allocation10 + $0x58] sm:$0xff]
        %v470 = vld [vmem:[#allocation10 + $0x60] sm:$0xff]
        %v471 = vld [vmem:[#allocation10 + $0x68] sm:$0xff]
        %v472 = vld [vmem:[#allocation10 + $0x70] sm:$0xff]
        %v473 = vld [vmem:[#allocation10 + $0x78] sm:$0xff]
        %v474 = vld [vmem:[%s5] sm:$0x1]
        %v476 = vlaneseq
        %v477 = vshrl.u32 %v476, 7
        %v478 = vsub.s32 0, %v477
        %v479 = vrot.slane %v474, %v478
        %481 = vmatprep.subr.mxu0 0.0
        %482 = vmatpush1.msra.mxu0 %v458
        %483 = vmatprep.subr.mxu0 0.0
        %484 = vmatpush1.msra.mxu0 %v459
        %485 = vmatprep.subr.mxu0 0.0
        %486 = vmatpush1.msra.mxu0 %v460
        %487 = vmatprep.subr.mxu0 0.0
        %488 = vmatpush1.msra.mxu0 %v461
        %489 = vmatprep.subr.mxu0 0.0
        %490 = vmatpush1.msra.mxu0 %v462
        %491 = vmatprep.subr.mxu0 0.0
        %492 = vmatpush1.msra.mxu0 %v463
        %493 = vmatprep.subr.mxu0 0.0
        %494 = vmatpush1.msra.mxu0 %v464
        %495 = vmatprep.subr.mxu0 0.0
        %496 = vmatpush1.msra.mxu0 %v465
        %497 = vmatprep.subr.mxu0 0.0
        %498 = vmatpush1.msra.mxu0 %v466
        %499 = vmatprep.subr.mxu0 0.0
        %500 = vmatpush1.msra.mxu0 %v467
        %501 = vmatprep.subr.mxu0 0.0
        %502 = vmatpush1.msra.mxu0 %v468
        %503 = vmatprep.subr.mxu0 0.0
        %504 = vmatpush1.msra.mxu0 %v469
        %505 = vmatprep.subr.mxu0 0.0
        %506 = vmatpush1.msra.mxu0 %v470
        %507 = vmatprep.subr.mxu0 0.0
        %508 = vmatpush1.msra.mxu0 %v471
        %509 = vmatprep.subr.mxu0 0.0
        %510 = vmatpush1.msra.mxu0 %v472
        %511 = vmatprep.subr.mxu0 0.0
        %512 = vmatpush1.msra.mxu0 %v473
        %513 = vmatprep.subr.mxu0 0.0
        %514 = vmatpush1.msra.mxu0 0.0
        %515 = vmatprep.subr.mxu0 0.0
        %516 = vmatpush1.msra.mxu0 0.0
        %517 = vmatprep.subr.mxu0 0.0
        %518 = vmatpush1.msra.mxu0 0.0
        %519 = vmatprep.subr.mxu0 0.0
        %520 = vmatpush1.msra.mxu0 0.0
        %521 = vmatprep.subr.mxu0 0.0
        %522 = vmatpush1.msra.mxu0 0.0
        %523 = vmatprep.subr.mxu0 0.0
        %524 = vmatpush1.msra.mxu0 0.0
        %525 = vmatprep.subr.mxu0 0.0
        %526 = vmatpush1.msra.mxu0 0.0
        %527 = vmatprep.subr.mxu0 0.0
        %528 = vmatpush1.msra.mxu0 0.0
        %529 = vmatprep.subr.mxu0 0.0
        %530 = vmatpush1.msra.mxu0 0.0
        %531 = vmatprep.subr.mxu0 0.0
        %532 = vmatpush1.msra.mxu0 0.0
        %533 = vmatprep.subr.mxu0 0.0
        %534 = vmatpush1.msra.mxu0 0.0
        %535 = vmatprep.subr.mxu0 0.0
        %536 = vmatpush1.msra.mxu0 0.0
        %537 = vmatprep.subr.mxu0 0.0
        %538 = vmatpush1.msra.mxu0 0.0
        %539 = vmatprep.subr.mxu0 0.0
        %540 = vmatpush1.msra.mxu0 0.0
        %541 = vmatprep.subr.mxu0 0.0
        %542 = vmatpush1.msra.mxu0 0.0
        %543 = vmatprep.subr.mxu0 0.0
        %544 = vmatpush1.msra.mxu0 0.0
        %545 = vmatprep.mubr.f32.mxu0 0.0
        %546 = vmatmul.mubr.f32.gmra.mrb[0].mxu0 %v454
        %v547 = vpop.f32.mrb[0].mxu0
        %v548 = vadd.f32 %v479, %v547
        %v549 = vpop.f32.mrb[0].mxu0
        %550 = vmatprep.mubr.f32.mxu0 0.0
        %551 = vmatmul.mubr.f32.gmra.mrb[0].mxu0 %v455
        %v552 = vpop.f32.mrb[0].mxu0
        %v553 = vadd.f32 %v479, %v552
        %v554 = vpop.f32.mrb[0].mxu0
        %555 = vmatprep.mubr.f32.mxu0 0.0
        %556 = vmatmul.mubr.f32.gmra.mrb[0].mxu0 %v456
        %v557 = vpop.f32.mrb[0].mxu0
        %v558 = vadd.f32 %v479, %v557
        %v559 = vpop.f32.mrb[0].mxu0
        %560 = vmatprep.mubr.f32.mxu0 0.0
        %561 = vmatmul.mubr.f32.gmra.mrb[0].mxu0 %v457
        %v562 = vpop.f32.mrb[0].mxu0
        %v563 = vadd.f32 %v479, %v562
        %v564 = vpop.f32.mrb[0].mxu0
        %565 = vdwg.mxu0
        %566 = vst [vmem:[#allocation2] sm:$0xff] %v548
        %567 = vst [vmem:[#allocation2 + $0x8] sm:$0xff] %v553
        %568 = vst [vmem:[#allocation2 + $0x10] sm:$0xff] %v558
        %569 = vst [vmem:[#allocation2 + $0x18] sm:$0xff] %v563
        %v570 = vld [vmem:[#allocation16] sm:$0xff]
        %v571 = vld [vmem:[#allocation18] sm:$0xff]
        %v572 = vld [vmem:[#allocation2] sm:$0xff]
        %v573 = vld [vmem:[#allocation12] sm:$0xff]
        %v574 = vld [vmem:[#allocation12 + $0x8] sm:$0xff]
        %v575 = vld [vmem:[#allocation12 + $0x10] sm:$0xff]
        %v576 = vld [vmem:[#allocation12 + $0x18] sm:$0xff]
        %vm577 = vcmask 261120
        %v579 = vsel %vm577, %v570, 0
        %581 = vmatprep.subr.mxu0 0.0
        %582 = vmatpush1.msra.mxu0 %v573
        %583 = vmatprep.subr.mxu0 0.0
        %584 = vmatpush1.msra.mxu0 %v574
        %585 = vmatprep.subr.mxu0 0.0
        %586 = vmatpush1.msra.mxu0 %v575
        %587 = vmatprep.subr.mxu0 0.0
        %588 = vmatpush1.msra.mxu0 %v576
        %589 = vmatprep.subr.mxu0 0.0
        %590 = vmatpush1.msra.mxu0 0.0
        %591 = vmatprep.subr.mxu0 0.0
        %592 = vmatpush1.msra.mxu0 0.0
        %593 = vmatprep.subr.mxu0 0.0
        %594 = vmatpush1.msra.mxu0 0.0
        %595 = vmatprep.subr.mxu0 0.0
        %596 = vmatpush1.msra.mxu0 0.0
        %597 = vmatprep.subr.mxu0 0.0
        %598 = vmatpush1.msra.mxu0 0.0
        %599 = vmatprep.subr.mxu0 0.0
        %600 = vmatpush1.msra.mxu0 0.0
        %601 = vmatprep.subr.mxu0 0.0
        %602 = vmatpush1.msra.mxu0 0.0
        %603 = vmatprep.subr.mxu0 0.0
        %604 = vmatpush1.msra.mxu0 0.0
        %605 = vmatprep.subr.mxu0 0.0
        %606 = vmatpush1.msra.mxu0 0.0
        %607 = vmatprep.subr.mxu0 0.0
        %608 = vmatpush1.msra.mxu0 0.0
        %609 = vmatprep.subr.mxu0 0.0
        %610 = vmatpush1.msra.mxu0 0.0
        %611 = vmatprep.subr.mxu0 0.0
        %612 = vmatpush1.msra.mxu0 0.0
        %613 = vmatprep.subr.mxu0 0.0
        %614 = vmatpush1.msra.mxu0 0.0
        %615 = vmatprep.subr.mxu0 0.0
        %616 = vmatpush1.msra.mxu0 0.0
        %617 = vmatprep.subr.mxu0 0.0
        %618 = vmatpush1.msra.mxu0 0.0
        %619 = vmatprep.subr.mxu0 0.0
        %620 = vmatpush1.msra.mxu0 0.0
        %621 = vmatprep.subr.mxu0 0.0
        %622 = vmatpush1.msra.mxu0 0.0
        %623 = vmatprep.subr.mxu0 0.0
        %624 = vmatpush1.msra.mxu0 0.0
        %625 = vmatprep.subr.mxu0 0.0
        %626 = vmatpush1.msra.mxu0 0.0
        %627 = vmatprep.subr.mxu0 0.0
        %628 = vmatpush1.msra.mxu0 0.0
        %629 = vmatprep.subr.mxu0 0.0
        %630 = vmatpush1.msra.mxu0 0.0
        %631 = vmatprep.subr.mxu0 0.0
        %632 = vmatpush1.msra.mxu0 0.0
        %633 = vmatprep.subr.mxu0 0.0
        %634 = vmatpush1.msra.mxu0 0.0
        %635 = vmatprep.subr.mxu0 0.0
        %636 = vmatpush1.msra.mxu0 0.0
        %637 = vmatprep.subr.mxu0 0.0
        %638 = vmatpush1.msra.mxu0 0.0
        %639 = vmatprep.subr.mxu0 0.0
        %640 = vmatpush1.msra.mxu0 0.0
        %641 = vmatprep.subr.mxu0 0.0
        %642 = vmatpush1.msra.mxu0 0.0
        %643 = vmatprep.subr.mxu0 0.0
        %644 = vmatpush1.msra.mxu0 0.0
        %645 = vmatprep.mubr.f32.mxu0 0.0
        %646 = vmatmul.mubr.f32.gmra.mrb[0].mxu0 %v579
        %v647 = vpop.f32.mrb[0].mxu0
        %v648 = vadd.f32 0.0, %v647
        %v649 = vpop.f32.mrb[0].mxu0
        %650 = vdwg.mxu0
        %v651 = vadd.f32 %v572, %v648
        %v652 = vxor.u32 %v651, 2147483648
        %v653 = vmul.f32 %v652, 1.442695
        %v654 = vpow.pop %v653
        %v655 = vadd.f32 %v654, 1.0
        %v656 = vrcp.pop %v655
        %v657 = vmul.f32 1.0, %v656
        %v658 = vtanh.pop %v651
        %660 = vrot.lane.b32.xlu0 %v571, 32
        %v661 = vpop.permute.xlu0 %660
        %v663 = vmul.f32 %v657, %v661
        %665 = vrot.lane.b32.xlu0 %v658, 64
        %v666 = vpop.permute.xlu0 %665
        %v668 = vmul.f32 %v657, %v666
        %670 = vrot.lane.b32.xlu0 %v668, 32
        %v671 = vpop.permute.xlu0 %670
        %v673 = vadd.f32 %v663, %v671
        %v674 = vtanh.pop %v673
        %676 = vrot.lane.b32.xlu0 %v674, 64
        %v677 = vpop.permute.xlu0 %676
        %v679 = vmul.f32 %v657, %v677
        %681 = vrot.lane.b32.xlu0 %v679, 32
        %v682 = vpop.permute.xlu0 %681
        %684 = vst.msk [vmem:[#allocation3] sm:$0xff] %vm577, %v682
        %v685 = vld [vmem:[#allocation2 + $0x8] sm:$0xff]
        %v686 = vld [vmem:[#allocation12] sm:$0xff]
        %v687 = vld [vmem:[#allocation12 + $0x8] sm:$0xff]
        %v688 = vld [vmem:[#allocation12 + $0x10] sm:$0xff]
        %v689 = vld [vmem:[#allocation12 + $0x18] sm:$0xff]
        %v690 = vsel %vm577, %v682, 0
        %692 = vmatprep.subr.mxu0 0.0
        %693 = vmatpush1.msra.mxu0 %v686
        %694 = vmatprep.subr.mxu0 0.0
        %695 = vmatpush1.msra.mxu0 %v687
        %696 = vmatprep.subr.mxu0 0.0
        %697 = vmatpush1.msra.mxu0 %v688
        %698 = vmatprep.subr.mxu0 0.0
        %699 = vmatpush1.msra.mxu0 %v689
        %700 = vmatprep.subr.mxu0 0.0
        %701 = vmatpush1.msra.mxu0 0.0
        %702 = vmatprep.subr.mxu0 0.0
        %703 = vmatpush1.msra.mxu0 0.0
        %704 = vmatprep.subr.mxu0 0.0
        %705 = vmatpush1.msra.mxu0 0.0
        %706 = vmatprep.subr.mxu0 0.0
        %707 = vmatpush1.msra.mxu0 0.0
        %708 = vmatprep.subr.mxu0 0.0
        %709 = vmatpush1.msra.mxu0 0.0
        %710 = vmatprep.subr.mxu0 0.0
        %711 = vmatpush1.msra.mxu0 0.0
        %712 = vmatprep.subr.mxu0 0.0
        %713 = vmatpush1.msra.mxu0 0.0
        %714 = vmatprep.subr.mxu0 0.0
        %715 = vmatpush1.msra.mxu0 0.0
        %716 = vmatprep.subr.mxu0 0.0
        %717 = vmatpush1.msra.mxu0 0.0
        %718 = vmatprep.subr.mxu0 0.0
        %719 = vmatpush1.msra.mxu0 0.0
        %720 = vmatprep.subr.mxu0 0.0
        %721 = vmatpush1.msra.mxu0 0.0
        %722 = vmatprep.subr.mxu0 0.0
        %723 = vmatpush1.msra.mxu0 0.0
        %724 = vmatprep.subr.mxu0 0.0
        %725 = vmatpush1.msra.mxu0 0.0
        %726 = vmatprep.subr.mxu0 0.0
        %727 = vmatpush1.msra.mxu0 0.0
        %728 = vmatprep.subr.mxu0 0.0
        %729 = vmatpush1.msra.mxu0 0.0
        %730 = vmatprep.subr.mxu0 0.0
        %731 = vmatpush1.msra.mxu0 0.0
        %732 = vmatprep.subr.mxu0 0.0
        %733 = vmatpush1.msra.mxu0 0.0
        %734 = vmatprep.subr.mxu0 0.0
        %735 = vmatpush1.msra.mxu0 0.0
        %736 = vmatprep.subr.mxu0 0.0
        %737 = vmatpush1.msra.mxu0 0.0
        %738 = vmatprep.subr.mxu0 0.0
        %739 = vmatpush1.msra.mxu0 0.0
        %740 = vmatprep.subr.mxu0 0.0
        %741 = vmatpush1.msra.mxu0 0.0
        %742 = vmatprep.subr.mxu0 0.0
        %743 = vmatpush1.msra.mxu0 0.0
        %744 = vmatprep.subr.mxu0 0.0
        %745 = vmatpush1.msra.mxu0 0.0
        %746 = vmatprep.subr.mxu0 0.0
        %747 = vmatpush1.msra.mxu0 0.0
        %748 = vmatprep.subr.mxu0 0.0
        %749 = vmatpush1.msra.mxu0 0.0
        %750 = vmatprep.subr.mxu0 0.0
        %751 = vmatpush1.msra.mxu0 0.0
        %752 = vmatprep.subr.mxu0 0.0
        %753 = vmatpush1.msra.mxu0 0.0
        %754 = vmatprep.subr.mxu0 0.0
        %755 = vmatpush1.msra.mxu0 0.0
        %756 = vmatprep.mubr.f32.mxu0 0.0
        %757 = vmatmul.mubr.f32.gmra.mrb[0].mxu0 %v690
        %v758 = vpop.f32.mrb[0].mxu0
        %v759 = vadd.f32 0.0, %v758
        %v760 = vpop.f32.mrb[0].mxu0
        %761 = vdwg.mxu0
        %v762 = vadd.f32 %v685, %v759
        %v763 = vxor.u32 %v762, 2147483648
        %v764 = vmul.f32 %v763, 1.442695
        %v765 = vpow.pop %v764
        %v766 = vadd.f32 %v765, 1.0
        %v767 = vrcp.pop %v766
        %v768 = vmul.f32 1.0, %v767
        %v769 = vtanh.pop %v762
        %v770 = vmul.f32 %v768, %v673
        %772 = vrot.lane.b32.xlu0 %v769, 64
        %v773 = vpop.permute.xlu0 %772
        %v775 = vmul.f32 %v768, %v773
        %777 = vrot.lane.b32.xlu0 %v775, 32
        %v778 = vpop.permute.xlu0 %777
        %v780 = vadd.f32 %v770, %v778
        %v781 = vtanh.pop %v780
        %783 = vrot.lane.b32.xlu0 %v781, 64
        %v784 = vpop.permute.xlu0 %783
        %v786 = vmul.f32 %v768, %v784
        %788 = vrot.lane.b32.xlu0 %v786, 32
        %v789 = vpop.permute.xlu0 %788
        %791 = vst.msk [vmem:[#allocation3 + $0x8] sm:$0xff] %vm577, %v789
        %v792 = vld [vmem:[#allocation2 + $0x10] sm:$0xff]
        %v793 = vld [vmem:[#allocation12] sm:$0xff]
        %v794 = vld [vmem:[#allocation12 + $0x8] sm:$0xff]
        %v795 = vld [vmem:[#allocation12 + $0x10] sm:$0xff]
        %v796 = vld [vmem:[#allocation12 + $0x18] sm:$0xff]
        %v797 = vsel %vm577, %v789, 0
        %799 = vmatprep.subr.mxu0 0.0
        %800 = vmatpush1.msra.mxu0 %v793
        %801 = vmatprep.subr.mxu0 0.0
        %802 = vmatpush1.msra.mxu0 %v794
        %803 = vmatprep.subr.mxu0 0.0
        %804 = vmatpush1.msra.mxu0 %v795
        %805 = vmatprep.subr.mxu0 0.0
        %806 = vmatpush1.msra.mxu0 %v796
        %807 = vmatprep.subr.mxu0 0.0
        %808 = vmatpush1.msra.mxu0 0.0
        %809 = vmatprep.subr.mxu0 0.0
        %810 = vmatpush1.msra.mxu0 0.0
        %811 = vmatprep.subr.mxu0 0.0
        %812 = vmatpush1.msra.mxu0 0.0
        %813 = vmatprep.subr.mxu0 0.0
        %814 = vmatpush1.msra.mxu0 0.0
        %815 = vmatprep.subr.mxu0 0.0
        %816 = vmatpush1.msra.mxu0 0.0
        %817 = vmatprep.subr.mxu0 0.0
        %818 = vmatpush1.msra.mxu0 0.0
        %819 = vmatprep.subr.mxu0 0.0
        %820 = vmatpush1.msra.mxu0 0.0
        %821 = vmatprep.subr.mxu0 0.0
        %822 = vmatpush1.msra.mxu0 0.0
        %823 = vmatprep.subr.mxu0 0.0
        %824 = vmatpush1.msra.mxu0 0.0
        %825 = vmatprep.subr.mxu0 0.0
        %826 = vmatpush1.msra.mxu0 0.0
        %827 = vmatprep.subr.mxu0 0.0
        %828 = vmatpush1.msra.mxu0 0.0
        %829 = vmatprep.subr.mxu0 0.0
        %830 = vmatpush1.msra.mxu0 0.0
        %831 = vmatprep.subr.mxu0 0.0
        %832 = vmatpush1.msra.mxu0 0.0
        %833 = vmatprep.subr.mxu0 0.0
        %834 = vmatpush1.msra.mxu0 0.0
        %835 = vmatprep.subr.mxu0 0.0
        %836 = vmatpush1.msra.mxu0 0.0
        %837 = vmatprep.subr.mxu0 0.0
        %838 = vmatpush1.msra.mxu0 0.0
        %839 = vmatprep.subr.mxu0 0.0
        %840 = vmatpush1.msra.mxu0 0.0
        %841 = vmatprep.subr.mxu0 0.0
        %842 = vmatpush1.msra.mxu0 0.0
        %843 = vmatprep.subr.mxu0 0.0
        %844 = vmatpush1.msra.mxu0 0.0
        %845 = vmatprep.subr.mxu0 0.0
        %846 = vmatpush1.msra.mxu0 0.0
        %847 = vmatprep.subr.mxu0 0.0
        %848 = vmatpush1.msra.mxu0 0.0
        %849 = vmatprep.subr.mxu0 0.0
        %850 = vmatpush1.msra.mxu0 0.0
        %851 = vmatprep.subr.mxu0 0.0
        %852 = vmatpush1.msra.mxu0 0.0
        %853 = vmatprep.subr.mxu0 0.0
        %854 = vmatpush1.msra.mxu0 0.0
        %855 = vmatprep.subr.mxu0 0.0
        %856 = vmatpush1.msra.mxu0 0.0
        %857 = vmatprep.subr.mxu0 0.0
        %858 = vmatpush1.msra.mxu0 0.0
        %859 = vmatprep.subr.mxu0 0.0
        %860 = vmatpush1.msra.mxu0 0.0
        %861 = vmatprep.subr.mxu0 0.0
        %862 = vmatpush1.msra.mxu0 0.0
        %863 = vmatprep.mubr.f32.mxu0 0.0
        %864 = vmatmul.mubr.f32.gmra.mrb[0].mxu0 %v797
        %v865 = vpop.f32.mrb[0].mxu0
        %v866 = vadd.f32 0.0, %v865
        %v867 = vpop.f32.mrb[0].mxu0
        %868 = vdwg.mxu0
        %v869 = vadd.f32 %v792, %v866
        %v870 = vxor.u32 %v869, 2147483648
        %v871 = vmul.f32 %v870, 1.442695
        %v872 = vpow.pop %v871
        %v873 = vadd.f32 %v872, 1.0
        %v874 = vrcp.pop %v873
        %v875 = vmul.f32 1.0, %v874
        %v876 = vtanh.pop %v869
        %v877 = vmul.f32 %v875, %v780
        %879 = vrot.lane.b32.xlu0 %v876, 64
        %v880 = vpop.permute.xlu0 %879
        %v882 = vmul.f32 %v875, %v880
        %884 = vrot.lane.b32.xlu0 %v882, 32
        %v885 = vpop.permute.xlu0 %884
        %v887 = vadd.f32 %v877, %v885
        %v888 = vtanh.pop %v887
        %890 = vrot.lane.b32.xlu0 %v888, 64
        %v891 = vpop.permute.xlu0 %890
        %v893 = vmul.f32 %v875, %v891
        %895 = vrot.lane.b32.xlu0 %v893, 32
        %v896 = vpop.permute.xlu0 %895
        %898 = vst.msk [vmem:[#allocation3 + $0x10] sm:$0xff] %vm577, %v896
        %v899 = vld [vmem:[#allocation2 + $0x18] sm:$0xff]
        %v900 = vld [vmem:[#allocation12] sm:$0xff]
        %v901 = vld [vmem:[#allocation12 + $0x8] sm:$0xff]
        %v902 = vld [vmem:[#allocation12 + $0x10] sm:$0xff]
        %v903 = vld [vmem:[#allocation12 + $0x18] sm:$0xff]
        %v904 = vsel %vm577, %v896, 0
        %906 = vmatprep.subr.mxu0 0.0
        %907 = vmatpush1.msra.mxu0 %v900
        %908 = vmatprep.subr.mxu0 0.0
        %909 = vmatpush1.msra.mxu0 %v901
        %910 = vmatprep.subr.mxu0 0.0
        %911 = vmatpush1.msra.mxu0 %v902
        %912 = vmatprep.subr.mxu0 0.0
        %913 = vmatpush1.msra.mxu0 %v903
        %914 = vmatprep.subr.mxu0 0.0
        %915 = vmatpush1.msra.mxu0 0.0
        %916 = vmatprep.subr.mxu0 0.0
        %917 = vmatpush1.msra.mxu0 0.0
        %918 = vmatprep.subr.mxu0 0.0
        %919 = vmatpush1.msra.mxu0 0.0
        %920 = vmatprep.subr.mxu0 0.0
        %921 = vmatpush1.msra.mxu0 0.0
        %922 = vmatprep.subr.mxu0 0.0
        %923 = vmatpush1.msra.mxu0 0.0
        %924 = vmatprep.subr.mxu0 0.0
        %925 = vmatpush1.msra.mxu0 0.0
        %926 = vmatprep.subr.mxu0 0.0
        %927 = vmatpush1.msra.mxu0 0.0
        %928 = vmatprep.subr.mxu0 0.0
        %929 = vmatpush1.msra.mxu0 0.0
        %930 = vmatprep.subr.mxu0 0.0
        %931 = vmatpush1.msra.mxu0 0.0
        %932 = vmatprep.subr.mxu0 0.0
        %933 = vmatpush1.msra.mxu0 0.0
        %934 = vmatprep.subr.mxu0 0.0
        %935 = vmatpush1.msra.mxu0 0.0
        %936 = vmatprep.subr.mxu0 0.0
        %937 = vmatpush1.msra.mxu0 0.0
        %938 = vmatprep.subr.mxu0 0.0
        %939 = vmatpush1.msra.mxu0 0.0
        %940 = vmatprep.subr.mxu0 0.0
        %941 = vmatpush1.msra.mxu0 0.0
        %942 = vmatprep.subr.mxu0 0.0
        %943 = vmatpush1.msra.mxu0 0.0
        %944 = vmatprep.subr.mxu0 0.0
        %945 = vmatpush1.msra.mxu0 0.0
        %946 = vmatprep.subr.mxu0 0.0
        %947 = vmatpush1.msra.mxu0 0.0
        %948 = vmatprep.subr.mxu0 0.0
        %949 = vmatpush1.msra.mxu0 0.0
        %950 = vmatprep.subr.mxu0 0.0
        %951 = vmatpush1.msra.mxu0 0.0
        %952 = vmatprep.subr.mxu0 0.0
        %953 = vmatpush1.msra.mxu0 0.0
        %954 = vmatprep.subr.mxu0 0.0
        %955 = vmatpush1.msra.mxu0 0.0
        %956 = vmatprep.subr.mxu0 0.0
        %957 = vmatpush1.msra.mxu0 0.0
        %958 = vmatprep.subr.mxu0 0.0
        %959 = vmatpush1.msra.mxu0 0.0
        %960 = vmatprep.subr.mxu0 0.0
        %961 = vmatpush1.msra.mxu0 0.0
        %962 = vmatprep.subr.mxu0 0.0
        %963 = vmatpush1.msra.mxu0 0.0
        %964 = vmatprep.subr.mxu0 0.0
        %965 = vmatpush1.msra.mxu0 0.0
        %966 = vmatprep.subr.mxu0 0.0
        %967 = vmatpush1.msra.mxu0 0.0
        %968 = vmatprep.subr.mxu0 0.0
        %969 = vmatpush1.msra.mxu0 0.0
        %970 = vmatprep.mubr.f32.mxu0 0.0
        %971 = vmatmul.mubr.f32.gmra.mrb[0].mxu0 %v904
        %v972 = vpop.f32.mrb[0].mxu0
        %v973 = vadd.f32 0.0, %v972
        %v974 = vpop.f32.mrb[0].mxu0
        %975 = vdwg.mxu0
        %v976 = vadd.f32 %v899, %v973
        %v977 = vxor.u32 %v976, 2147483648
        %v978 = vmul.f32 %v977, 1.442695
        %v979 = vpow.pop %v978
        %v980 = vadd.f32 %v979, 1.0
        %v981 = vrcp.pop %v980
        %v982 = vmul.f32 1.0, %v981
        %v983 = vtanh.pop %v976
        %v984 = vmul.f32 %v982, %v887
        %986 = vrot.lane.b32.xlu0 %v983, 64
        %v987 = vpop.permute.xlu0 %986
        %v989 = vmul.f32 %v982, %v987
        %991 = vrot.lane.b32.xlu0 %v989, 32
        %v992 = vpop.permute.xlu0 %991
        %v994 = vadd.f32 %v984, %v992
        %v995 = vtanh.pop %v994
        %997 = vrot.lane.b32.xlu0 %v995, 64
        %v998 = vpop.permute.xlu0 %997
        %v1000 = vmul.f32 %v982, %v998
        %1002 = vrot.lane.b32.xlu0 %v1000, 32
        %v1003 = vpop.permute.xlu0 %1002
        %1005 = vst.msk [vmem:[#allocation3 + $0x18] sm:$0xff] %vm577, %v1003
        %1006 = vst.msk [vmem:[#allocation16] sm:$0xff] %vm577, %v1003
        %1008 = vrot.lane.b32.xlu0 %v994, 96
        %v1009 = vpop.permute.xlu0 %1008
        %1011 = vst.msk [vmem:[#allocation18] sm:$0xff] %vm577, %v1009
        %v1012 = vld [vmem:[#allocation3] sm:$0xff]
        %v1013 = vld [vmem:[#allocation3 + $0x8] sm:$0xff]
        %v1014 = vld [vmem:[#allocation3 + $0x10] sm:$0xff]
        %v1015 = vld [vmem:[#allocation3 + $0x18] sm:$0xff]
        %v1016 = vld [vmem:[#allocation13] sm:$0xff]
        %v1017 = vld [vmem:[#allocation13 + $0x8] sm:$0xff]
        %v1018 = vld [vmem:[#allocation13 + $0x10] sm:$0xff]
        %v1019 = vld [vmem:[#allocation13 + $0x18] sm:$0xff]
        %v1020 = vld [vmem:[%s7] sm:$0x1]
        %v1022 = vlaneseq
        %v1023 = vshrl.u32 %v1022, 7
        %v1024 = vsub.s32 0, %v1023
        %v1025 = vrot.slane %v1020, %v1024
        %v1028 = vsel %vm577, %v1012, 0
        %v1031 = vsel %vm577, %v1013, 0
        %v1034 = vsel %vm577, %v1014, 0
        %v1037 = vsel %vm577, %v1015, 0
        %1039 = vmatprep.subr.mxu0 0.0
        %1040 = vmatpush1.msra.mxu0 %v1016
        %1041 = vmatprep.subr.mxu0 0.0
        %1042 = vmatpush1.msra.mxu0 %v1017
        %1043 = vmatprep.subr.mxu0 0.0
        %1044 = vmatpush1.msra.mxu0 %v1018
        %1045 = vmatprep.subr.mxu0 0.0
        %1046 = vmatpush1.msra.mxu0 %v1019
        %1047 = vmatprep.subr.mxu0 0.0
        %1048 = vmatpush1.msra.mxu0 0.0
        %1049 = vmatprep.subr.mxu0 0.0
        %1050 = vmatpush1.msra.mxu0 0.0
        %1051 = vmatprep.subr.mxu0 0.0
        %1052 = vmatpush1.msra.mxu0 0.0
        %1053 = vmatprep.subr.mxu0 0.0
        %1054 = vmatpush1.msra.mxu0 0.0
        %1055 = vmatprep.subr.mxu0 0.0
        %1056 = vmatpush1.msra.mxu0 0.0
        %1057 = vmatprep.subr.mxu0 0.0
        %1058 = vmatpush1.msra.mxu0 0.0
        %1059 = vmatprep.subr.mxu0 0.0
        %1060 = vmatpush1.msra.mxu0 0.0
        %1061 = vmatprep.subr.mxu0 0.0
        %1062 = vmatpush1.msra.mxu0 0.0
        %1063 = vmatprep.subr.mxu0 0.0
        %1064 = vmatpush1.msra.mxu0 0.0
        %1065 = vmatprep.subr.mxu0 0.0
        %1066 = vmatpush1.msra.mxu0 0.0
        %1067 = vmatprep.subr.mxu0 0.0
        %1068 = vmatpush1.msra.mxu0 0.0
        %1069 = vmatprep.subr.mxu0 0.0
        %1070 = vmatpush1.msra.mxu0 0.0
        %1071 = vmatprep.subr.mxu0 0.0
        %1072 = vmatpush1.msra.mxu0 0.0
        %1073 = vmatprep.subr.mxu0 0.0
        %1074 = vmatpush1.msra.mxu0 0.0
        %1075 = vmatprep.subr.mxu0 0.0
        %1076 = vmatpush1.msra.mxu0 0.0
        %1077 = vmatprep.subr.mxu0 0.0
        %1078 = vmatpush1.msra.mxu0 0.0
        %1079 = vmatprep.subr.mxu0 0.0
        %1080 = vmatpush1.msra.mxu0 0.0
        %1081 = vmatprep.subr.mxu0 0.0
        %1082 = vmatpush1.msra.mxu0 0.0
        %1083 = vmatprep.subr.mxu0 0.0
        %1084 = vmatpush1.msra.mxu0 0.0
        %1085 = vmatprep.subr.mxu0 0.0
        %1086 = vmatpush1.msra.mxu0 0.0
        %1087 = vmatprep.subr.mxu0 0.0
        %1088 = vmatpush1.msra.mxu0 0.0
        %1089 = vmatprep.subr.mxu0 0.0
        %1090 = vmatpush1.msra.mxu0 0.0
        %1091 = vmatprep.subr.mxu0 0.0
        %1092 = vmatpush1.msra.mxu0 0.0
        %1093 = vmatprep.subr.mxu0 0.0
        %1094 = vmatpush1.msra.mxu0 0.0
        %1095 = vmatprep.subr.mxu0 0.0
        %1096 = vmatpush1.msra.mxu0 0.0
        %1097 = vmatprep.subr.mxu0 0.0
        %1098 = vmatpush1.msra.mxu0 0.0
        %1099 = vmatprep.subr.mxu0 0.0
        %1100 = vmatpush1.msra.mxu0 0.0
        %1101 = vmatprep.subr.mxu0 0.0
        %1102 = vmatpush1.msra.mxu0 0.0
        %1103 = vmatprep.mubr.f32.mxu0 0.0
        %1104 = vmatmul.mubr.f32.gmra.mrb[0].mxu0 %v1028
        %v1105 = vpop.f32.mrb[0].mxu0
        %v1106 = vadd.f32 %v1025, %v1105
        %v1107 = vpop.f32.mrb[0].mxu0
        %1108 = vmatprep.mubr.f32.mxu0 0.0
        %1109 = vmatmul.mubr.f32.gmra.mrb[0].mxu0 %v1031
        %v1110 = vpop.f32.mrb[0].mxu0
        %v1111 = vadd.f32 %v1025, %v1110
        %v1112 = vpop.f32.mrb[0].mxu0
        %1113 = vmatprep.mubr.f32.mxu0 0.0
        %1114 = vmatmul.mubr.f32.gmra.mrb[0].mxu0 %v1034
        %v1115 = vpop.f32.mrb[0].mxu0
        %v1116 = vadd.f32 %v1025, %v1115
        %v1117 = vpop.f32.mrb[0].mxu0
        %1118 = vmatprep.mubr.f32.mxu0 0.0
        %1119 = vmatmul.mubr.f32.gmra.mrb[0].mxu0 %v1037
        %v1120 = vpop.f32.mrb[0].mxu0
        %v1121 = vadd.f32 %v1025, %v1120
        %v1122 = vpop.f32.mrb[0].mxu0
        %1123 = vdwg.mxu0
        %1124 = vst [vmem:[%s438] sm:$0xff] %v1106
        %1125 = vst [vmem:[%s438 + $0x8] sm:$0xff] %v1111
        %1126 = vst [vmem:[%s438 + $0x10] sm:$0xff] %v1116
        %1127 = vst [vmem:[%s438 + $0x18] sm:$0xff] %v1121
        %s1128 = sand.u32 %s213, 1
        %s1129 = scalar_lea.sflag [#allocation6], %s1128
        %s1130 = sand.u32 %s213, 1
        %s1131 = smul.addr %s1130, 32
        %s1132 = scalar_lea.vmem [#allocation15], %s1131
        // Predicated region
        $region81: #{tpu_custom_call.1} parent=51 // pred_check
          %p1133 = pneg %p223
        $region82: #{tpu_custom_call.1} parent=51 // pred_check_branch
          %1135 = sbr.rel (%p1133) target = $region84
        $region83: #{tpu_custom_call.1} parent=51 // pred_region
          %s1136 = smul.u32 4, %s32
          %s1138 = ssub.s32 512, 512
          %1139 = vsyncadd %s1129, %s1138
          %s1140 = smul.addr %s1136, 128
          %s1141 = scalar_lea.hbm %s8, %s1140
          %s1142 = sshll.u32 %s1132, 4
          %s1143 = int_to_ptr.vmem [resolvable:$true] %s1142
          %1148 = dma.vmem_to_hbm [thread:$0]  %s1143, 512, %s1141, %s1129, 128, 128, 8
        $region84: #{tpu_custom_call.1} parent=51 // pred_fallthru
          _
        // Predicated region
        $region85: #{tpu_custom_call.1} parent=51 // pred_check
          %p1149 = pneg %p244
        $region86: #{tpu_custom_call.1} parent=51 // pred_check_branch
          %1151 = sbr.rel (%p1149) target = $region88
        $region87: #{tpu_custom_call.1} parent=51 // pred_region
          %s1153 = ssub.s32 128, 128
          %1154 = vsyncadd [#allocation17], %s1153
          %s1156 = sshll.u32 [#allocation16], 4
          %s1157 = int_to_ptr.vmem [resolvable:$true] %s1156
          %1159 = dma.vmem_to_hbm [thread:$0]  %s1157, 128, %s9, [#allocation17]
        $region88: #{tpu_custom_call.1} parent=51 // pred_fallthru
          _
        // Predicated region
        $region89: #{tpu_custom_call.1} parent=51 // pred_check
          %p1160 = pneg %p265
        $region90: #{tpu_custom_call.1} parent=51 // pred_check_branch
          %1162 = sbr.rel (%p1160) target = $region92
        $region91: #{tpu_custom_call.1} parent=51 // pred_region
          %s1164 = ssub.s32 128, 128
          %1165 = vsyncadd [#allocation17], %s1164
          %s1167 = sshll.u32 [#allocation18], 4
          %s1168 = int_to_ptr.vmem [resolvable:$true] %s1167
          %1170 = dma.vmem_to_hbm [thread:$0]  %s1168, 128, %s10, [#allocation17]
        $region92: #{tpu_custom_call.1} parent=51 // pred_fallthru
          _
        // Predicated region
        $region93: #{tpu_custom_call.1} parent=51 // pred_check
          %p1171 = pneg %p244
        $region94: #{tpu_custom_call.1} parent=51 // pred_check_branch
          %1173 = sbr.rel (%p1171) target = $region96
        $region95: #{tpu_custom_call.1} parent=51 // pred_region
          %1174 = dma.done [#allocation17], 128
        $region96: #{tpu_custom_call.1} parent=51 // pred_fallthru
          _
        // Predicated region
        $region97: #{tpu_custom_call.1} parent=51 // pred_check
          %p1175 = pneg %p265
        $region98: #{tpu_custom_call.1} parent=51 // pred_check_branch
          %1177 = sbr.rel (%p1175) target = $region100
        $region99: #{tpu_custom_call.1} parent=51 // pred_region
          %1178 = dma.done [#allocation17], 128
        $region100: #{tpu_custom_call.1} parent=51 // pred_fallthru
          _
      $region52: #{tpu_custom_call.1} parent=5 // pred_fallthru
        _
      %p1179 = scmp.le.s32.totalorder 2, %s27
      // Predicated region
      $region101: #{tpu_custom_call.1} parent=5 // pred_check
        %p1180 = pneg %p1179
      $region102: #{tpu_custom_call.1} parent=5 // pred_check_branch
        %1182 = sbr.rel (%p1180) target = $region104
      $region103: #{tpu_custom_call.1} parent=5 // pred_region
        %s1183 = ssub.s32 %s27, 2
        // Predicated region
        $region105: #{tpu_custom_call.1} parent=103 // pred_check
          %p1184 = pneg %p229
        $region106: #{tpu_custom_call.1} parent=103 // pred_check_branch
          %1186 = sbr.rel (%p1184) target = $region108
        $region107: #{tpu_custom_call.1} parent=103 // pred_region
          %s1187 = sand.u32 %s214, 1
          %s1188 = scalar_lea.sflag [#allocation6], %s1187
          %s1189 = sand.u32 %s214, 1
          %s1190 = smul.addr %s1189, 32
          %s1191 = scalar_lea.vmem [#allocation15], %s1190
          %1192 = dma.done %s1188, 512
        $region108: #{tpu_custom_call.1} parent=103 // pred_fallthru
          _
      $region104: #{tpu_custom_call.1} parent=5 // pred_fallthru
        _
    $region6: #{tpu_custom_call.1} parent=1 // loop_footer
      %s31 = sadd.s32 1, %s27
    $region7: #{tpu_custom_call.1} parent=1 // loop_footer_branch
      %26 = sbr.rel target = $region3
    $region8: #{tpu_custom_call.1} parent=1 // loop_exit
      _
    %1193 = vsyncpa [#allocation5], 1
    %s1194 = scalar_lea.sflag [#allocation5], 1
    %1195 = vsyncpa %s1194, 1
    %1196 = vsyncpa [#allocation8], 1
    %1197 = vsyncpa [#allocation11], 1
    %1198 = vsyncpa [#allocation14], 1
    %1199 = vsyncpa [#allocation6], 1
    %s1200 = scalar_lea.sflag [#allocation6], 1
    %1201 = vsyncpa %s1200, 1
    %1202 = vsyncpa [#allocation17], 1

// kernel: tpu_custom_call.1
$region0: #{tpu_custom_call.1}
  #allocation0 [shape = 'u32[]', space=smem, size = 0x4, offset = 0x4, fixed_abs, tag = 'smem constant byte address 0x4 - core index']
  #allocation1 [shape = 'u32[144,128]{1,0:T(1,128)}', space=vmem, size = 0x12000, scoped, tag = 'internal scratch']
  #allocation2 [shape = 'f32[32,128]{1,0:T(8,128)}', space=vmem, size = 0x4000, scoped, tag = 'scratch operand']
  #allocation3 [shape = 'f32[32,32]{1,0:T(8,128)}', space=vmem, size = 0x4000, scoped, tag = 'scratch operand']
  %s0 = inlined_call_operand.hbm [shape: f32[8,8,128], index: 0, kind: input, shape index: {}]
  %s1 = inlined_call_operand.hbm [shape: f32[8,32], index: 1, kind: input, shape index: {}]
  %s2 = inlined_call_operand.hbm [shape: f32[8,32], index: 2, kind: input, shape index: {}]
  %s3 = inlined_call_operand.hbm [shape: f32[128,128], index: 3, kind: input, shape index: {}]
  %s4 = inlined_call_operand.hbm [shape: f32[32,128], index: 4, kind: input, shape index: {}]
  %s5 = inlined_call_operand.vmem [shape: f32[1,128], index: 5, kind: input, shape index: {}]
  %s6 = inlined_call_operand.hbm [shape: f32[32,128], index: 6, kind: input, shape index: {}]
  %s7 = inlined_call_operand.vmem [shape: f32[1,128], index: 7, kind: input, shape index: {}]
  %s8 = inlined_call_operand.hbm [shape: f32[8,8,128], index: 8, kind: output, shape index: {0}]
  %s9 = inlined_call_operand.hbm [shape: f32[8,32], index: 9, kind: output, shape index: {1}]
  %s10 = inlined_call_operand.hbm [shape: f32[8,32], index: 10, kind: output, shape index: {2}]
  %11 = xla_tuple %s8, %s9, %s10
  %s12 = sld [smem:[#allocation0]]
  $region109: #{tpu_custom_call.1} parent=0
    _
  %s14 = ssub.s32 1, %s12
  %s15 = scalar_select 0, %s14, %s12
  $region1: #{tpu_custom_call.1} parent=0
    #allocation4 [shape = 'u8[32768]{0}', space=vmem, size = 0x8000, scoped, tag = 'input window, operand 0']
    #allocation5 [shape = 's32[2]{0}', space=sflag, size = 0x8, scoped, tag = 'scoped memory for tpu_custom_call.1']
    #allocation6 [shape = 's32[2]{0}', space=sflag, size = 0x8, scoped, tag = 'scoped memory for tpu_custom_call.1']
    #allocation7 [shape = 'u8[4096]{0}', space=vmem, size = 0x1000, scoped, tag = 'input window, operand 1, single buffered']
    #allocation8 [shape = 's32[1]{0}', space=sflag, size = 0x4, scoped, tag = 'scoped memory for tpu_custom_call.1']
    #allocation9 [shape = 'u8[4096]{0}', space=vmem, size = 0x1000, scoped, tag = 'input window, operand 2, single buffered']
    #allocation10 [shape = 'u8[65536]{0}', space=vmem, size = 0x10000, scoped, tag = 'input window, operand 3, single buffered']
    #allocation11 [shape = 's32[1]{0}', space=sflag, size = 0x4, scoped, tag = 'scoped memory for tpu_custom_call.1']
    #allocation12 [shape = 'u8[16384]{0}', space=vmem, size = 0x4000, scoped, tag = 'input window, operand 4, single buffered']
    #allocation13 [shape = 'u8[16384]{0}', space=vmem, size = 0x4000, scoped, tag = 'input window, operand 6, single buffered']
    #allocation14 [shape = 's32[1]{0}', space=sflag, size = 0x4, scoped, tag = 'scoped memory for tpu_custom_call.1']
    #allocation15 [shape = 'u8[32768]{0}', space=vmem, size = 0x8000, scoped, tag = 'output window, operand 0']
    #allocation16 [shape = 'u8[4096]{0}', space=vmem, size = 0x1000, scoped, tag = 'output window, operand 1, single buffered']
    #allocation17 [shape = 's32[1]{0}', space=sflag, size = 0x4, scoped, tag = 'scoped memory for tpu_custom_call.1']
    #allocation18 [shape = 'u8[4096]{0}', space=vmem, size = 0x1000, scoped, tag = 'output window, operand 2, single buffered']
    %16 = vsyncpa [#allocation5], 0
    %s17 = scalar_lea.sflag [#allocation5], 1
    %18 = vsyncpa %s17, 0
    %19 = vsyncpa [#allocation8], 0
    %20 = vsyncpa [#allocation11], 0
    %21 = vsyncpa [#allocation14], 0
    %22 = vsyncpa [#allocation6], 0
    %s23 = scalar_lea.sflag [#allocation6], 1
    %24 = vsyncpa %s23, 0
    %25 = vsyncpa [#allocation17], 0
    loop: start=0, step=1, limit=4
    $region2: #{tpu_custom_call.1} parent=1 // loop_pre_header
      _
    $region3: #{tpu_custom_call.1} parent=1 // loop_header
      %s27 = sphi 0, %s31
      %p28 = scmp.ge.s32.totalorder %s27, 4
      %s37 = sphi 0, %s39
      %s40 = sphi 0, %s37
      %s41 = sphi 0, %s40
      %s57 = sphi 0, %s41
      %s61 = sphi 0, %s61
      %s63 = sphi 0, %s61
      %s64 = sphi 0, %s63
      %s78 = sphi 0, %s64
      %s82 = sphi 0, %s82
      %s84 = sphi 0, %s82
      %s85 = sphi 0, %s84
      %s99 = sphi 0, %s85
      %s103 = sphi 0, %s103
      %s105 = sphi 0, %s103
      %s106 = sphi 0, %s105
      %s120 = sphi 0, %s106
      %s124 = sphi 0, %s124
      %s126 = sphi 0, %s124
      %s127 = sphi 0, %s126
      %s141 = sphi 0, %s127
      %s145 = sphi 0, %s145
      %s147 = sphi 0, %s145
      %s148 = sphi 0, %s147
      %s162 = sphi 0, %s148
      %s166 = sphi 0, %s166
      %s168 = sphi 0, %s166
      %s169 = sphi 0, %s168
      %s183 = sphi 0, %s169
      %s187 = sphi 0, %s187
      %s189 = sphi 0, %s187
      %s190 = sphi 0, %s189
      %s204 = sphi 0, %s190
      %s210 = sphi 0, %s212
      %s213 = sphi 0, %s210
      %s214 = sphi 0, %s213
      %s230 = sphi 0, %s214
      %s234 = sphi 0, %s234
      %s236 = sphi 0, %s234
      %s237 = sphi 0, %s236
      %s251 = sphi 0, %s237
      %s255 = sphi 0, %s255
      %s257 = sphi 0, %s255
      %s258 = sphi 0, %s257
      %s272 = sphi 0, %s258
    $region4: #{tpu_custom_call.1} parent=1 // loop_header_branch
      %30 = sbr.rel (%p28) target = $region8
    $region5: #{tpu_custom_call.1} parent=1 // loop_body
      %s32 = ssub.s32 %s27, 1
      %s33 = ssub.s32 %s27, 2
      %s34 = sadd.s32 %s27, 1
      %s35 = ssub.s32 %s27, %s34
      %p36 = scmp.eq.s32.totalorder %s35, 0
      %s38 = sadd.s32 %s37, 1
      %s39 = scalar_select %p36, %s37, %s38
      %p42 = pneg %p36
      %p43 = scmp.eq.s32.totalorder %s27, 1
      %p44 = por %p42, %p43
      %p45 = scmp.ne.s32.totalorder %s37, %s40
      %p46 = scmp.eq.s32.totalorder %s27, 0
      %p47 = por %p45, %p46
      %p48 = scmp.ne.s32.totalorder %s37, %s40
      %p49 = scmp.eq.s32.totalorder %s32, 1
      %p50 = por %p48, %p49
      %p51 = scmp.ne.s32.totalorder %s40, %s41
      %p52 = scmp.eq.s32.totalorder %s32, 0
      %p53 = por %p51, %p52
      %p54 = scmp.ne.s32.totalorder %s40, %s41
      %p55 = scmp.eq.s32.totalorder %s33, 1
      %p56 = por %p54, %p55
      %p58 = scmp.ne.s32.totalorder %s41, %s57
      %p59 = scmp.eq.s32.totalorder %s33, 0
      %p60 = por %p58, %p59
      %s62 = sadd.s32 %s61, 1
      %p65 = scmp.eq.s32.totalorder %s27, 1
      %p66 = scmp.ne.s32.totalorder %s61, %s63
      %p67 = scmp.eq.s32.totalorder %s27, 0
      %p68 = por %p66, %p67
      %p69 = scmp.ne.s32.totalorder %s61, %s63
      %p70 = scmp.eq.s32.totalorder %s32, 1
      %p71 = por %p69, %p70
      %p72 = scmp.ne.s32.totalorder %s63, %s64
      %p73 = scmp.eq.s32.totalorder %s32, 0
      %p74 = por %p72, %p73
      %p75 = scmp.ne.s32.totalorder %s63, %s64
      %p76 = scmp.eq.s32.totalorder %s33, 1
      %p77 = por %p75, %p76
      %p79 = scmp.ne.s32.totalorder %s64, %s78
      %p80 = scmp.eq.s32.totalorder %s33, 0
      %p81 = por %p79, %p80
      %s83 = sadd.s32 %s82, 1
      %p86 = scmp.eq.s32.totalorder %s27, 1
      %p87 = scmp.ne.s32.totalorder %s82, %s84
      %p88 = scmp.eq.s32.totalorder %s27, 0
      %p89 = por %p87, %p88
      %p90 = scmp.ne.s32.totalorder %s82, %s84
      %p91 = scmp.eq.s32.totalorder %s32, 1
      %p92 = por %p90, %p91
      %p93 = scmp.ne.s32.totalorder %s84, %s85
      %p94 = scmp.eq.s32.totalorder %s32, 0
      %p95 = por %p93, %p94
      %p96 = scmp.ne.s32.totalorder %s84, %s85
      %p97 = scmp.eq.s32.totalorder %s33, 1
      %p98 = por %p96, %p97
      %p100 = scmp.ne.s32.totalorder %s85, %s99
      %p101 = scmp.eq.s32.totalorder %s33, 0
      %p102 = por %p100, %p101
      %s104 = sadd.s32 %s103, 1
      %p107 = scmp.eq.s32.totalorder %s27, 1
      %p108 = scmp.ne.s32.totalorder %s103, %s105
      %p109 = scmp.eq.s32.totalorder %s27, 0
      %p110 = por %p108, %p109
      %p111 = scmp.ne.s32.totalorder %s103, %s105
      %p112 = scmp.eq.s32.totalorder %s32, 1
      %p113 = por %p111, %p112
      %p114 = scmp.ne.s32.totalorder %s105, %s106
      %p115 = scmp.eq.s32.totalorder %s32, 0
      %p116 = por %p114, %p115
      %p117 = scmp.ne.s32.totalorder %s105, %s106
      %p118 = scmp.eq.s32.totalorder %s33, 1
      %p119 = por %p117, %p118
      %p121 = scmp.ne.s32.totalorder %s106, %s120
      %p122 = scmp.eq.s32.totalorder %s33, 0
      %p123 = por %p121, %p122
      %s125 = sadd.s32 %s124, 1
      %p128 = scmp.eq.s32.totalorder %s27, 1
      %p129 = scmp.ne.s32.totalorder %s124, %s126
      %p130 = scmp.eq.s32.totalorder %s27, 0
      %p131 = por %p129, %p130
      %p132 = scmp.ne.s32.totalorder %s124, %s126
      %p133 = scmp.eq.s32.totalorder %s32, 1
      %p134 = por %p132, %p133
      %p135 = scmp.ne.s32.totalorder %s126, %s127
      %p136 = scmp.eq.s32.totalorder %s32, 0
      %p137 = por %p135, %p136
      %p138 = scmp.ne.s32.totalorder %s126, %s127
      %p139 = scmp.eq.s32.totalorder %s33, 1
      %p140 = por %p138, %p139
      %p142 = scmp.ne.s32.totalorder %s127, %s141
      %p143 = scmp.eq.s32.totalorder %s33, 0
      %p144 = por %p142, %p143
      %s146 = sadd.s32 %s145, 1
      %p149 = scmp.eq.s32.totalorder %s27, 1
      %p150 = scmp.ne.s32.totalorder %s145, %s147
      %p151 = scmp.eq.s32.totalorder %s27, 0
      %p152 = por %p150, %p151
      %p153 = scmp.ne.s32.totalorder %s145, %s147
      %p154 = scmp.eq.s32.totalorder %s32, 1
      %p155 = por %p153, %p154
      %p156 = scmp.ne.s32.totalorder %s147, %s148
      %p157 = scmp.eq.s32.totalorder %s32, 0
      %p158 = por %p156, %p157
      %p159 = scmp.ne.s32.totalorder %s147, %s148
      %p160 = scmp.eq.s32.totalorder %s33, 1
      %p161 = por %p159, %p160
      %p163 = scmp.ne.s32.totalorder %s148, %s162
      %p164 = scmp.eq.s32.totalorder %s33, 0
      %p165 = por %p163, %p164
      %s167 = sadd.s32 %s166, 1
      %p170 = scmp.eq.s32.totalorder %s27, 1
      %p171 = scmp.ne.s32.totalorder %s166, %s168
      %p172 = scmp.eq.s32.totalorder %s27, 0
      %p173 = por %p171, %p172
      %p174 = scmp.ne.s32.totalorder %s166, %s168
      %p175 = scmp.eq.s32.totalorder %s32, 1
      %p176 = por %p174, %p175
      %p177 = scmp.ne.s32.totalorder %s168, %s169
      %p178 = scmp.eq.s32.totalorder %s32, 0
      %p179 = por %p177, %p178
      %p180 = scmp.ne.s32.totalorder %s168, %s169
      %p181 = scmp.eq.s32.totalorder %s33, 1
      %p182 = por %p180, %p181
      %p184 = scmp.ne.s32.totalorder %s169, %s183
      %p185 = scmp.eq.s32.totalorder %s33, 0
      %p186 = por %p184, %p185
      %s188 = sadd.s32 %s187, 1
      %p191 = scmp.eq.s32.totalorder %s27, 1
      %p192 = scmp.ne.s32.totalorder %s187, %s189
      %p193 = scmp.eq.s32.totalorder %s27, 0
      %p194 = por %p192, %p193
      %p195 = scmp.ne.s32.totalorder %s187, %s189
      %p196 = scmp.eq.s32.totalorder %s32, 1
      %p197 = por %p195, %p196
      %p198 = scmp.ne.s32.totalorder %s189, %s190
      %p199 = scmp.eq.s32.totalorder %s32, 0
      %p200 = por %p198, %p199
      %p201 = scmp.ne.s32.totalorder %s189, %s190
      %p202 = scmp.eq.s32.totalorder %s33, 1
      %p203 = por %p201, %p202
      %p205 = scmp.ne.s32.totalorder %s190, %s204
      %p206 = scmp.eq.s32.totalorder %s33, 0
      %p207 = por %p205, %p206
      %s208 = ssub.s32 %s27, %s34
      %p209 = scmp.eq.s32.totalorder %s208, 0
      %s211 = sadd.s32 %s210, 1
      %s212 = scalar_select %p209, %s210, %s211
      %p215 = pneg %p209
      %p216 = scmp.eq.s32.totalorder %s27, 1
      %p217 = por %p215, %p216
      %p218 = scmp.ne.s32.totalorder %s210, %s213
      %p219 = scmp.eq.s32.totalorder %s27, 0
      %p220 = por %p218, %p219
      %p221 = scmp.ne.s32.totalorder %s210, %s213
      %p222 = scmp.eq.s32.totalorder %s32, 1
      %p223 = por %p221, %p222
      %p224 = scmp.ne.s32.totalorder %s213, %s214
      %p225 = scmp.eq.s32.totalorder %s32, 0
      %p226 = por %p224, %p225
      %p227 = scmp.ne.s32.totalorder %s213, %s214
      %p228 = scmp.eq.s32.totalorder %s33, 1
      %p229 = por %p227, %p228
      %p231 = scmp.ne.s32.totalorder %s214, %s230
      %p232 = scmp.eq.s32.totalorder %s33, 0
      %p233 = por %p231, %p232
      %s235 = sadd.s32 %s234, 1
      %p238 = scmp.eq.s32.totalorder %s27, 1
      %p239 = scmp.ne.s32.totalorder %s234, %s236
      %p240 = scmp.eq.s32.totalorder %s27, 0
      %p241 = por %p239, %p240
      %p242 = scmp.ne.s32.totalorder %s234, %s236
      %p243 = scmp.eq.s32.totalorder %s32, 1
      %p244 = por %p242, %p243
      %p245 = scmp.ne.s32.totalorder %s236, %s237
      %p246 = scmp.eq.s32.totalorder %s32, 0
      %p247 = por %p245, %p246
      %p248 = scmp.ne.s32.totalorder %s236, %s237
      %p249 = scmp.eq.s32.totalorder %s33, 1
      %p250 = por %p248, %p249
      %p252 = scmp.ne.s32.totalorder %s237, %s251
      %p253 = scmp.eq.s32.totalorder %s33, 0
      %p254 = por %p252, %p253
      %s256 = sadd.s32 %s255, 1
      %p259 = scmp.eq.s32.totalorder %s27, 1
      %p260 = scmp.ne.s32.totalorder %s255, %s257
      %p261 = scmp.eq.s32.totalorder %s27, 0
      %p262 = por %p260, %p261
      %p263 = scmp.ne.s32.totalorder %s255, %s257
      %p264 = scmp.eq.s32.totalorder %s32, 1
      %p265 = por %p263, %p264
      %p266 = scmp.ne.s32.totalorder %s257, %s258
      %p267 = scmp.eq.s32.totalorder %s32, 0
      %p268 = por %p266, %p267
      %p269 = scmp.ne.s32.totalorder %s257, %s258
      %p270 = scmp.eq.s32.totalorder %s33, 1
      %p271 = por %p269, %p270
      %p273 = scmp.ne.s32.totalorder %s258, %s272
      %p274 = scmp.eq.s32.totalorder %s33, 0
      %p275 = por %p273, %p274
      %p276 = scmp.le.s32.totalorder 1, %s27
      %p277 = scmp.lt.s32.totalorder %s27, 3
      %p278 = pnand %p276, %p277
      %p279 = pneg %p278
      // Predicated region
      $region9: #{tpu_custom_call.1} parent=5 // pred_check
        _
      $region10: #{tpu_custom_call.1} parent=5 // pred_check_branch
        %281 = sbr.rel (%p278) target = $region12
      $region11: #{tpu_custom_call.1} parent=5 // pred_region
        %s282 = ssub.s32 %s27, 1
        // Predicated region
        $region13: #{tpu_custom_call.1} parent=11 // pred_check
          %p283 = pneg %p74
        $region14: #{tpu_custom_call.1} parent=11 // pred_check_branch
          %285 = sbr.rel (%p283) target = $region16
        $region15: #{tpu_custom_call.1} parent=11 // pred_region
          %s287 = ssub.s32 128, 128
          %288 = vsyncadd [#allocation8], %s287
          %s290 = sshll.u32 [#allocation7], 4
          %s291 = int_to_ptr.vmem [resolvable:$true] %s290
          %293 = dma.hbm_to_vmem [thread:$0]  %s1, 128, %s291, [#allocation8]
        $region16: #{tpu_custom_call.1} parent=11 // pred_fallthru
          _
        // Predicated region
        $region17: #{tpu_custom_call.1} parent=11 // pred_check
          %p294 = pneg %p95
        $region18: #{tpu_custom_call.1} parent=11 // pred_check_branch
          %296 = sbr.rel (%p294) target = $region20
        $region19: #{tpu_custom_call.1} parent=11 // pred_region
          %s298 = ssub.s32 128, 128
          %299 = vsyncadd [#allocation8], %s298
          %s301 = sshll.u32 [#allocation9], 4
          %s302 = int_to_ptr.vmem [resolvable:$true] %s301
          %304 = dma.hbm_to_vmem [thread:$0]  %s2, 128, %s302, [#allocation8]
        $region20: #{tpu_custom_call.1} parent=11 // pred_fallthru
          _
        // Predicated region
        $region21: #{tpu_custom_call.1} parent=11 // pred_check
          %p305 = pneg %p116
        $region22: #{tpu_custom_call.1} parent=11 // pred_check_branch
          %307 = sbr.rel (%p305) target = $region24
        $region23: #{tpu_custom_call.1} parent=11 // pred_region
          %s309 = ssub.s32 2048, 2048
          %310 = vsyncadd [#allocation11], %s309
          %s311 = sshll.u32 [#allocation10], 4
          %s312 = int_to_ptr.vmem [resolvable:$true] %s311
          %317 = dma.hbm_to_vmem [thread:$0]  %s3, 2048, %s312, [#allocation11], 128, 128, 8
        $region24: #{tpu_custom_call.1} parent=11 // pred_fallthru
          _
        // Predicated region
        $region25: #{tpu_custom_call.1} parent=11 // pred_check
          %p318 = pneg %p137
        $region26: #{tpu_custom_call.1} parent=11 // pred_check_branch
          %320 = sbr.rel (%p318) target = $region28
        $region27: #{tpu_custom_call.1} parent=11 // pred_region
          %s322 = ssub.s32 512, 512
          %323 = vsyncadd [#allocation11], %s322
          %s324 = sshll.u32 [#allocation12], 4
          %s325 = int_to_ptr.vmem [resolvable:$true] %s324
          %330 = dma.hbm_to_vmem [thread:$0]  %s4, 512, %s325, [#allocation11], 128, 128, 8
        $region28: #{tpu_custom_call.1} parent=11 // pred_fallthru
          _
        // Predicated region
        $region29: #{tpu_custom_call.1} parent=11 // pred_check
          %p331 = pneg %p158
        $region30: #{tpu_custom_call.1} parent=11 // pred_check_branch
          %333 = sbr.rel (%p331) target = $region32
        $region31: #{tpu_custom_call.1} parent=11 // pred_region
          _
        $region32: #{tpu_custom_call.1} parent=11 // pred_fallthru
          _
        // Predicated region
        $region33: #{tpu_custom_call.1} parent=11 // pred_check
          %p334 = pneg %p179
        $region34: #{tpu_custom_call.1} parent=11 // pred_check_branch
          %336 = sbr.rel (%p334) target = $region36
        $region35: #{tpu_custom_call.1} parent=11 // pred_region
          %s338 = ssub.s32 512, 512
          %339 = vsyncadd [#allocation14], %s338
          %s340 = sshll.u32 [#allocation13], 4
          %s341 = int_to_ptr.vmem [resolvable:$true] %s340
          %346 = dma.hbm_to_vmem [thread:$0]  %s6, 512, %s341, [#allocation14], 128, 128, 8
        $region36: #{tpu_custom_call.1} parent=11 // pred_fallthru
          _
        // Predicated region
        $region37: #{tpu_custom_call.1} parent=11 // pred_check
          %p347 = pneg %p200
        $region38: #{tpu_custom_call.1} parent=11 // pred_check_branch
          %349 = sbr.rel (%p347) target = $region40
        $region39: #{tpu_custom_call.1} parent=11 // pred_region
          _
        $region40: #{tpu_custom_call.1} parent=11 // pred_fallthru
          _
      $region12: #{tpu_custom_call.1} parent=5 // pred_fallthru
        _
      %p350 = scmp.lt.s32.totalorder %s27, 2
      // Predicated region
      $region41: #{tpu_custom_call.1} parent=5 // pred_check
        %p351 = pneg %p350
      $region42: #{tpu_custom_call.1} parent=5 // pred_check_branch
        %353 = sbr.rel (%p351) target = $region44
      $region43: #{tpu_custom_call.1} parent=5 // pred_region
        // Predicated region
        $region45: #{tpu_custom_call.1} parent=43 // pred_check
          %p354 = pneg %p47
        $region46: #{tpu_custom_call.1} parent=43 // pred_check_branch
          %356 = sbr.rel (%p354) target = $region48
        $region47: #{tpu_custom_call.1} parent=43 // pred_region
          %s357 = sand.u32 %s37, 1
          %s358 = scalar_lea.sflag [#allocation5], %s357
          %s359 = sand.u32 %s37, 1
          %s360 = smul.addr %s359, 32
          %s361 = scalar_lea.vmem [#allocation4], %s360
          %s362 = smul.u32 4, %s27
          %s364 = ssub.s32 512, 512
          %365 = vsyncadd %s358, %s364
          %s366 = smul.addr %s362, 128
          %s367 = scalar_lea.hbm %s0, %s366
          %s368 = sshll.u32 %s361, 4
          %s369 = int_to_ptr.vmem [resolvable:$true] %s368
          %374 = dma.hbm_to_vmem [thread:$0]  %s367, 512, %s369, %s358, 128, 128, 8
        $region48: #{tpu_custom_call.1} parent=43 // pred_fallthru
          _
      $region44: #{tpu_custom_call.1} parent=5 // pred_fallthru
        _
      %p375 = scmp.le.s32.totalorder 1, %s27
      %p376 = scmp.lt.s32.totalorder %s27, 3
      %p377 = pnand %p375, %p376
      %p378 = pneg %p377
      // Predicated region
      $region49: #{tpu_custom_call.1} parent=5 // pred_check
        _
      $region50: #{tpu_custom_call.1} parent=5 // pred_check_branch
        %380 = sbr.rel (%p377) target = $region52
      $region51: #{tpu_custom_call.1} parent=5 // pred_region
        %s381 = ssub.s32 %s27, 1
        %s382 = sand.u32 %s40, 1
        %s383 = scalar_lea.sflag [#allocation5], %s382
        %s384 = sand.u32 %s40, 1
        %s385 = smul.addr %s384, 32
        %s386 = scalar_lea.vmem [#allocation4], %s385
        // Predicated region
        $region53: #{tpu_custom_call.1} parent=51 // pred_check
          %p387 = pneg %p53
        $region54: #{tpu_custom_call.1} parent=51 // pred_check_branch
          %389 = sbr.rel (%p387) target = $region56
        $region55: #{tpu_custom_call.1} parent=51 // pred_region
          %390 = dma.done %s383, 512
        $region56: #{tpu_custom_call.1} parent=51 // pred_fallthru
          _
        // Predicated region
        $region57: #{tpu_custom_call.1} parent=51 // pred_check
          %p391 = pneg %p74
        $region58: #{tpu_custom_call.1} parent=51 // pred_check_branch
          %393 = sbr.rel (%p391) target = $region60
        $region59: #{tpu_custom_call.1} parent=51 // pred_region
          %394 = dma.done [#allocation8], 128
        $region60: #{tpu_custom_call.1} parent=51 // pred_fallthru
          _
        // Predicated region
        $region61: #{tpu_custom_call.1} parent=51 // pred_check
          %p395 = pneg %p95
        $region62: #{tpu_custom_call.1} parent=51 // pred_check_branch
          %397 = sbr.rel (%p395) target = $region64
        $region63: #{tpu_custom_call.1} parent=51 // pred_region
          %398 = dma.done [#allocation8], 128
        $region64: #{tpu_custom_call.1} parent=51 // pred_fallthru
          _
        // Predicated region
        $region65: #{tpu_custom_call.1} parent=51 // pred_check
          %p399 = pneg %p116
        $region66: #{tpu_custom_call.1} parent=51 // pred_check_branch
          %401 = sbr.rel (%p399) target = $region68
        $region67: #{tpu_custom_call.1} parent=51 // pred_region
          %402 = dma.done [#allocation11], 2048
        $region68: #{tpu_custom_call.1} parent=51 // pred_fallthru
          _
        // Predicated region
        $region69: #{tpu_custom_call.1} parent=51 // pred_check
          %p403 = pneg %p137
        $region70: #{tpu_custom_call.1} parent=51 // pred_check_branch
          %405 = sbr.rel (%p403) target = $region72
        $region71: #{tpu_custom_call.1} parent=51 // pred_region
          %406 = dma.done [#allocation11], 512
        $region72: #{tpu_custom_call.1} parent=51 // pred_fallthru
          _
        // Predicated region
        $region73: #{tpu_custom_call.1} parent=51 // pred_check
          %p407 = pneg %p179
        $region74: #{tpu_custom_call.1} parent=51 // pred_check_branch
          %409 = sbr.rel (%p407) target = $region76
        $region75: #{tpu_custom_call.1} parent=51 // pred_region
          %410 = dma.done [#allocation14], 512
        $region76: #{tpu_custom_call.1} parent=51 // pred_fallthru
          _
        %s411 = sand.u32 %s40, 1
        %s412 = scalar_lea.sflag [#allocation5], %s411
        %s413 = sand.u32 %s40, 1
        %s414 = smul.addr %s413, 32
        %s415 = scalar_lea.vmem [#allocation4], %s414
        %p416 = pneg %p53
        %p417 = pneg %p50
        %p418 = pneg %p74
        %p419 = pneg %p71
        %p420 = pneg %p95
        %p421 = pneg %p92
        %p422 = pneg %p116
        %p423 = pneg %p113
        %p424 = pneg %p137
        %p425 = pneg %p134
        %p426 = pneg %p158
        %p427 = pneg %p155
        %p428 = pneg %p179
        %p429 = pneg %p176
        %p430 = pneg %p200
        %p431 = pneg %p197
        %p432 = pneg %p226
        %p433 = pneg %p223
        %s434 = sand.u32 %s213, 1
        %s435 = scalar_lea.sflag [#allocation6], %s434
        %s436 = sand.u32 %s213, 1
        %s437 = smul.addr %s436, 32
        %s438 = scalar_lea.vmem [#allocation15], %s437
        %p439 = pneg %p247
        %p440 = pneg %p244
        %p441 = pneg %p268
        %p442 = pneg %p265
        %s443 = smul.u32 4, %s32
        %s444 = smul.u32 4, %s32
        %p445 = scmp.eq.s32.totalorder %s32, 0
        // Predicated region
        $region77: #{tpu_custom_call.1} parent=51 // pred_check
          %p446 = pneg %p445
        $region78: #{tpu_custom_call.1} parent=51 // pred_check_branch
          %448 = sbr.rel (%p446) target = $region80
        $region79: #{tpu_custom_call.1} parent=51 // pred_region
          %v449 = vld [vmem:[#allocation7] sm:$0xff]
          %vm450 = vcmask 261120
          %451 = vst.msk [vmem:[#allocation16] sm:$0xff] %vm450, %v449
          %v452 = vld [vmem:[#allocation9] sm:$0xff]
          %453 = vst.msk [vmem:[#allocation18] sm:$0xff] %vm450, %v452
        $region80: #{tpu_custom_call.1} parent=51 // pred_fallthru
          _
        %v454 = vld [vmem:[%s386] sm:$0xff]
        %v455 = vld [vmem:[%s386 + $0x8] sm:$0xff]
        %v456 = vld [vmem:[%s386 + $0x10] sm:$0xff]
        %v457 = vld [vmem:[%s386 + $0x18] sm:$0xff]
        %v458 = vld [vmem:[#allocation10] sm:$0xff]
        %v459 = vld [vmem:[#allocation10 + $0x8] sm:$0xff]
        %v460 = vld [vmem:[#allocation10 + $0x10] sm:$0xff]
        %v461 = vld [vmem:[#allocation10 + $0x18] sm:$0xff]
        %v462 = vld [vmem:[#allocation10 + $0x20] sm:$0xff]
        %v463 = vld [vmem:[#allocation10 + $0x28] sm:$0xff]
        %v464 = vld [vmem:[#allocation10 + $0x30] sm:$0xff]
        %v465 = vld [vmem:[#allocation10 + $0x38] sm:$0xff]
        %v466 = vld [vmem:[#allocation10 + $0x40] sm:$0xff]
        %v467 = vld [vmem:[#allocation10 + $0x48] sm:$0xff]
        %v468 = vld [vmem:[#allocation10 + $0x50] sm:$0xff]
        %v469 = vld [vmem:[#allocation10 + $0x58] sm:$0xff]
        %v470 = vld [vmem:[#allocation10 + $0x60] sm:$0xff]
        %v471 = vld [vmem:[#allocation10 + $0x68] sm:$0xff]
        %v472 = vld [vmem:[#allocation10 + $0x70] sm:$0xff]
        %v473 = vld [vmem:[#allocation10 + $0x78] sm:$0xff]
        %v474 = vld [vmem:[%s5] sm:$0x1]
        %v476 = vlaneseq
        %v477 = vshrl.u32 %v476, 7
        %v478 = vsub.s32 0, %v477
        %v479 = vrot.slane %v474, %v478
        %481 = vmatprep.subr.mxu0 0.0
        %482 = vmatpush1.msra.mxu0 %v458
        %483 = vmatprep.subr.mxu0 0.0
        %484 = vmatpush1.msra.mxu0 %v459
        %485 = vmatprep.subr.mxu0 0.0
        %486 = vmatpush1.msra.mxu0 %v460
        %487 = vmatprep.subr.mxu0 0.0
        %488 = vmatpush1.msra.mxu0 %v461
        %489 = vmatprep.subr.mxu0 0.0
        %490 = vmatpush1.msra.mxu0 %v462
        %491 = vmatprep.subr.mxu0 0.0
        %492 = vmatpush1.msra.mxu0 %v463
        %493 = vmatprep.subr.mxu0 0.0
        %494 = vmatpush1.msra.mxu0 %v464
        %495 = vmatprep.subr.mxu0 0.0
        %496 = vmatpush1.msra.mxu0 %v465
        %497 = vmatprep.subr.mxu0 0.0
        %498 = vmatpush1.msra.mxu0 %v466
        %499 = vmatprep.subr.mxu0 0.0
        %500 = vmatpush1.msra.mxu0 %v467
        %501 = vmatprep.subr.mxu0 0.0
        %502 = vmatpush1.msra.mxu0 %v468
        %503 = vmatprep.subr.mxu0 0.0
        %504 = vmatpush1.msra.mxu0 %v469
        %505 = vmatprep.subr.mxu0 0.0
        %506 = vmatpush1.msra.mxu0 %v470
        %507 = vmatprep.subr.mxu0 0.0
        %508 = vmatpush1.msra.mxu0 %v471
        %509 = vmatprep.subr.mxu0 0.0
        %510 = vmatpush1.msra.mxu0 %v472
        %511 = vmatprep.subr.mxu0 0.0
        %512 = vmatpush1.msra.mxu0 %v473
        %513 = vmatprep.subr.mxu0 0.0
        %514 = vmatpush1.msra.mxu0 0.0
        %515 = vmatprep.subr.mxu0 0.0
        %516 = vmatpush1.msra.mxu0 0.0
        %517 = vmatprep.subr.mxu0 0.0
        %518 = vmatpush1.msra.mxu0 0.0
        %519 = vmatprep.subr.mxu0 0.0
        %520 = vmatpush1.msra.mxu0 0.0
        %521 = vmatprep.subr.mxu0 0.0
        %522 = vmatpush1.msra.mxu0 0.0
        %523 = vmatprep.subr.mxu0 0.0
        %524 = vmatpush1.msra.mxu0 0.0
        %525 = vmatprep.subr.mxu0 0.0
        %526 = vmatpush1.msra.mxu0 0.0
        %527 = vmatprep.subr.mxu0 0.0
        %528 = vmatpush1.msra.mxu0 0.0
        %529 = vmatprep.subr.mxu0 0.0
        %530 = vmatpush1.msra.mxu0 0.0
        %531 = vmatprep.subr.mxu0 0.0
        %532 = vmatpush1.msra.mxu0 0.0
        %533 = vmatprep.subr.mxu0 0.0
        %534 = vmatpush1.msra.mxu0 0.0
        %535 = vmatprep.subr.mxu0 0.0
        %536 = vmatpush1.msra.mxu0 0.0
        %537 = vmatprep.subr.mxu0 0.0
        %538 = vmatpush1.msra.mxu0 0.0
        %539 = vmatprep.subr.mxu0 0.0
        %540 = vmatpush1.msra.mxu0 0.0
        %541 = vmatprep.subr.mxu0 0.0
        %542 = vmatpush1.msra.mxu0 0.0
        %543 = vmatprep.subr.mxu0 0.0
        %544 = vmatpush1.msra.mxu0 0.0
        %545 = vmatprep.mubr.f32.mxu0 0.0
        %546 = vmatmul.mubr.f32.gmra.mrb[0].mxu0 %v454
        %v547 = vpop.f32.mrb[0].mxu0
        %v548 = vadd.f32 %v479, %v547
        %v549 = vpop.f32.mrb[0].mxu0
        %550 = vmatprep.mubr.f32.mxu0 0.0
        %551 = vmatmul.mubr.f32.gmra.mrb[0].mxu0 %v455
        %v552 = vpop.f32.mrb[0].mxu0
        %v553 = vadd.f32 %v479, %v552
        %v554 = vpop.f32.mrb[0].mxu0
        %555 = vmatprep.mubr.f32.mxu0 0.0
        %556 = vmatmul.mubr.f32.gmra.mrb[0].mxu0 %v456
        %v557 = vpop.f32.mrb[0].mxu0
        %v558 = vadd.f32 %v479, %v557
        %v559 = vpop.f32.mrb[0].mxu0
        %560 = vmatprep.mubr.f32.mxu0 0.0
        %561 = vmatmul.mubr.f32.gmra.mrb[0].mxu0 %v457
        %v562 = vpop.f32.mrb[0].mxu0
        %v563 = vadd.f32 %v479, %v562
        %v564 = vpop.f32.mrb[0].mxu0
        %565 = vdwg.mxu0
        %566 = vst [vmem:[#allocation2] sm:$0xff] %v548
        %567 = vst [vmem:[#allocation2 + $0x8] sm:$0xff] %v553
        %568 = vst [vmem:[#allocation2 + $0x10] sm:$0xff] %v558
        %569 = vst [vmem:[#allocation2 + $0x18] sm:$0xff] %v563
        %v570 = vld [vmem:[#allocation16] sm:$0xff]
        %v571 = vld [vmem:[#allocation18] sm:$0xff]
        %v572 = vld [vmem:[#allocation2] sm:$0xff]
        %v573 = vld [vmem:[#allocation12] sm:$0xff]
        %v574 = vld [vmem:[#allocation12 + $0x8] sm:$0xff]
        %v575 = vld [vmem:[#allocation12 + $0x10] sm:$0xff]
        %v576 = vld [vmem:[#allocation12 + $0x18] sm:$0xff]
        %vm577 = vcmask 261120
        %v579 = vsel %vm577, %v570, 0
        %581 = vmatprep.subr.mxu0 0.0
        %582 = vmatpush1.msra.mxu0 %v573
        %583 = vmatprep.subr.mxu0 0.0
        %584 = vmatpush1.msra.mxu0 %v574
        %585 = vmatprep.subr.mxu0 0.0
        %586 = vmatpush1.msra.mxu0 %v575
        %587 = vmatprep.subr.mxu0 0.0
        %588 = vmatpush1.msra.mxu0 %v576
        %589 = vmatprep.subr.mxu0 0.0
        %590 = vmatpush1.msra.mxu0 0.0
        %591 = vmatprep.subr.mxu0 0.0
        %592 = vmatpush1.msra.mxu0 0.0
        %593 = vmatprep.subr.mxu0 0.0
        %594 = vmatpush1.msra.mxu0 0.0
        %595 = vmatprep.subr.mxu0 0.0
        %596 = vmatpush1.msra.mxu0 0.0
        %597 = vmatprep.subr.mxu0 0.0
        %598 = vmatpush1.msra.mxu0 0.0
        %599 = vmatprep.subr.mxu0 0.0
        %600 = vmatpush1.msra.mxu0 0.0
        %601 = vmatprep.subr.mxu0 0.0
        %602 = vmatpush1.msra.mxu0 0.0
        %603 = vmatprep.subr.mxu0 0.0
        %604 = vmatpush1.msra.mxu0 0.0
        %605 = vmatprep.subr.mxu0 0.0
        %606 = vmatpush1.msra.mxu0 0.0
        %607 = vmatprep.subr.mxu0 0.0
        %608 = vmatpush1.msra.mxu0 0.0
        %609 = vmatprep.subr.mxu0 0.0
        %610 = vmatpush1.msra.mxu0 0.0
        %611 = vmatprep.subr.mxu0 0.0
        %612 = vmatpush1.msra.mxu0 0.0
        %613 = vmatprep.subr.mxu0 0.0
        %614 = vmatpush1.msra.mxu0 0.0
        %615 = vmatprep.subr.mxu0 0.0
        %616 = vmatpush1.msra.mxu0 0.0
        %617 = vmatprep.subr.mxu0 0.0
        %618 = vmatpush1.msra.mxu0 0.0
        %619 = vmatprep.subr.mxu0 0.0
        %620 = vmatpush1.msra.mxu0 0.0
        %621 = vmatprep.subr.mxu0 0.0
        %622 = vmatpush1.msra.mxu0 0.0
        %623 = vmatprep.subr.mxu0 0.0
        %624 = vmatpush1.msra.mxu0 0.0
        %625 = vmatprep.subr.mxu0 0.0
        %626 = vmatpush1.msra.mxu0 0.0
        %627 = vmatprep.subr.mxu0 0.0
        %628 = vmatpush1.msra.mxu0 0.0
        %629 = vmatprep.subr.mxu0 0.0
        %630 = vmatpush1.msra.mxu0 0.0
        %631 = vmatprep.subr.mxu0 0.0
        %632 = vmatpush1.msra.mxu0 0.0
        %633 = vmatprep.subr.mxu0 0.0
        %634 = vmatpush1.msra.mxu0 0.0
        %635 = vmatprep.subr.mxu0 0.0
        %636 = vmatpush1.msra.mxu0 0.0
        %637 = vmatprep.subr.mxu0 0.0
        %638 = vmatpush1.msra.mxu0 0.0
        %639 = vmatprep.subr.mxu0 0.0
        %640 = vmatpush1.msra.mxu0 0.0
        %641 = vmatprep.subr.mxu0 0.0
        %642 = vmatpush1.msra.mxu0 0.0
        %643 = vmatprep.subr.mxu0 0.0
        %644 = vmatpush1.msra.mxu0 0.0
        %645 = vmatprep.mubr.f32.mxu0 0.0
        %646 = vmatmul.mubr.f32.gmra.mrb[0].mxu0 %v579
        %v647 = vpop.f32.mrb[0].mxu0
        %v648 = vadd.f32 0.0, %v647
        %v649 = vpop.f32.mrb[0].mxu0
        %650 = vdwg.mxu0
        %v651 = vadd.f32 %v572, %v648
        %v652 = vxor.u32 %v651, 2147483648
        %v653 = vmul.f32 %v652, 1.442695
        %v654 = vpow.pop %v653
        %v655 = vadd.f32 %v654, 1.0
        %v656 = vrcp.pop %v655
        %v657 = vmul.f32 1.0, %v656
        %v658 = vtanh.pop %v651
        %660 = vrot.lane.b32.xlu0 %v571, 32
        %v661 = vpop.permute.xlu0 %660
        %v663 = vmul.f32 %v657, %v661
        %665 = vrot.lane.b32.xlu0 %v658, 64
        %v666 = vpop.permute.xlu0 %665
        %v668 = vmul.f32 %v657, %v666
        %670 = vrot.lane.b32.xlu0 %v668, 32
        %v671 = vpop.permute.xlu0 %670
        %v673 = vadd.f32 %v663, %v671
        %v674 = vtanh.pop %v673
        %676 = vrot.lane.b32.xlu0 %v674, 64
        %v677 = vpop.permute.xlu0 %676
        %v679 = vmul.f32 %v657, %v677
        %681 = vrot.lane.b32.xlu0 %v679, 32
        %v682 = vpop.permute.xlu0 %681
        %684 = vst.msk [vmem:[#allocation3] sm:$0xff] %vm577, %v682
        %v685 = vld [vmem:[#allocation2 + $0x8] sm:$0xff]
        %v686 = vld [vmem:[#allocation12] sm:$0xff]
        %v687 = vld [vmem:[#allocation12 + $0x8] sm:$0xff]
        %v688 = vld [vmem:[#allocation12 + $0x10] sm:$0xff]
        %v689 = vld [vmem:[#allocation12 + $0x18] sm:$0xff]
        %v690 = vsel %vm577, %v682, 0
        %692 = vmatprep.subr.mxu0 0.0
        %693 = vmatpush1.msra.mxu0 %v686
        %694 = vmatprep.subr.mxu0 0.0
        %695 = vmatpush1.msra.mxu0 %v687
        %696 = vmatprep.subr.mxu0 0.0
        %697 = vmatpush1.msra.mxu0 %v688
        %698 = vmatprep.subr.mxu0 0.0
        %699 = vmatpush1.msra.mxu0 %v689
        %700 = vmatprep.subr.mxu0 0.0
        %701 = vmatpush1.msra.mxu0 0.0
        %702 = vmatprep.subr.mxu0 0.0
        %703 = vmatpush1.msra.mxu0 0.0
        %704 = vmatprep.subr.mxu0 0.0
        %705 = vmatpush1.msra.mxu0 0.0
        %706 = vmatprep.subr.mxu0 0.0
        %707 = vmatpush1.msra.mxu0 0.0
        %708 = vmatprep.subr.mxu0 0.0
        %709 = vmatpush1.msra.mxu0 0.0
        %710 = vmatprep.subr.mxu0 0.0
        %711 = vmatpush1.msra.mxu0 0.0
        %712 = vmatprep.subr.mxu0 0.0
        %713 = vmatpush1.msra.mxu0 0.0
        %714 = vmatprep.subr.mxu0 0.0
        %715 = vmatpush1.msra.mxu0 0.0
        %716 = vmatprep.subr.mxu0 0.0
        %717 = vmatpush1.msra.mxu0 0.0
        %718 = vmatprep.subr.mxu0 0.0
        %719 = vmatpush1.msra.mxu0 0.0
        %720 = vmatprep.subr.mxu0 0.0
        %721 = vmatpush1.msra.mxu0 0.0
        %722 = vmatprep.subr.mxu0 0.0
        %723 = vmatpush1.msra.mxu0 0.0
        %724 = vmatprep.subr.mxu0 0.0
        %725 = vmatpush1.msra.mxu0 0.0
        %726 = vmatprep.subr.mxu0 0.0
        %727 = vmatpush1.msra.mxu0 0.0
        %728 = vmatprep.subr.mxu0 0.0
        %729 = vmatpush1.msra.mxu0 0.0
        %730 = vmatprep.subr.mxu0 0.0
        %731 = vmatpush1.msra.mxu0 0.0
        %732 = vmatprep.subr.mxu0 0.0
        %733 = vmatpush1.msra.mxu0 0.0
        %734 = vmatprep.subr.mxu0 0.0
        %735 = vmatpush1.msra.mxu0 0.0
        %736 = vmatprep.subr.mxu0 0.0
        %737 = vmatpush1.msra.mxu0 0.0
        %738 = vmatprep.subr.mxu0 0.0
        %739 = vmatpush1.msra.mxu0 0.0
        %740 = vmatprep.subr.mxu0 0.0
        %741 = vmatpush1.msra.mxu0 0.0
        %742 = vmatprep.subr.mxu0 0.0
        %743 = vmatpush1.msra.mxu0 0.0
        %744 = vmatprep.subr.mxu0 0.0
        %745 = vmatpush1.msra.mxu0 0.0
        %746 = vmatprep.subr.mxu0 0.0
        %747 = vmatpush1.msra.mxu0 0.0
        %748 = vmatprep.subr.mxu0 0.0
        %749 = vmatpush1.msra.mxu0 0.0
        %750 = vmatprep.subr.mxu0 0.0
        %751 = vmatpush1.msra.mxu0 0.0
        %752 = vmatprep.subr.mxu0 0.0
        %753 = vmatpush1.msra.mxu0 0.0
        %754 = vmatprep.subr.mxu0 0.0
        %755 = vmatpush1.msra.mxu0 0.0
        %756 = vmatprep.mubr.f32.mxu0 0.0
        %757 = vmatmul.mubr.f32.gmra.mrb[0].mxu0 %v690
        %v758 = vpop.f32.mrb[0].mxu0
        %v759 = vadd.f32 0.0, %v758
        %v760 = vpop.f32.mrb[0].mxu0
        %761 = vdwg.mxu0
        %v762 = vadd.f32 %v685, %v759
        %v763 = vxor.u32 %v762, 2147483648
        %v764 = vmul.f32 %v763, 1.442695
        %v765 = vpow.pop %v764
        %v766 = vadd.f32 %v765, 1.0
        %v767 = vrcp.pop %v766
        %v768 = vmul.f32 1.0, %v767
        %v769 = vtanh.pop %v762
        %v770 = vmul.f32 %v768, %v673
        %772 = vrot.lane.b32.xlu0 %v769, 64
        %v773 = vpop.permute.xlu0 %772
        %v775 = vmul.f32 %v768, %v773
        %777 = vrot.lane.b32.xlu0 %v775, 32
        %v778 = vpop.permute.xlu0 %777
        %v780 = vadd.f32 %v770, %v778
        %v781 = vtanh.pop %v780
        %783 = vrot.lane.b32.xlu0 %v781, 64
        %v784 = vpop.permute.xlu0 %783
        %v786 = vmul.f32 %v768, %v784
        %788 = vrot.lane.b32.xlu0 %v786, 32
        %v789 = vpop.permute.xlu0 %788
        %791 = vst.msk [vmem:[#allocation3 + $0x8] sm:$0xff] %vm577, %v789
        %v792 = vld [vmem:[#allocation2 + $0x10] sm:$0xff]
        %v793 = vld [vmem:[#allocation12] sm:$0xff]
        %v794 = vld [vmem:[#allocation12 + $0x8] sm:$0xff]
        %v795 = vld [vmem:[#allocation12 + $0x10] sm:$0xff]
        %v796 = vld [vmem:[#allocation12 + $0x18] sm:$0xff]
        %v797 = vsel %vm577, %v789, 0
        %799 = vmatprep.subr.mxu0 0.0
        %800 = vmatpush1.msra.mxu0 %v793
        %801 = vmatprep.subr.mxu0 0.0
        %802 = vmatpush1.msra.mxu0 %v794
        %803 = vmatprep.subr.mxu0 0.0
        %804 = vmatpush1.msra.mxu0 %v795
        %805 = vmatprep.subr.mxu0 0.0
        %806 = vmatpush1.msra.mxu0 %v796
        %807 = vmatprep.subr.mxu0 0.0
        %808 = vmatpush1.msra.mxu0 0.0
        %809 = vmatprep.subr.mxu0 0.0
        %810 = vmatpush1.msra.mxu0 0.0
        %811 = vmatprep.subr.mxu0 0.0
        %812 = vmatpush1.msra.mxu0 0.0
        %813 = vmatprep.subr.mxu0 0.0
        %814 = vmatpush1.msra.mxu0 0.0
        %815 = vmatprep.subr.mxu0 0.0
        %816 = vmatpush1.msra.mxu0 0.0
        %817 = vmatprep.subr.mxu0 0.0
        %818 = vmatpush1.msra.mxu0 0.0
        %819 = vmatprep.subr.mxu0 0.0
        %820 = vmatpush1.msra.mxu0 0.0
        %821 = vmatprep.subr.mxu0 0.0
        %822 = vmatpush1.msra.mxu0 0.0
        %823 = vmatprep.subr.mxu0 0.0
        %824 = vmatpush1.msra.mxu0 0.0
        %825 = vmatprep.subr.mxu0 0.0
        %826 = vmatpush1.msra.mxu0 0.0
        %827 = vmatprep.subr.mxu0 0.0
        %828 = vmatpush1.msra.mxu0 0.0
        %829 = vmatprep.subr.mxu0 0.0
        %830 = vmatpush1.msra.mxu0 0.0
        %831 = vmatprep.subr.mxu0 0.0
        %832 = vmatpush1.msra.mxu0 0.0
        %833 = vmatprep.subr.mxu0 0.0
        %834 = vmatpush1.msra.mxu0 0.0
        %835 = vmatprep.subr.mxu0 0.0
        %836 = vmatpush1.msra.mxu0 0.0
        %837 = vmatprep.subr.mxu0 0.0
        %838 = vmatpush1.msra.mxu0 0.0
        %839 = vmatprep.subr.mxu0 0.0
        %840 = vmatpush1.msra.mxu0 0.0
        %841 = vmatprep.subr.mxu0 0.0
        %842 = vmatpush1.msra.mxu0 0.0
        %843 = vmatprep.subr.mxu0 0.0
        %844 = vmatpush1.msra.mxu0 0.0
        %845 = vmatprep.subr.mxu0 0.0
        %846 = vmatpush1.msra.mxu0 0.0
        %847 = vmatprep.subr.mxu0 0.0
        %848 = vmatpush1.msra.mxu0 0.0
        %849 = vmatprep.subr.mxu0 0.0
        %850 = vmatpush1.msra.mxu0 0.0
        %851 = vmatprep.subr.mxu0 0.0
        %852 = vmatpush1.msra.mxu0 0.0
        %853 = vmatprep.subr.mxu0 0.0
        %854 = vmatpush1.msra.mxu0 0.0
        %855 = vmatprep.subr.mxu0 0.0
        %856 = vmatpush1.msra.mxu0 0.0
        %857 = vmatprep.subr.mxu0 0.0
        %858 = vmatpush1.msra.mxu0 0.0
        %859 = vmatprep.subr.mxu0 0.0
        %860 = vmatpush1.msra.mxu0 0.0
        %861 = vmatprep.subr.mxu0 0.0
        %862 = vmatpush1.msra.mxu0 0.0
        %863 = vmatprep.mubr.f32.mxu0 0.0
        %864 = vmatmul.mubr.f32.gmra.mrb[0].mxu0 %v797
        %v865 = vpop.f32.mrb[0].mxu0
        %v866 = vadd.f32 0.0, %v865
        %v867 = vpop.f32.mrb[0].mxu0
        %868 = vdwg.mxu0
        %v869 = vadd.f32 %v792, %v866
        %v870 = vxor.u32 %v869, 2147483648
        %v871 = vmul.f32 %v870, 1.442695
        %v872 = vpow.pop %v871
        %v873 = vadd.f32 %v872, 1.0
        %v874 = vrcp.pop %v873
        %v875 = vmul.f32 1.0, %v874
        %v876 = vtanh.pop %v869
        %v877 = vmul.f32 %v875, %v780
        %879 = vrot.lane.b32.xlu0 %v876, 64
        %v880 = vpop.permute.xlu0 %879
        %v882 = vmul.f32 %v875, %v880
        %884 = vrot.lane.b32.xlu0 %v882, 32
        %v885 = vpop.permute.xlu0 %884
        %v887 = vadd.f32 %v877, %v885
        %v888 = vtanh.pop %v887
        %890 = vrot.lane.b32.xlu0 %v888, 64
        %v891 = vpop.permute.xlu0 %890
        %v893 = vmul.f32 %v875, %v891
        %895 = vrot.lane.b32.xlu0 %v893, 32
        %v896 = vpop.permute.xlu0 %895
        %898 = vst.msk [vmem:[#allocation3 + $0x10] sm:$0xff] %vm577, %v896
        %v899 = vld [vmem:[#allocation2 + $0x18] sm:$0xff]
        %v900 = vld [vmem:[#allocation12] sm:$0xff]
        %v901 = vld [vmem:[#allocation12 + $0x8] sm:$0xff]
        %v902 = vld [vmem:[#allocation12 + $0x10] sm:$0xff]
        %v903 = vld [vmem:[#allocation12 + $0x18] sm:$0xff]
        %v904 = vsel %vm577, %v896, 0
        %906 = vmatprep.subr.mxu0 0.0
        %907 = vmatpush1.msra.mxu0 %v900
        %908 = vmatprep.subr.mxu0 0.0
        %909 = vmatpush1.msra.mxu0 %v901
        %910 = vmatprep.subr.mxu0 0.0
        %911 = vmatpush1.msra.mxu0 %v902
        %912 = vmatprep.subr.mxu0 0.0
        %913 = vmatpush1.msra.mxu0 %v903
        %914 = vmatprep.subr.mxu0 0.0
        %915 = vmatpush1.msra.mxu0 0.0
        %916 = vmatprep.subr.mxu0 0.0
        %917 = vmatpush1.msra.mxu0 0.0
        %918 = vmatprep.subr.mxu0 0.0
        %919 = vmatpush1.msra.mxu0 0.0
        %920 = vmatprep.subr.mxu0 0.0
        %921 = vmatpush1.msra.mxu0 0.0
        %922 = vmatprep.subr.mxu0 0.0
        %923 = vmatpush1.msra.mxu0 0.0
        %924 = vmatprep.subr.mxu0 0.0
        %925 = vmatpush1.msra.mxu0 0.0
        %926 = vmatprep.subr.mxu0 0.0
        %927 = vmatpush1.msra.mxu0 0.0
        %928 = vmatprep.subr.mxu0 0.0
        %929 = vmatpush1.msra.mxu0 0.0
        %930 = vmatprep.subr.mxu0 0.0
        %931 = vmatpush1.msra.mxu0 0.0
        %932 = vmatprep.subr.mxu0 0.0
        %933 = vmatpush1.msra.mxu0 0.0
        %934 = vmatprep.subr.mxu0 0.0
        %935 = vmatpush1.msra.mxu0 0.0
        %936 = vmatprep.subr.mxu0 0.0
        %937 = vmatpush1.msra.mxu0 0.0
        %938 = vmatprep.subr.mxu0 0.0
        %939 = vmatpush1.msra.mxu0 0.0
        %940 = vmatprep.subr.mxu0 0.0
        %941 = vmatpush1.msra.mxu0 0.0
        %942 = vmatprep.subr.mxu0 0.0
        %943 = vmatpush1.msra.mxu0 0.0
        %944 = vmatprep.subr.mxu0 0.0
        %945 = vmatpush1.msra.mxu0 0.0
        %946 = vmatprep.subr.mxu0 0.0
        %947 = vmatpush1.msra.mxu0 0.0
        %948 = vmatprep.subr.mxu0 0.0
        %949 = vmatpush1.msra.mxu0 0.0
        %950 = vmatprep.subr.mxu0 0.0
        %951 = vmatpush1.msra.mxu0 0.0
        %952 = vmatprep.subr.mxu0 0.0
        %953 = vmatpush1.msra.mxu0 0.0
        %954 = vmatprep.subr.mxu0 0.0
        %955 = vmatpush1.msra.mxu0 0.0
        %956 = vmatprep.subr.mxu0 0.0
        %957 = vmatpush1.msra.mxu0 0.0
        %958 = vmatprep.subr.mxu0 0.0
        %959 = vmatpush1.msra.mxu0 0.0
        %960 = vmatprep.subr.mxu0 0.0
        %961 = vmatpush1.msra.mxu0 0.0
        %962 = vmatprep.subr.mxu0 0.0
        %963 = vmatpush1.msra.mxu0 0.0
        %964 = vmatprep.subr.mxu0 0.0
        %965 = vmatpush1.msra.mxu0 0.0
        %966 = vmatprep.subr.mxu0 0.0
        %967 = vmatpush1.msra.mxu0 0.0
        %968 = vmatprep.subr.mxu0 0.0
        %969 = vmatpush1.msra.mxu0 0.0
        %970 = vmatprep.mubr.f32.mxu0 0.0
        %971 = vmatmul.mubr.f32.gmra.mrb[0].mxu0 %v904
        %v972 = vpop.f32.mrb[0].mxu0
        %v973 = vadd.f32 0.0, %v972
        %v974 = vpop.f32.mrb[0].mxu0
        %975 = vdwg.mxu0
        %v976 = vadd.f32 %v899, %v973
        %v977 = vxor.u32 %v976, 2147483648
        %v978 = vmul.f32 %v977, 1.442695
        %v979 = vpow.pop %v978
        %v980 = vadd.f32 %v979, 1.0
        %v981 = vrcp.pop %v980
        %v982 = vmul.f32 1.0, %v981
        %v983 = vtanh.pop %v976
        %v984 = vmul.f32 %v982, %v887
        %986 = vrot.lane.b32.xlu0 %v983, 64
        %v987 = vpop.permute.xlu0 %986
        %v989 = vmul.f32 %v982, %v987
        %991 = vrot.lane.b32.xlu0 %v989, 32
        %v992 = vpop.permute.xlu0 %991
        %v994 = vadd.f32 %v984, %v992
        %v995 = vtanh.pop %v994
        %997 = vrot.lane.b32.xlu0 %v995, 64
        %v998 = vpop.permute.xlu0 %997
        %v1000 = vmul.f32 %v982, %v998
        %1002 = vrot.lane.b32.xlu0 %v1000, 32
        %v1003 = vpop.permute.xlu0 %1002
        %1005 = vst.msk [vmem:[#allocation3 + $0x18] sm:$0xff] %vm577, %v1003
        %1006 = vst.msk [vmem:[#allocation16] sm:$0xff] %vm577, %v1003
        %1008 = vrot.lane.b32.xlu0 %v994, 96
        %v1009 = vpop.permute.xlu0 %1008
        %1011 = vst.msk [vmem:[#allocation18] sm:$0xff] %vm577, %v1009
        %v1012 = vld [vmem:[#allocation3] sm:$0xff]
        %v1013 = vld [vmem:[#allocation3 + $0x8] sm:$0xff]
        %v1014 = vld [vmem:[#allocation3 + $0x10] sm:$0xff]
        %v1015 = vld [vmem:[#allocation3 + $0x18] sm:$0xff]
        %v1016 = vld [vmem:[#allocation13] sm:$0xff]
        %v1017 = vld [vmem:[#allocation13 + $0x8] sm:$0xff]
        %v1018 = vld [vmem:[#allocation13 + $0x10] sm:$0xff]
        %v1019 = vld [vmem:[#allocation13 + $0x18] sm:$0xff]
        %v1020 = vld [vmem:[%s7] sm:$0x1]
        %v1022 = vlaneseq
        %v1023 = vshrl.u32 %v1022, 7
        %v1024 = vsub.s32 0, %v1023
        %v1025 = vrot.slane %v1020, %v1024
        %v1028 = vsel %vm577, %v1012, 0
        %v1031 = vsel %vm577, %v1013, 0
        %v1034 = vsel %vm577, %v1014, 0
        %v1037 = vsel %vm577, %v1015, 0
        %1039 = vmatprep.subr.mxu0 0.0
        %1040 = vmatpush1.msra.mxu0 %v1016
        %1041 = vmatprep.subr.mxu0 0.0
        %1042 = vmatpush1.msra.mxu0 %v1017
        %1043 = vmatprep.subr.mxu0 0.0
        %1044 = vmatpush1.msra.mxu0 %v1018
        %1045 = vmatprep.subr.mxu0 0.0
        %1046 = vmatpush1.msra.mxu0 %v1019
        %1047 = vmatprep.subr.mxu0 0.0
        %1048 = vmatpush1.msra.mxu0 0.0
        %1049 = vmatprep.subr.mxu0 0.0
        %1050 = vmatpush1.msra.mxu0 0.0
        %1051 = vmatprep.subr.mxu0 0.0
        %1052 = vmatpush1.msra.mxu0 0.0
        %1053 = vmatprep.subr.mxu0 0.0
        %1054 = vmatpush1.msra.mxu0 0.0
        %1055 = vmatprep.subr.mxu0 0.0
        %1056 = vmatpush1.msra.mxu0 0.0
        %1057 = vmatprep.subr.mxu0 0.0
        %1058 = vmatpush1.msra.mxu0 0.0
        %1059 = vmatprep.subr.mxu0 0.0
        %1060 = vmatpush1.msra.mxu0 0.0
        %1061 = vmatprep.subr.mxu0 0.0
        %1062 = vmatpush1.msra.mxu0 0.0
        %1063 = vmatprep.subr.mxu0 0.0
        %1064 = vmatpush1.msra.mxu0 0.0
        %1065 = vmatprep.subr.mxu0 0.0
        %1066 = vmatpush1.msra.mxu0 0.0
        %1067 = vmatprep.subr.mxu0 0.0
        %1068 = vmatpush1.msra.mxu0 0.0
        %1069 = vmatprep.subr.mxu0 0.0
        %1070 = vmatpush1.msra.mxu0 0.0
        %1071 = vmatprep.subr.mxu0 0.0
        %1072 = vmatpush1.msra.mxu0 0.0
        %1073 = vmatprep.subr.mxu0 0.0
        %1074 = vmatpush1.msra.mxu0 0.0
        %1075 = vmatprep.subr.mxu0 0.0
        %1076 = vmatpush1.msra.mxu0 0.0
        %1077 = vmatprep.subr.mxu0 0.0
        %1078 = vmatpush1.msra.mxu0 0.0
        %1079 = vmatprep.subr.mxu0 0.0
        %1080 = vmatpush1.msra.mxu0 0.0
        %1081 = vmatprep.subr.mxu0 0.0
        %1082 = vmatpush1.msra.mxu0 0.0
        %1083 = vmatprep.subr.mxu0 0.0
        %1084 = vmatpush1.msra.mxu0 0.0
        %1085 = vmatprep.subr.mxu0 0.0
        %1086 = vmatpush1.msra.mxu0 0.0
        %1087 = vmatprep.subr.mxu0 0.0
        %1088 = vmatpush1.msra.mxu0 0.0
        %1089 = vmatprep.subr.mxu0 0.0
        %1090 = vmatpush1.msra.mxu0 0.0
        %1091 = vmatprep.subr.mxu0 0.0
        %1092 = vmatpush1.msra.mxu0 0.0
        %1093 = vmatprep.subr.mxu0 0.0
        %1094 = vmatpush1.msra.mxu0 0.0
        %1095 = vmatprep.subr.mxu0 0.0
        %1096 = vmatpush1.msra.mxu0 0.0
        %1097 = vmatprep.subr.mxu0 0.0
        %1098 = vmatpush1.msra.mxu0 0.0
        %1099 = vmatprep.subr.mxu0 0.0
        %1100 = vmatpush1.msra.mxu0 0.0
        %1101 = vmatprep.subr.mxu0 0.0
        %1102 = vmatpush1.msra.mxu0 0.0
        %1103 = vmatprep.mubr.f32.mxu0 0.0
        %1104 = vmatmul.mubr.f32.gmra.mrb[0].mxu0 %v1028
        %v1105 = vpop.f32.mrb[0].mxu0
        %v1106 = vadd.f32 %v1025, %v1105
        %v1107 = vpop.f32.mrb[0].mxu0
        %1108 = vmatprep.mubr.f32.mxu0 0.0
        %1109 = vmatmul.mubr.f32.gmra.mrb[0].mxu0 %v1031
        %v1110 = vpop.f32.mrb[0].mxu0
        %v1111 = vadd.f32 %v1025, %v1110
        %v1112 = vpop.f32.mrb[0].mxu0
        %1113 = vmatprep.mubr.f32.mxu0 0.0
        %1114 = vmatmul.mubr.f32.gmra.mrb[0].mxu0 %v1034
        %v1115 = vpop.f32.mrb[0].mxu0
        %v1116 = vadd.f32 %v1025, %v1115
        %v1117 = vpop.f32.mrb[0].mxu0
        %1118 = vmatprep.mubr.f32.mxu0 0.0
        %1119 = vmatmul.mubr.f32.gmra.mrb[0].mxu0 %v1037
        %v1120 = vpop.f32.mrb[0].mxu0
        %v1121 = vadd.f32 %v1025, %v1120
        %v1122 = vpop.f32.mrb[0].mxu0
        %1123 = vdwg.mxu0
        %1124 = vst [vmem:[%s438] sm:$0xff] %v1106
        %1125 = vst [vmem:[%s438 + $0x8] sm:$0xff] %v1111
        %1126 = vst [vmem:[%s438 + $0x10] sm:$0xff] %v1116
        %1127 = vst [vmem:[%s438 + $0x18] sm:$0xff] %v1121
        %s1128 = sand.u32 %s213, 1
        %s1129 = scalar_lea.sflag [#allocation6], %s1128
        %s1130 = sand.u32 %s213, 1
        %s1131 = smul.addr %s1130, 32
        %s1132 = scalar_lea.vmem [#allocation15], %s1131
        // Predicated region
        $region81: #{tpu_custom_call.1} parent=51 // pred_check
          %p1133 = pneg %p223
        $region82: #{tpu_custom_call.1} parent=51 // pred_check_branch
          %1135 = sbr.rel (%p1133) target = $region84
        $region83: #{tpu_custom_call.1} parent=51 // pred_region
          %s1136 = smul.u32 4, %s32
          %s1138 = ssub.s32 512, 512
          %1139 = vsyncadd %s1129, %s1138
          %s1140 = smul.addr %s1136, 128
          %s1141 = scalar_lea.hbm %s8, %s1140
          %s1142 = sshll.u32 %s1132, 4
          %s1143 = int_to_ptr.vmem [resolvable:$true] %s1142
          %1148 = dma.vmem_to_hbm [thread:$0]  %s1143, 512, %s1141, %s1129, 128, 128, 8
        $region84: #{tpu_custom_call.1} parent=51 // pred_fallthru
          _
        // Predicated region
        $region85: #{tpu_custom_call.1} parent=51 // pred_check
          %p1149 = pneg %p244
        $region86: #{tpu_custom_call.1} parent=51 // pred_check_branch
          %1151 = sbr.rel (%p1149) target = $region88
        $region87: #{tpu_custom_call.1} parent=51 // pred_region
          %s1153 = ssub.s32 128, 128
          %1154 = vsyncadd [#allocation17], %s1153
          %s1156 = sshll.u32 [#allocation16], 4
          %s1157 = int_to_ptr.vmem [resolvable:$true] %s1156
          %1159 = dma.vmem_to_hbm [thread:$0]  %s1157, 128, %s9, [#allocation17]
        $region88: #{tpu_custom_call.1} parent=51 // pred_fallthru
          _
        // Predicated region
        $region89: #{tpu_custom_call.1} parent=51 // pred_check
          %p1160 = pneg %p265
        $region90: #{tpu_custom_call.1} parent=51 // pred_check_branch
          %1162 = sbr.rel (%p1160) target = $region92
        $region91: #{tpu_custom_call.1} parent=51 // pred_region
          %s1164 = ssub.s32 128, 128
          %1165 = vsyncadd [#allocation17], %s1164
          %s1167 = sshll.u32 [#allocation18], 4
          %s1168 = int_to_ptr.vmem [resolvable:$true] %s1167
          %1170 = dma.vmem_to_hbm [thread:$0]  %s1168, 128, %s10, [#allocation17]
        $region92: #{tpu_custom_call.1} parent=51 // pred_fallthru
          _
        // Predicated region
        $region93: #{tpu_custom_call.1} parent=51 // pred_check
          %p1171 = pneg %p244
        $region94: #{tpu_custom_call.1} parent=51 // pred_check_branch
          %1173 = sbr.rel (%p1171) target = $region96
        $region95: #{tpu_custom_call.1} parent=51 // pred_region
          %1174 = dma.done [#allocation17], 128
        $region96: #{tpu_custom_call.1} parent=51 // pred_fallthru
          _
        // Predicated region
        $region97: #{tpu_custom_call.1} parent=51 // pred_check
          %p1175 = pneg %p265
        $region98: #{tpu_custom_call.1} parent=51 // pred_check_branch
          %1177 = sbr.rel (%p1175) target = $region100
        $region99: #{tpu_custom_call.1} parent=51 // pred_region
          %1178 = dma.done [#allocation17], 128
        $region100: #{tpu_custom_call.1} parent=51 // pred_fallthru
          _
      $region52: #{tpu_custom_call.1} parent=5 // pred_fallthru
        _
      %p1179 = scmp.le.s32.totalorder 2, %s27
      // Predicated region
      $region101: #{tpu_custom_call.1} parent=5 // pred_check
        %p1180 = pneg %p1179
      $region102: #{tpu_custom_call.1} parent=5 // pred_check_branch
        %1182 = sbr.rel (%p1180) target = $region104
      $region103: #{tpu_custom_call.1} parent=5 // pred_region
        %s1183 = ssub.s32 %s27, 2
        // Predicated region
        $region105: #{tpu_custom_call.1} parent=103 // pred_check
          %p1184 = pneg %p229
        $region106: #{tpu_custom_call.1} parent=103 // pred_check_branch
          %1186 = sbr.rel (%p1184) target = $region108
        $region107: #{tpu_custom_call.1} parent=103 // pred_region
          %s1187 = sand.u32 %s214, 1
          %s1188 = scalar_lea.sflag [#allocation6], %s1187
          %s1189 = sand.u32 %s214, 1
          %s1190 = smul.addr %s1189, 32
          %s1191 = scalar_lea.vmem [#allocation15], %s1190
          %1192 = dma.done %s1188, 512
        $region108: #{tpu_custom_call.1} parent=103 // pred_fallthru
          _
      $region104: #{tpu_custom_call.1} parent=5 // pred_fallthru
        _
    $region6: #{tpu_custom_call.1} parent=1 // loop_footer
      %s31 = sadd.s32 1, %s27
    $region7: #{tpu_custom_call.1} parent=1 // loop_footer_branch
      %26 = sbr.rel target = $region3
    $region8: #{tpu_custom_call.1} parent=1 // loop_exit
      _
    %1193 = vsyncpa [#allocation5], 1
    %s1194 = scalar_lea.sflag [#allocation5], 1
    %1195 = vsyncpa %s1194, 1
    %1196 = vsyncpa [#allocation8], 1
    %1197 = vsyncpa [#allocation11], 1
    %1198 = vsyncpa [#allocation14], 1
    %1199 = vsyncpa [#allocation6], 1
    %s1200 = scalar_lea.sflag [#allocation6], 1
    %1201 = vsyncpa %s1200, 1
    %1202 = vsyncpa [#allocation17], 1

</llo_original>
